<compile_context>
chip_gen: v7x
topology: tpu7x:2x2x1
jax: 0.10.0
libtpu: 0.0.40
codegen_flags: <defaults>
</compile_context>

<pallas_src>
import functools
import math

import jax
import jax.numpy as jnp
import numpy as np
from jax.experimental import pallas as pl
from jax.experimental.pallas import tpu as pltpu


def _posemb_kernel(const_ref, o_ref, *, rows_per_block, pos_per_row):
    """Write one (rows_per_block, lane_width) tile of the sinusoidal table.

    const_ref rows: [freq (div_term per lane), lane position offset, odd flag].
    pe[pos, j] = sin(pos * freq[j]) on even j, cos(...) on odd j.  pos is an
    exact small integer in f32 and pos * freq is a single f32 multiply, so the
    argument is bit-identical to the reference's position * div_term.
    """
    c = const_ref[...]                    # (3, L) f32
    freq = c[0:1, :]                      # (1, L)
    lane_off = c[1:2, :]                  # (1, L) position offset within a row
    odd = c[2:3, :]                       # (1, L) 1.0 on odd feature columns

    base = pl.program_id(0) * (rows_per_block * pos_per_row)
    row_pos = (jax.lax.broadcasted_iota(jnp.int32, o_ref.shape, 0) * pos_per_row
               + base)                                       # int32, exact
    pos = row_pos.astype(jnp.float32) + lane_off             # exact ints <= 511
    theta = pos * freq
    val = jnp.where(odd > 0.5, jnp.cos(theta), jnp.sin(theta))
    o_ref[...] = val.astype(o_ref.dtype)


def _host_constants(d_model, reps, lane_width):
    """Per-lane constants, with div_term computed in f32 exactly like the module."""
    div_term = np.exp(
        np.arange(0, d_model, 2, dtype=np.float32)
        * np.float32(-(math.log(10000.0) / d_model))
    ).astype(np.float32)
    j = np.arange(d_model)
    freq = div_term[j // 2].astype(np.float32)       # (d_model,)
    odd = (j % 2).astype(np.float32)

    freq_l = np.zeros((lane_width,), np.float32)
    off_l = np.zeros((lane_width,), np.float32)
    odd_l = np.zeros((lane_width,), np.float32)
    used = reps * d_model
    freq_l[:used] = np.tile(freq, reps)
    odd_l[:used] = np.tile(odd, reps)
    off_l[:used] = np.repeat(np.arange(reps, dtype=np.float32), d_model)
    return np.stack([freq_l, off_l, odd_l])           # (3, lane_width)


def _num_tensorcores():
    """v7x has 2 TensorCores per chip; v5e/v6e have 1."""
    try:
        kind = jax.devices()[0].device_kind.lower()
    except Exception:
        return 1
    return 2 if "v7" in kind else 1


@functools.lru_cache(maxsize=None)
def _pe_table(d_model, max_len, dtype_name):
    assert d_model % 2 == 0, "d_model must be even (as in the PyTorch module)"
    dtype = jnp.dtype(dtype_name)

    # Layout: keep the output last dim a multiple of 128 so all stores are
    # unmasked full-width vst (biggest single lever on the store path).
    lane_packed = (d_model < 128 and 128 % d_model == 0
                   and max_len % (128 // d_model) == 0)
    if lane_packed:
        reps = 128 // d_model                  # positions packed per slab row
        lane_width = 128
        rows = max_len // reps
    else:
        reps = 1
        lane_width = ((d_model + 127) // 128) * 128   # pad; extra cols sliced off
        rows = max_len

    const = jnp.asarray(_host_constants(d_model, reps, lane_width))  # (3, L)

    # Single block on single-TC chips (grid is a serial loop there); split the
    # rows in two only on v7x so both TensorCores share the work.
    if _num_tensorcores() >= 2 and rows >= 16 and (rows // 2) % 8 == 0:
        rows_per_block = rows // 2
    else:
        rows_per_block = rows
    grid = (rows // rows_per_block,)

    table = pl.pallas_call(
        functools.partial(_posemb_kernel,
                          rows_per_block=rows_per_block, pos_per_row=reps),
        out_shape=jax.ShapeDtypeStruct((rows, lane_width), dtype),
        grid=grid,
        in_specs=[pl.BlockSpec((3, lane_width), lambda i: (0, 0))],
        out_specs=pl.BlockSpec((rows_per_block, lane_width), lambda i: (i, 0)),
        compiler_params=pltpu.CompilerParams(dimension_semantics=("parallel",)),
    )(const)

    # Wrapper-side layout plumbing only (no compute).
    if lane_packed:
        table = table.reshape(max_len, d_model)
    elif lane_width != d_model:
        table = table[:, :d_model]
    return table[None]                                # (1, max_len, d_model)


def positional_embedding(x, d_model, max_len=512, dtype=jnp.float32):
    """Equivalent of PositionalEmbedding(d_model, max_len).forward(x).

    The full max_len table is built once per (d_model, max_len, dtype) and
    cached; each forward is just a slice to x's static sequence length.
    """
    seq = int(x.shape[1])
    assert seq <= max_len, "sequence length exceeds max_len"
    table = _pe_table(int(d_model), int(max_len), jnp.dtype(dtype).name)
    return table[:, :seq]


def _reference(seq, d_model, max_len=512):
    # Pure-numpy replica of the PyTorch buffer construction, sliced to seq.
    pe = np.zeros((max_len, d_model), dtype=np.float32)
    position = np.arange(0, max_len, dtype=np.float32)[:, None]
    div_term = np.exp(np.arange(0, d_model, 2, dtype=np.float32)
                      * np.float32(-(math.log(10000.0) / d_model)))
    pe[:, 0::2] = np.sin(position * div_term)
    pe[:, 1::2] = np.cos(position * div_term)
    return pe[None, :seq]


if __name__ == "__main__":
    key = jax.random.PRNGKey(0)
    batch, seq, d_model = 2, 8, 32
    # x: (batch, seq, d_model) — only its seq dim is consumed by forward().
    x = jax.random.normal(key, (batch, seq, d_model), dtype=jnp.float32)

    out = jax.block_until_ready(positional_embedding(x, d_model=d_model, max_len=512))
    assert out.shape == (1, seq, d_model), out.shape
    assert out.dtype == jnp.float32
    np.testing.assert_allclose(np.asarray(out), _reference(seq, d_model),
                               rtol=1e-5, atol=1e-5)

    # A longer sequence hits the cached max_len table (no new compile/launch)
    # and validates the whole 512-position buffer.  Loose atol: TPU sin/cos
    # range reduction differs from NumPy's for arguments up to ~511 rad; this
    # checks layout/indexing, not ULP parity.
    x_long = jax.random.normal(key, (batch, 512, d_model), dtype=jnp.float32)
    out_full = jax.block_until_ready(
        positional_embedding(x_long, d_model=d_model, max_len=512))
    np.testing.assert_allclose(np.asarray(out_full), _reference(512, d_model),
                               rtol=1e-4, atol=5e-4)

    # Exercise the lane-padding path (d_model that is not a divisor/multiple of 128).
    d2 = 48
    x2 = jax.random.normal(key, (batch, seq, d2), dtype=jnp.float32)
    out2 = jax.block_until_ready(positional_embedding(x2, d_model=d2, max_len=512))
    np.testing.assert_allclose(np.asarray(out2), _reference(seq, d2),
                               rtol=1e-5, atol=1e-5)

    print("KERNEL_OK")
</pallas_src>

<mosaic_0001>
module attributes {stable_mosaic.version = 11 : i64} {
  func.func @_posemb_kernel(%arg0: i32, %arg1: memref<3x128xf32, #tpu.memory_space<vmem>>, %arg2: memref<128x128xf32, #tpu.memory_space<vmem>>) attributes {dimension_semantics = [#tpu.dimension_semantics<parallel>], iteration_bounds = array<i64: 1>, scalar_prefetch = 0 : i64, scratch_operands = 0 : i64, tpu.core_type = #tpu.core_type<tc>, window_params = [{pipeline_mode = #tpu.pipeline_mode<synchronous>, transform_indices = @transform_0, window_bounds = array<i64: 3, 128>}, {transform_indices = @transform_1, window_bounds = array<i64: 128, 128>}]} {
    %c0 = arith.constant 0 : index
    %c0_0 = arith.constant 0 : index
    %0 = vector.load %arg1[%c0, %c0_0] : memref<3x128xf32, #tpu.memory_space<vmem>>, vector<3x128xf32>
    %1 = vector.extract_strided_slice %0 {offsets = [0, 0], sizes = [1, 128], strides = [1, 1]} : vector<3x128xf32> to vector<1x128xf32>
    %2 = vector.extract_strided_slice %0 {offsets = [1, 0], sizes = [1, 128], strides = [1, 1]} : vector<3x128xf32> to vector<1x128xf32>
    %3 = vector.extract_strided_slice %0 {offsets = [2, 0], sizes = [1, 128], strides = [1, 1]} : vector<3x128xf32> to vector<1x128xf32>
    %c512_i32 = arith.constant 512 : i32
    %4 = arith.muli %arg0, %c512_i32 : i32
    %5 = tpu.iota {dimensions = array<i32: 0>} : vector<128x128xi32>
    %c4_i32 = arith.constant 4 : i32
    %6 = vector.broadcast %c4_i32 : i32 to vector<128x128xi32>
    %7 = arith.muli %5, %6 : vector<128x128xi32>
    %8 = vector.broadcast %4 : i32 to vector<128x128xi32>
    %9 = arith.addi %7, %8 : vector<128x128xi32>
    %10 = arith.sitofp %9 : vector<128x128xi32> to vector<128x128xf32>
    %11 = vector.broadcast %2 : vector<1x128xf32> to vector<128x128xf32>
    %12 = arith.addf %10, %11 : vector<128x128xf32>
    %13 = vector.broadcast %1 : vector<1x128xf32> to vector<128x128xf32>
    %14 = arith.mulf %12, %13 : vector<128x128xf32>
    %cst = arith.constant 5.000000e-01 : f32
    %15 = vector.broadcast %cst : f32 to vector<1x128xf32>
    %16 = arith.cmpf ogt, %3, %15 : vector<1x128xf32>
    %17 = math.cos %14 : vector<128x128xf32>
    %18 = math.sin %14 : vector<128x128xf32>
    %19 = vector.shape_cast %16 : vector<1x128xi1> to vector<1x128xi1>
    %20 = vector.broadcast %19 : vector<1x128xi1> to vector<128x128xi1>
    %21 = arith.select %20, %17, %18 : vector<128x128xi1>, vector<128x128xf32>
    %c0_1 = arith.constant 0 : index
    %c0_2 = arith.constant 0 : index
    %22 = vector.load %arg2[%c0_1, %c0_2] : memref<128x128xf32, #tpu.memory_space<vmem>>, vector<128x128xf32>
    tpu.vector_store %arg2[%c0_1, %c0_2], %21 {strides = array<i32>} : memref<128x128xf32, #tpu.memory_space<vmem>>, vector<128x128xf32>,
    return
  }
  func.func @transform_0(%arg0: i32) -> (i32, i32) {
    %c0_i32 = arith.constant 0 : i32
    %c0_i32_0 = arith.constant 0 : i32
    %c0_i32_1 = arith.constant 0 : i32
    return %c0_i32, %c0_i32_0 : i32, i32
  }
  func.func @transform_1(%arg0: i32) -> (i32, i32) {
    %c0_i32 = arith.constant 0 : i32
    %c0_i32_0 = arith.constant 0 : i32
    return %arg0, %c0_i32 : i32, i32
  }
}

</mosaic_0001>

<llo_original>
// kernel: tpu_custom_call.1
$region0: #{tpu_custom_call.1}
  #allocation0 [shape = 'u32[]', space=smem, size = 0x4, offset = 0x4, fixed_abs, tag = 'smem constant byte address 0x4 - core index']
  #allocation1 [shape = 'u32[144,128]{1,0:T(1,128)}', space=vmem, size = 0x12000, scoped, tag = 'internal scratch']
  %s0 = inlined_call_operand.hbm [shape: f32[3,128], index: 0, kind: input, shape index: {}]
  %s1 = inlined_call_operand.hbm [shape: f32[128,128], index: 1, kind: output, shape index: {}]
  %s2 = sld [smem:[#allocation0]]
  $region18: #{tpu_custom_call.1} parent=0
    _
  %s4 = ssub.s32 1, %s2
  %s5 = scalar_select 0, %s4, %s2
  $region1: #{tpu_custom_call.1} parent=0
    #allocation2 [shape = 'u8[2048]{0}', space=vmem, size = 0x800, scoped, tag = 'input window, operand 0, single buffered']
    #allocation3 [shape = 's32[1]{0}', space=sflag, size = 0x4, scoped, tag = 'scoped memory for tpu_custom_call.1']
    #allocation4 [shape = 's32[1]{0}', space=sflag, size = 0x4, scoped, tag = 'scoped memory for tpu_custom_call.1']
    #allocation5 [shape = 'u8[65536]{0}', space=vmem, size = 0x10000, scoped, tag = 'output window, operand 0, single buffered']
    %6 = vsyncpa [#allocation3], 0
    %7 = vsyncpa [#allocation4], 0
    // Predicated region
    $region2: #{tpu_custom_call.1} parent=1 // pred_check
      _
    $region3: #{tpu_custom_call.1} parent=1 // pred_check_branch
      %9 = sbr.rel (0) target = $region5
    $region4: #{tpu_custom_call.1} parent=1 // pred_region
      %s11 = ssub.s32 64, 64
      %12 = vsyncadd [#allocation3], %s11
      %s14 = sshll.u32 [#allocation2], 4
      %s15 = int_to_ptr.vmem [resolvable:$true] %s14
      %17 = dma.hbm_to_vmem [thread:$0]  %s0, 64, %s15, [#allocation3]
    $region5: #{tpu_custom_call.1} parent=1 // pred_fallthru
      _
    // Predicated region
    $region6: #{tpu_custom_call.1} parent=1 // pred_check
      _
    $region7: #{tpu_custom_call.1} parent=1 // pred_check_branch
      %19 = sbr.rel (0) target = $region9
    $region8: #{tpu_custom_call.1} parent=1 // pred_region
      %20 = dma.done [#allocation3], 64
    $region9: #{tpu_custom_call.1} parent=1 // pred_fallthru
      _
    %v21 = vld [vmem:[#allocation2] sm:$0x7]
    %s22 = smul.u32 0, 512
    %v23 = vlaneseq
    %v24 = vshrl.u32 %v23, 7
    %v25 = vadd.s32 %v24, 8
    %v26 = vadd.s32 %v24, 16
    %v27 = vadd.s32 %v24, 24
    %v28 = vadd.s32 %v24, 32
    %v29 = vadd.s32 %v24, 40
    %v30 = vadd.s32 %v24, 48
    %v31 = vadd.s32 %v24, 56
    %v32 = vadd.s32 %v24, 64
    %v33 = vadd.s32 %v24, 72
    %v34 = vadd.s32 %v24, 80
    %v35 = vadd.s32 %v24, 88
    %v36 = vadd.s32 %v24, 96
    %v37 = vadd.s32 %v24, 104
    %v38 = vadd.s32 %v24, 112
    %v39 = vadd.s32 %v24, 120
    %v40 = vmul.u32 %v24, 4
    %v41 = vmul.u32 %v25, 4
    %v42 = vmul.u32 %v26, 4
    %v43 = vmul.u32 %v27, 4
    %v44 = vmul.u32 %v28, 4
    %v45 = vmul.u32 %v29, 4
    %v46 = vmul.u32 %v30, 4
    %v47 = vmul.u32 %v31, 4
    %v48 = vmul.u32 %v32, 4
    %v49 = vmul.u32 %v33, 4
    %v50 = vmul.u32 %v34, 4
    %v51 = vmul.u32 %v35, 4
    %v52 = vmul.u32 %v36, 4
    %v53 = vmul.u32 %v37, 4
    %v54 = vmul.u32 %v38, 4
    %v55 = vmul.u32 %v39, 4
    %v56 = vstv %s22
    %v57 = vadd.s32 %v40, %v56
    %v58 = vadd.s32 %v41, %v56
    %v59 = vadd.s32 %v42, %v56
    %v60 = vadd.s32 %v43, %v56
    %v61 = vadd.s32 %v44, %v56
    %v62 = vadd.s32 %v45, %v56
    %v63 = vadd.s32 %v46, %v56
    %v64 = vadd.s32 %v47, %v56
    %v65 = vadd.s32 %v48, %v56
    %v66 = vadd.s32 %v49, %v56
    %v67 = vadd.s32 %v50, %v56
    %v68 = vadd.s32 %v51, %v56
    %v69 = vadd.s32 %v52, %v56
    %v70 = vadd.s32 %v53, %v56
    %v71 = vadd.s32 %v54, %v56
    %v72 = vadd.s32 %v55, %v56
    %v73 = vcvt.s32.f32 %v57
    %v74 = vcvt.s32.f32 %v58
    %v75 = vcvt.s32.f32 %v59
    %v76 = vcvt.s32.f32 %v60
    %v77 = vcvt.s32.f32 %v61
    %v78 = vcvt.s32.f32 %v62
    %v79 = vcvt.s32.f32 %v63
    %v80 = vcvt.s32.f32 %v64
    %v81 = vcvt.s32.f32 %v65
    %v82 = vcvt.s32.f32 %v66
    %v83 = vcvt.s32.f32 %v67
    %v84 = vcvt.s32.f32 %v68
    %v85 = vcvt.s32.f32 %v69
    %v86 = vcvt.s32.f32 %v70
    %v87 = vcvt.s32.f32 %v71
    %v88 = vcvt.s32.f32 %v72
    %v89 = vlaneseq
    %v90 = vshrl.u32 %v89, 7
    %v91 = vsub.s32 1, %v90
    %v92 = vrot.slane %v21, %v91
    %v93 = vadd.f32 %v73, %v92
    %v94 = vadd.f32 %v74, %v92
    %v95 = vadd.f32 %v75, %v92
    %v96 = vadd.f32 %v76, %v92
    %v97 = vadd.f32 %v77, %v92
    %v98 = vadd.f32 %v78, %v92
    %v99 = vadd.f32 %v79, %v92
    %v100 = vadd.f32 %v80, %v92
    %v101 = vadd.f32 %v81, %v92
    %v102 = vadd.f32 %v82, %v92
    %v103 = vadd.f32 %v83, %v92
    %v104 = vadd.f32 %v84, %v92
    %v105 = vadd.f32 %v85, %v92
    %v106 = vadd.f32 %v86, %v92
    %v107 = vadd.f32 %v87, %v92
    %v108 = vadd.f32 %v88, %v92
    %v109 = vlaneseq
    %v110 = vshrl.u32 %v109, 7
    %v111 = vsub.s32 0, %v110
    %v112 = vrot.slane %v21, %v111
    %v113 = vmul.f32 %v93, %v112
    %v114 = vmul.f32 %v94, %v112
    %v115 = vmul.f32 %v95, %v112
    %v116 = vmul.f32 %v96, %v112
    %v117 = vmul.f32 %v97, %v112
    %v118 = vmul.f32 %v98, %v112
    %v119 = vmul.f32 %v99, %v112
    %v120 = vmul.f32 %v100, %v112
    %v121 = vmul.f32 %v101, %v112
    %v122 = vmul.f32 %v102, %v112
    %v123 = vmul.f32 %v103, %v112
    %v124 = vmul.f32 %v104, %v112
    %v125 = vmul.f32 %v105, %v112
    %v126 = vmul.f32 %v106, %v112
    %v127 = vmul.f32 %v107, %v112
    %v128 = vmul.f32 %v108, %v112
    %vm129 = vcmp.gt.f32.partialorder %v21, 0.5
    %v130 = vand.u32 2147483647, %v113
    %vm131 = vcmp.le.f32.partialorder %v130, 0.7853982
    %vm132 = vcmp.lt.s32.totalorder %v113, 0
    %v133 = vand.u32 %v113, 2139095040
    %v134 = vshrl.u32 %v133, 23
    %v135 = vsub.s32 %v134, 127
    %v136 = vand.u32 2147483647, %v113
    %v137 = vand.u32 %v136, 8388607
    %v138 = vor.u32 %v137, 8388608
    %v139 = vsub.s32 0, %v138
    %v140 = vadd.s32 %v135, 1
    %vm141 = vcmp.gt.s32.totalorder %v140, 0
    %v142 = vsel %vm141, %v140, 0
    %v143 = vshrl.u32 %v142, 5
    %v144 = vand.u32 %v142, 31
    %v145 = vsub.s32 32, %v144
    %v146 = vshrl.u32 683565275, %v145
    %v147 = vshll.u32 683565275, %v144
    %v148 = vshrl.u32 2475754826, %v145
    %v149 = vor.u32 %v147, %v148
    %v150 = vshll.u32 2475754826, %v144
    %v151 = vshrl.u32 2131351028, %v145
    %v152 = vor.u32 %v150, %v151
    %v153 = vshll.u32 2131351028, %v144
    %v154 = vshrl.u32 2102212464, %v145
    %v155 = vor.u32 %v153, %v154
    %v156 = vshll.u32 2102212464, %v144
    %v157 = vshrl.u32 920167782, %v145
    %v158 = vor.u32 %v156, %v157
    %v159 = vshll.u32 920167782, %v144
    %v160 = vshrl.u32 1326507024, %v145
    %v161 = vor.u32 %v159, %v160
    %vm162 = vcmp.lt.s32.totalorder %v143, 1
    %vm163 = vcmp.lt.s32.totalorder %v143, 2
    %vm164 = vcmp.lt.s32.totalorder %v143, 3
    %vm165 = vcmp.lt.s32.totalorder %v143, 4
    %v166 = vsel %vm162, %v146, %v149
    %v167 = vsel %vm165, %v155, 2102212464
    %v168 = vsel %vm164, %v152, %v167
    %v169 = vsel %vm163, %v166, %v168
    %v170 = vsel %vm162, %v149, %v152
    %v171 = vsel %vm165, %v158, 920167782
    %v172 = vsel %vm164, %v155, %v171
    %v173 = vsel %vm163, %v170, %v172
    %v174 = vsel %vm162, %v152, %v155
    %v175 = vsel %vm165, %v161, 1326507024
    %v176 = vsel %vm164, %v158, %v175
    %v177 = vsel %vm163, %v174, %v176
    %v178 = vshll.u32 %v138, 8
    %v179 = vmul.u32.u64.compose %v178, %v177
    %v180 = vextract.low.u32 %v179
    %v181 = vextract.high.u32 %v179
    %v182 = vmul.u32.u64.compose %v178, %v173
    %v183 = vextract.low.u32 %v182
    %v184 = vextract.high.u32 %v182
    %v185 = vmul.u32 %v178, %v169
    %v186 = vadd.s32 %v181, %v183
    %vm187 = vc.u32 %v181, %v183
    %v188 = vadd.s32 %v184, 1
    %v189 = vsel %vm187, %v188, %v184
    %v190 = vadd.s32 %v185, %v189
    %v191 = vadd.s32 %v190, 536870912
    %v192 = vshrl.u32 %v191, 30
    %v193 = vshll.u32 %v192, 30
    %v194 = vsub.s32 %v190, %v193
    %vm195 = vcmp.lt.s32.totalorder %v194, 0
    %v196 = vsub.s32 0, %v194
    %v197 = vsel %vm195, %v196, %v194
    %v198 = vclz %v197
    %v199 = vsub.s32 %v198, 2
    %vm200 = vcmp.gt.s32.totalorder 0, %v199
    %v201 = vsel %vm200, 0, %v199
    %v202 = vsub.s32 32, %v201
    %v203 = vshll.u32 %v194, %v201
    %v204 = vshrl.u32 %v186, %v202
    %v205 = vor.u32 %v203, %v204
    %v206 = vsub.s32 4294967266, %v201
    %v207 = vadd.s32 %v206, 127
    %v208 = vshll.u32 %v207, 23
    %v209 = vor.u32 4788187, %v208
    %v210 = vand.u32 2147483647, %v209
    %v212 = vcvt.s32.f32 %v205
    %v213 = vmul.f32 %v212, %v210
    %v214 = vxor.u32 %v213, 2147483648
    %v215 = vsel %vm132, %v214, %v213
    %v216 = vsub.s32 4, %v192
    %v217 = vsel %vm132, %v216, %v192
    %v218 = vsel %vm131, %v113, %v215
    %v219 = vsel %vm131, 0, %v217
    %v220 = vcosq.f32.pop %v218
    %v221 = vsinq.f32.pop %v218
    %vm222 = vweird.f32 %v113
    %v223 = vand.u32 %v219, 3
    %vm224 = vcmp.lt.s32.totalorder %v223, 2
    %vm225 = vcmp.eq.s32.totalorder %v223, 0
    %v226 = vxor.u32 %v221, 2147483648
    %v227 = vsel %vm225, %v220, %v226
    %vm228 = vcmp.eq.s32.totalorder %v223, 2
    %v229 = vxor.u32 %v220, 2147483648
    %v230 = vsel %vm228, %v229, %v221
    %v231 = vsel %vm224, %v227, %v230
    %v232 = vsel %vm222, nan, %v231
    %v233 = vand.u32 2147483647, %v114
    %vm234 = vcmp.le.f32.partialorder %v233, 0.7853982
    %vm235 = vcmp.lt.s32.totalorder %v114, 0
    %v236 = vand.u32 %v114, 2139095040
    %v237 = vshrl.u32 %v236, 23
    %v238 = vsub.s32 %v237, 127
    %v239 = vand.u32 2147483647, %v114
    %v240 = vand.u32 %v239, 8388607
    %v241 = vor.u32 %v240, 8388608
    %v242 = vsub.s32 0, %v241
    %v243 = vadd.s32 %v238, 1
    %vm244 = vcmp.gt.s32.totalorder %v243, 0
    %v245 = vsel %vm244, %v243, 0
    %v246 = vshrl.u32 %v245, 5
    %v247 = vand.u32 %v245, 31
    %v248 = vsub.s32 32, %v247
    %v249 = vshrl.u32 683565275, %v248
    %v250 = vshll.u32 683565275, %v247
    %v251 = vshrl.u32 2475754826, %v248
    %v252 = vor.u32 %v250, %v251
    %v253 = vshll.u32 2475754826, %v247
    %v254 = vshrl.u32 2131351028, %v248
    %v255 = vor.u32 %v253, %v254
    %v256 = vshll.u32 2131351028, %v247
    %v257 = vshrl.u32 2102212464, %v248
    %v258 = vor.u32 %v256, %v257
    %v259 = vshll.u32 2102212464, %v247
    %v260 = vshrl.u32 920167782, %v248
    %v261 = vor.u32 %v259, %v260
    %v262 = vshll.u32 920167782, %v247
    %v263 = vshrl.u32 1326507024, %v248
    %v264 = vor.u32 %v262, %v263
    %vm265 = vcmp.lt.s32.totalorder %v246, 1
    %vm266 = vcmp.lt.s32.totalorder %v246, 2
    %vm267 = vcmp.lt.s32.totalorder %v246, 3
    %vm268 = vcmp.lt.s32.totalorder %v246, 4
    %v269 = vsel %vm265, %v249, %v252
    %v270 = vsel %vm268, %v258, 2102212464
    %v271 = vsel %vm267, %v255, %v270
    %v272 = vsel %vm266, %v269, %v271
    %v273 = vsel %vm265, %v252, %v255
    %v274 = vsel %vm268, %v261, 920167782
    %v275 = vsel %vm267, %v258, %v274
    %v276 = vsel %vm266, %v273, %v275
    %v277 = vsel %vm265, %v255, %v258
    %v278 = vsel %vm268, %v264, 1326507024
    %v279 = vsel %vm267, %v261, %v278
    %v280 = vsel %vm266, %v277, %v279
    %v281 = vshll.u32 %v241, 8
    %v282 = vmul.u32.u64.compose %v281, %v280
    %v283 = vextract.low.u32 %v282
    %v284 = vextract.high.u32 %v282
    %v285 = vmul.u32.u64.compose %v281, %v276
    %v286 = vextract.low.u32 %v285
    %v287 = vextract.high.u32 %v285
    %v288 = vmul.u32 %v281, %v272
    %v289 = vadd.s32 %v284, %v286
    %vm290 = vc.u32 %v284, %v286
    %v291 = vadd.s32 %v287, 1
    %v292 = vsel %vm290, %v291, %v287
    %v293 = vadd.s32 %v288, %v292
    %v294 = vadd.s32 %v293, 536870912
    %v295 = vshrl.u32 %v294, 30
    %v296 = vshll.u32 %v295, 30
    %v297 = vsub.s32 %v293, %v296
    %vm298 = vcmp.lt.s32.totalorder %v297, 0
    %v299 = vsub.s32 0, %v297
    %v300 = vsel %vm298, %v299, %v297
    %v301 = vclz %v300
    %v302 = vsub.s32 %v301, 2
    %vm303 = vcmp.gt.s32.totalorder 0, %v302
    %v304 = vsel %vm303, 0, %v302
    %v305 = vsub.s32 32, %v304
    %v306 = vshll.u32 %v297, %v304
    %v307 = vshrl.u32 %v289, %v305
    %v308 = vor.u32 %v306, %v307
    %v309 = vsub.s32 4294967266, %v304
    %v310 = vadd.s32 %v309, 127
    %v311 = vshll.u32 %v310, 23
    %v312 = vor.u32 4788187, %v311
    %v313 = vand.u32 2147483647, %v312
    %v315 = vcvt.s32.f32 %v308
    %v316 = vmul.f32 %v315, %v313
    %v317 = vxor.u32 %v316, 2147483648
    %v318 = vsel %vm235, %v317, %v316
    %v319 = vsub.s32 4, %v295
    %v320 = vsel %vm235, %v319, %v295
    %v321 = vsel %vm234, %v114, %v318
    %v322 = vsel %vm234, 0, %v320
    %v323 = vcosq.f32.pop %v321
    %v324 = vsinq.f32.pop %v321
    %vm325 = vweird.f32 %v114
    %v326 = vand.u32 %v322, 3
    %vm327 = vcmp.lt.s32.totalorder %v326, 2
    %vm328 = vcmp.eq.s32.totalorder %v326, 0
    %v329 = vxor.u32 %v324, 2147483648
    %v330 = vsel %vm328, %v323, %v329
    %vm331 = vcmp.eq.s32.totalorder %v326, 2
    %v332 = vxor.u32 %v323, 2147483648
    %v333 = vsel %vm331, %v332, %v324
    %v334 = vsel %vm327, %v330, %v333
    %v335 = vsel %vm325, nan, %v334
    %v336 = vand.u32 2147483647, %v115
    %vm337 = vcmp.le.f32.partialorder %v336, 0.7853982
    %vm338 = vcmp.lt.s32.totalorder %v115, 0
    %v339 = vand.u32 %v115, 2139095040
    %v340 = vshrl.u32 %v339, 23
    %v341 = vsub.s32 %v340, 127
    %v342 = vand.u32 2147483647, %v115
    %v343 = vand.u32 %v342, 8388607
    %v344 = vor.u32 %v343, 8388608
    %v345 = vsub.s32 0, %v344
    %v346 = vadd.s32 %v341, 1
    %vm347 = vcmp.gt.s32.totalorder %v346, 0
    %v348 = vsel %vm347, %v346, 0
    %v349 = vshrl.u32 %v348, 5
    %v350 = vand.u32 %v348, 31
    %v351 = vsub.s32 32, %v350
    %v352 = vshrl.u32 683565275, %v351
    %v353 = vshll.u32 683565275, %v350
    %v354 = vshrl.u32 2475754826, %v351
    %v355 = vor.u32 %v353, %v354
    %v356 = vshll.u32 2475754826, %v350
    %v357 = vshrl.u32 2131351028, %v351
    %v358 = vor.u32 %v356, %v357
    %v359 = vshll.u32 2131351028, %v350
    %v360 = vshrl.u32 2102212464, %v351
    %v361 = vor.u32 %v359, %v360
    %v362 = vshll.u32 2102212464, %v350
    %v363 = vshrl.u32 920167782, %v351
    %v364 = vor.u32 %v362, %v363
    %v365 = vshll.u32 920167782, %v350
    %v366 = vshrl.u32 1326507024, %v351
    %v367 = vor.u32 %v365, %v366
    %vm368 = vcmp.lt.s32.totalorder %v349, 1
    %vm369 = vcmp.lt.s32.totalorder %v349, 2
    %vm370 = vcmp.lt.s32.totalorder %v349, 3
    %vm371 = vcmp.lt.s32.totalorder %v349, 4
    %v372 = vsel %vm368, %v352, %v355
    %v373 = vsel %vm371, %v361, 2102212464
    %v374 = vsel %vm370, %v358, %v373
    %v375 = vsel %vm369, %v372, %v374
    %v376 = vsel %vm368, %v355, %v358
    %v377 = vsel %vm371, %v364, 920167782
    %v378 = vsel %vm370, %v361, %v377
    %v379 = vsel %vm369, %v376, %v378
    %v380 = vsel %vm368, %v358, %v361
    %v381 = vsel %vm371, %v367, 1326507024
    %v382 = vsel %vm370, %v364, %v381
    %v383 = vsel %vm369, %v380, %v382
    %v384 = vshll.u32 %v344, 8
    %v385 = vmul.u32.u64.compose %v384, %v383
    %v386 = vextract.low.u32 %v385
    %v387 = vextract.high.u32 %v385
    %v388 = vmul.u32.u64.compose %v384, %v379
    %v389 = vextract.low.u32 %v388
    %v390 = vextract.high.u32 %v388
    %v391 = vmul.u32 %v384, %v375
    %v392 = vadd.s32 %v387, %v389
    %vm393 = vc.u32 %v387, %v389
    %v394 = vadd.s32 %v390, 1
    %v395 = vsel %vm393, %v394, %v390
    %v396 = vadd.s32 %v391, %v395
    %v397 = vadd.s32 %v396, 536870912
    %v398 = vshrl.u32 %v397, 30
    %v399 = vshll.u32 %v398, 30
    %v400 = vsub.s32 %v396, %v399
    %vm401 = vcmp.lt.s32.totalorder %v400, 0
    %v402 = vsub.s32 0, %v400
    %v403 = vsel %vm401, %v402, %v400
    %v404 = vclz %v403
    %v405 = vsub.s32 %v404, 2
    %vm406 = vcmp.gt.s32.totalorder 0, %v405
    %v407 = vsel %vm406, 0, %v405
    %v408 = vsub.s32 32, %v407
    %v409 = vshll.u32 %v400, %v407
    %v410 = vshrl.u32 %v392, %v408
    %v411 = vor.u32 %v409, %v410
    %v412 = vsub.s32 4294967266, %v407
    %v413 = vadd.s32 %v412, 127
    %v414 = vshll.u32 %v413, 23
    %v415 = vor.u32 4788187, %v414
    %v416 = vand.u32 2147483647, %v415
    %v418 = vcvt.s32.f32 %v411
    %v419 = vmul.f32 %v418, %v416
    %v420 = vxor.u32 %v419, 2147483648
    %v421 = vsel %vm338, %v420, %v419
    %v422 = vsub.s32 4, %v398
    %v423 = vsel %vm338, %v422, %v398
    %v424 = vsel %vm337, %v115, %v421
    %v425 = vsel %vm337, 0, %v423
    %v426 = vcosq.f32.pop %v424
    %v427 = vsinq.f32.pop %v424
    %vm428 = vweird.f32 %v115
    %v429 = vand.u32 %v425, 3
    %vm430 = vcmp.lt.s32.totalorder %v429, 2
    %vm431 = vcmp.eq.s32.totalorder %v429, 0
    %v432 = vxor.u32 %v427, 2147483648
    %v433 = vsel %vm431, %v426, %v432
    %vm434 = vcmp.eq.s32.totalorder %v429, 2
    %v435 = vxor.u32 %v426, 2147483648
    %v436 = vsel %vm434, %v435, %v427
    %v437 = vsel %vm430, %v433, %v436
    %v438 = vsel %vm428, nan, %v437
    %v439 = vand.u32 2147483647, %v116
    %vm440 = vcmp.le.f32.partialorder %v439, 0.7853982
    %vm441 = vcmp.lt.s32.totalorder %v116, 0
    %v442 = vand.u32 %v116, 2139095040
    %v443 = vshrl.u32 %v442, 23
    %v444 = vsub.s32 %v443, 127
    %v445 = vand.u32 2147483647, %v116
    %v446 = vand.u32 %v445, 8388607
    %v447 = vor.u32 %v446, 8388608
    %v448 = vsub.s32 0, %v447
    %v449 = vadd.s32 %v444, 1
    %vm450 = vcmp.gt.s32.totalorder %v449, 0
    %v451 = vsel %vm450, %v449, 0
    %v452 = vshrl.u32 %v451, 5
    %v453 = vand.u32 %v451, 31
    %v454 = vsub.s32 32, %v453
    %v455 = vshrl.u32 683565275, %v454
    %v456 = vshll.u32 683565275, %v453
    %v457 = vshrl.u32 2475754826, %v454
    %v458 = vor.u32 %v456, %v457
    %v459 = vshll.u32 2475754826, %v453
    %v460 = vshrl.u32 2131351028, %v454
    %v461 = vor.u32 %v459, %v460
    %v462 = vshll.u32 2131351028, %v453
    %v463 = vshrl.u32 2102212464, %v454
    %v464 = vor.u32 %v462, %v463
    %v465 = vshll.u32 2102212464, %v453
    %v466 = vshrl.u32 920167782, %v454
    %v467 = vor.u32 %v465, %v466
    %v468 = vshll.u32 920167782, %v453
    %v469 = vshrl.u32 1326507024, %v454
    %v470 = vor.u32 %v468, %v469
    %vm471 = vcmp.lt.s32.totalorder %v452, 1
    %vm472 = vcmp.lt.s32.totalorder %v452, 2
    %vm473 = vcmp.lt.s32.totalorder %v452, 3
    %vm474 = vcmp.lt.s32.totalorder %v452, 4
    %v475 = vsel %vm471, %v455, %v458
    %v476 = vsel %vm474, %v464, 2102212464
    %v477 = vsel %vm473, %v461, %v476
    %v478 = vsel %vm472, %v475, %v477
    %v479 = vsel %vm471, %v458, %v461
    %v480 = vsel %vm474, %v467, 920167782
    %v481 = vsel %vm473, %v464, %v480
    %v482 = vsel %vm472, %v479, %v481
    %v483 = vsel %vm471, %v461, %v464
    %v484 = vsel %vm474, %v470, 1326507024
    %v485 = vsel %vm473, %v467, %v484
    %v486 = vsel %vm472, %v483, %v485
    %v487 = vshll.u32 %v447, 8
    %v488 = vmul.u32.u64.compose %v487, %v486
    %v489 = vextract.low.u32 %v488
    %v490 = vextract.high.u32 %v488
    %v491 = vmul.u32.u64.compose %v487, %v482
    %v492 = vextract.low.u32 %v491
    %v493 = vextract.high.u32 %v491
    %v494 = vmul.u32 %v487, %v478
    %v495 = vadd.s32 %v490, %v492
    %vm496 = vc.u32 %v490, %v492
    %v497 = vadd.s32 %v493, 1
    %v498 = vsel %vm496, %v497, %v493
    %v499 = vadd.s32 %v494, %v498
    %v500 = vadd.s32 %v499, 536870912
    %v501 = vshrl.u32 %v500, 30
    %v502 = vshll.u32 %v501, 30
    %v503 = vsub.s32 %v499, %v502
    %vm504 = vcmp.lt.s32.totalorder %v503, 0
    %v505 = vsub.s32 0, %v503
    %v506 = vsel %vm504, %v505, %v503
    %v507 = vclz %v506
    %v508 = vsub.s32 %v507, 2
    %vm509 = vcmp.gt.s32.totalorder 0, %v508
    %v510 = vsel %vm509, 0, %v508
    %v511 = vsub.s32 32, %v510
    %v512 = vshll.u32 %v503, %v510
    %v513 = vshrl.u32 %v495, %v511
    %v514 = vor.u32 %v512, %v513
    %v515 = vsub.s32 4294967266, %v510
    %v516 = vadd.s32 %v515, 127
    %v517 = vshll.u32 %v516, 23
    %v518 = vor.u32 4788187, %v517
    %v519 = vand.u32 2147483647, %v518
    %v521 = vcvt.s32.f32 %v514
    %v522 = vmul.f32 %v521, %v519
    %v523 = vxor.u32 %v522, 2147483648
    %v524 = vsel %vm441, %v523, %v522
    %v525 = vsub.s32 4, %v501
    %v526 = vsel %vm441, %v525, %v501
    %v527 = vsel %vm440, %v116, %v524
    %v528 = vsel %vm440, 0, %v526
    %v529 = vcosq.f32.pop %v527
    %v530 = vsinq.f32.pop %v527
    %vm531 = vweird.f32 %v116
    %v532 = vand.u32 %v528, 3
    %vm533 = vcmp.lt.s32.totalorder %v532, 2
    %vm534 = vcmp.eq.s32.totalorder %v532, 0
    %v535 = vxor.u32 %v530, 2147483648
    %v536 = vsel %vm534, %v529, %v535
    %vm537 = vcmp.eq.s32.totalorder %v532, 2
    %v538 = vxor.u32 %v529, 2147483648
    %v539 = vsel %vm537, %v538, %v530
    %v540 = vsel %vm533, %v536, %v539
    %v541 = vsel %vm531, nan, %v540
    %v542 = vand.u32 2147483647, %v117
    %vm543 = vcmp.le.f32.partialorder %v542, 0.7853982
    %vm544 = vcmp.lt.s32.totalorder %v117, 0
    %v545 = vand.u32 %v117, 2139095040
    %v546 = vshrl.u32 %v545, 23
    %v547 = vsub.s32 %v546, 127
    %v548 = vand.u32 2147483647, %v117
    %v549 = vand.u32 %v548, 8388607
    %v550 = vor.u32 %v549, 8388608
    %v551 = vsub.s32 0, %v550
    %v552 = vadd.s32 %v547, 1
    %vm553 = vcmp.gt.s32.totalorder %v552, 0
    %v554 = vsel %vm553, %v552, 0
    %v555 = vshrl.u32 %v554, 5
    %v556 = vand.u32 %v554, 31
    %v557 = vsub.s32 32, %v556
    %v558 = vshrl.u32 683565275, %v557
    %v559 = vshll.u32 683565275, %v556
    %v560 = vshrl.u32 2475754826, %v557
    %v561 = vor.u32 %v559, %v560
    %v562 = vshll.u32 2475754826, %v556
    %v563 = vshrl.u32 2131351028, %v557
    %v564 = vor.u32 %v562, %v563
    %v565 = vshll.u32 2131351028, %v556
    %v566 = vshrl.u32 2102212464, %v557
    %v567 = vor.u32 %v565, %v566
    %v568 = vshll.u32 2102212464, %v556
    %v569 = vshrl.u32 920167782, %v557
    %v570 = vor.u32 %v568, %v569
    %v571 = vshll.u32 920167782, %v556
    %v572 = vshrl.u32 1326507024, %v557
    %v573 = vor.u32 %v571, %v572
    %vm574 = vcmp.lt.s32.totalorder %v555, 1
    %vm575 = vcmp.lt.s32.totalorder %v555, 2
    %vm576 = vcmp.lt.s32.totalorder %v555, 3
    %vm577 = vcmp.lt.s32.totalorder %v555, 4
    %v578 = vsel %vm574, %v558, %v561
    %v579 = vsel %vm577, %v567, 2102212464
    %v580 = vsel %vm576, %v564, %v579
    %v581 = vsel %vm575, %v578, %v580
    %v582 = vsel %vm574, %v561, %v564
    %v583 = vsel %vm577, %v570, 920167782
    %v584 = vsel %vm576, %v567, %v583
    %v585 = vsel %vm575, %v582, %v584
    %v586 = vsel %vm574, %v564, %v567
    %v587 = vsel %vm577, %v573, 1326507024
    %v588 = vsel %vm576, %v570, %v587
    %v589 = vsel %vm575, %v586, %v588
    %v590 = vshll.u32 %v550, 8
    %v591 = vmul.u32.u64.compose %v590, %v589
    %v592 = vextract.low.u32 %v591
    %v593 = vextract.high.u32 %v591
    %v594 = vmul.u32.u64.compose %v590, %v585
    %v595 = vextract.low.u32 %v594
    %v596 = vextract.high.u32 %v594
    %v597 = vmul.u32 %v590, %v581
    %v598 = vadd.s32 %v593, %v595
    %vm599 = vc.u32 %v593, %v595
    %v600 = vadd.s32 %v596, 1
    %v601 = vsel %vm599, %v600, %v596
    %v602 = vadd.s32 %v597, %v601
    %v603 = vadd.s32 %v602, 536870912
    %v604 = vshrl.u32 %v603, 30
    %v605 = vshll.u32 %v604, 30
    %v606 = vsub.s32 %v602, %v605
    %vm607 = vcmp.lt.s32.totalorder %v606, 0
    %v608 = vsub.s32 0, %v606
    %v609 = vsel %vm607, %v608, %v606
    %v610 = vclz %v609
    %v611 = vsub.s32 %v610, 2
    %vm612 = vcmp.gt.s32.totalorder 0, %v611
    %v613 = vsel %vm612, 0, %v611
    %v614 = vsub.s32 32, %v613
    %v615 = vshll.u32 %v606, %v613
    %v616 = vshrl.u32 %v598, %v614
    %v617 = vor.u32 %v615, %v616
    %v618 = vsub.s32 4294967266, %v613
    %v619 = vadd.s32 %v618, 127
    %v620 = vshll.u32 %v619, 23
    %v621 = vor.u32 4788187, %v620
    %v622 = vand.u32 2147483647, %v621
    %v624 = vcvt.s32.f32 %v617
    %v625 = vmul.f32 %v624, %v622
    %v626 = vxor.u32 %v625, 2147483648
    %v627 = vsel %vm544, %v626, %v625
    %v628 = vsub.s32 4, %v604
    %v629 = vsel %vm544, %v628, %v604
    %v630 = vsel %vm543, %v117, %v627
    %v631 = vsel %vm543, 0, %v629
    %v632 = vcosq.f32.pop %v630
    %v633 = vsinq.f32.pop %v630
    %vm634 = vweird.f32 %v117
    %v635 = vand.u32 %v631, 3
    %vm636 = vcmp.lt.s32.totalorder %v635, 2
    %vm637 = vcmp.eq.s32.totalorder %v635, 0
    %v638 = vxor.u32 %v633, 2147483648
    %v639 = vsel %vm637, %v632, %v638
    %vm640 = vcmp.eq.s32.totalorder %v635, 2
    %v641 = vxor.u32 %v632, 2147483648
    %v642 = vsel %vm640, %v641, %v633
    %v643 = vsel %vm636, %v639, %v642
    %v644 = vsel %vm634, nan, %v643
    %v645 = vand.u32 2147483647, %v118
    %vm646 = vcmp.le.f32.partialorder %v645, 0.7853982
    %vm647 = vcmp.lt.s32.totalorder %v118, 0
    %v648 = vand.u32 %v118, 2139095040
    %v649 = vshrl.u32 %v648, 23
    %v650 = vsub.s32 %v649, 127
    %v651 = vand.u32 2147483647, %v118
    %v652 = vand.u32 %v651, 8388607
    %v653 = vor.u32 %v652, 8388608
    %v654 = vsub.s32 0, %v653
    %v655 = vadd.s32 %v650, 1
    %vm656 = vcmp.gt.s32.totalorder %v655, 0
    %v657 = vsel %vm656, %v655, 0
    %v658 = vshrl.u32 %v657, 5
    %v659 = vand.u32 %v657, 31
    %v660 = vsub.s32 32, %v659
    %v661 = vshrl.u32 683565275, %v660
    %v662 = vshll.u32 683565275, %v659
    %v663 = vshrl.u32 2475754826, %v660
    %v664 = vor.u32 %v662, %v663
    %v665 = vshll.u32 2475754826, %v659
    %v666 = vshrl.u32 2131351028, %v660
    %v667 = vor.u32 %v665, %v666
    %v668 = vshll.u32 2131351028, %v659
    %v669 = vshrl.u32 2102212464, %v660
    %v670 = vor.u32 %v668, %v669
    %v671 = vshll.u32 2102212464, %v659
    %v672 = vshrl.u32 920167782, %v660
    %v673 = vor.u32 %v671, %v672
    %v674 = vshll.u32 920167782, %v659
    %v675 = vshrl.u32 1326507024, %v660
    %v676 = vor.u32 %v674, %v675
    %vm677 = vcmp.lt.s32.totalorder %v658, 1
    %vm678 = vcmp.lt.s32.totalorder %v658, 2
    %vm679 = vcmp.lt.s32.totalorder %v658, 3
    %vm680 = vcmp.lt.s32.totalorder %v658, 4
    %v681 = vsel %vm677, %v661, %v664
    %v682 = vsel %vm680, %v670, 2102212464
    %v683 = vsel %vm679, %v667, %v682
    %v684 = vsel %vm678, %v681, %v683
    %v685 = vsel %vm677, %v664, %v667
    %v686 = vsel %vm680, %v673, 920167782
    %v687 = vsel %vm679, %v670, %v686
    %v688 = vsel %vm678, %v685, %v687
    %v689 = vsel %vm677, %v667, %v670
    %v690 = vsel %vm680, %v676, 1326507024
    %v691 = vsel %vm679, %v673, %v690
    %v692 = vsel %vm678, %v689, %v691
    %v693 = vshll.u32 %v653, 8
    %v694 = vmul.u32.u64.compose %v693, %v692
    %v695 = vextract.low.u32 %v694
    %v696 = vextract.high.u32 %v694
    %v697 = vmul.u32.u64.compose %v693, %v688
    %v698 = vextract.low.u32 %v697
    %v699 = vextract.high.u32 %v697
    %v700 = vmul.u32 %v693, %v684
    %v701 = vadd.s32 %v696, %v698
    %vm702 = vc.u32 %v696, %v698
    %v703 = vadd.s32 %v699, 1
    %v704 = vsel %vm702, %v703, %v699
    %v705 = vadd.s32 %v700, %v704
    %v706 = vadd.s32 %v705, 536870912
    %v707 = vshrl.u32 %v706, 30
    %v708 = vshll.u32 %v707, 30
    %v709 = vsub.s32 %v705, %v708
    %vm710 = vcmp.lt.s32.totalorder %v709, 0
    %v711 = vsub.s32 0, %v709
    %v712 = vsel %vm710, %v711, %v709
    %v713 = vclz %v712
    %v714 = vsub.s32 %v713, 2
    %vm715 = vcmp.gt.s32.totalorder 0, %v714
    %v716 = vsel %vm715, 0, %v714
    %v717 = vsub.s32 32, %v716
    %v718 = vshll.u32 %v709, %v716
    %v719 = vshrl.u32 %v701, %v717
    %v720 = vor.u32 %v718, %v719
    %v721 = vsub.s32 4294967266, %v716
    %v722 = vadd.s32 %v721, 127
    %v723 = vshll.u32 %v722, 23
    %v724 = vor.u32 4788187, %v723
    %v725 = vand.u32 2147483647, %v724
    %v727 = vcvt.s32.f32 %v720
    %v728 = vmul.f32 %v727, %v725
    %v729 = vxor.u32 %v728, 2147483648
    %v730 = vsel %vm647, %v729, %v728
    %v731 = vsub.s32 4, %v707
    %v732 = vsel %vm647, %v731, %v707
    %v733 = vsel %vm646, %v118, %v730
    %v734 = vsel %vm646, 0, %v732
    %v735 = vcosq.f32.pop %v733
    %v736 = vsinq.f32.pop %v733
    %vm737 = vweird.f32 %v118
    %v738 = vand.u32 %v734, 3
    %vm739 = vcmp.lt.s32.totalorder %v738, 2
    %vm740 = vcmp.eq.s32.totalorder %v738, 0
    %v741 = vxor.u32 %v736, 2147483648
    %v742 = vsel %vm740, %v735, %v741
    %vm743 = vcmp.eq.s32.totalorder %v738, 2
    %v744 = vxor.u32 %v735, 2147483648
    %v745 = vsel %vm743, %v744, %v736
    %v746 = vsel %vm739, %v742, %v745
    %v747 = vsel %vm737, nan, %v746
    %v748 = vand.u32 2147483647, %v119
    %vm749 = vcmp.le.f32.partialorder %v748, 0.7853982
    %vm750 = vcmp.lt.s32.totalorder %v119, 0
    %v751 = vand.u32 %v119, 2139095040
    %v752 = vshrl.u32 %v751, 23
    %v753 = vsub.s32 %v752, 127
    %v754 = vand.u32 2147483647, %v119
    %v755 = vand.u32 %v754, 8388607
    %v756 = vor.u32 %v755, 8388608
    %v757 = vsub.s32 0, %v756
    %v758 = vadd.s32 %v753, 1
    %vm759 = vcmp.gt.s32.totalorder %v758, 0
    %v760 = vsel %vm759, %v758, 0
    %v761 = vshrl.u32 %v760, 5
    %v762 = vand.u32 %v760, 31
    %v763 = vsub.s32 32, %v762
    %v764 = vshrl.u32 683565275, %v763
    %v765 = vshll.u32 683565275, %v762
    %v766 = vshrl.u32 2475754826, %v763
    %v767 = vor.u32 %v765, %v766
    %v768 = vshll.u32 2475754826, %v762
    %v769 = vshrl.u32 2131351028, %v763
    %v770 = vor.u32 %v768, %v769
    %v771 = vshll.u32 2131351028, %v762
    %v772 = vshrl.u32 2102212464, %v763
    %v773 = vor.u32 %v771, %v772
    %v774 = vshll.u32 2102212464, %v762
    %v775 = vshrl.u32 920167782, %v763
    %v776 = vor.u32 %v774, %v775
    %v777 = vshll.u32 920167782, %v762
    %v778 = vshrl.u32 1326507024, %v763
    %v779 = vor.u32 %v777, %v778
    %vm780 = vcmp.lt.s32.totalorder %v761, 1
    %vm781 = vcmp.lt.s32.totalorder %v761, 2
    %vm782 = vcmp.lt.s32.totalorder %v761, 3
    %vm783 = vcmp.lt.s32.totalorder %v761, 4
    %v784 = vsel %vm780, %v764, %v767
    %v785 = vsel %vm783, %v773, 2102212464
    %v786 = vsel %vm782, %v770, %v785
    %v787 = vsel %vm781, %v784, %v786
    %v788 = vsel %vm780, %v767, %v770
    %v789 = vsel %vm783, %v776, 920167782
    %v790 = vsel %vm782, %v773, %v789
    %v791 = vsel %vm781, %v788, %v790
    %v792 = vsel %vm780, %v770, %v773
    %v793 = vsel %vm783, %v779, 1326507024
    %v794 = vsel %vm782, %v776, %v793
    %v795 = vsel %vm781, %v792, %v794
    %v796 = vshll.u32 %v756, 8
    %v797 = vmul.u32.u64.compose %v796, %v795
    %v798 = vextract.low.u32 %v797
    %v799 = vextract.high.u32 %v797
    %v800 = vmul.u32.u64.compose %v796, %v791
    %v801 = vextract.low.u32 %v800
    %v802 = vextract.high.u32 %v800
    %v803 = vmul.u32 %v796, %v787
    %v804 = vadd.s32 %v799, %v801
    %vm805 = vc.u32 %v799, %v801
    %v806 = vadd.s32 %v802, 1
    %v807 = vsel %vm805, %v806, %v802
    %v808 = vadd.s32 %v803, %v807
    %v809 = vadd.s32 %v808, 536870912
    %v810 = vshrl.u32 %v809, 30
    %v811 = vshll.u32 %v810, 30
    %v812 = vsub.s32 %v808, %v811
    %vm813 = vcmp.lt.s32.totalorder %v812, 0
    %v814 = vsub.s32 0, %v812
    %v815 = vsel %vm813, %v814, %v812
    %v816 = vclz %v815
    %v817 = vsub.s32 %v816, 2
    %vm818 = vcmp.gt.s32.totalorder 0, %v817
    %v819 = vsel %vm818, 0, %v817
    %v820 = vsub.s32 32, %v819
    %v821 = vshll.u32 %v812, %v819
    %v822 = vshrl.u32 %v804, %v820
    %v823 = vor.u32 %v821, %v822
    %v824 = vsub.s32 4294967266, %v819
    %v825 = vadd.s32 %v824, 127
    %v826 = vshll.u32 %v825, 23
    %v827 = vor.u32 4788187, %v826
    %v828 = vand.u32 2147483647, %v827
    %v830 = vcvt.s32.f32 %v823
    %v831 = vmul.f32 %v830, %v828
    %v832 = vxor.u32 %v831, 2147483648
    %v833 = vsel %vm750, %v832, %v831
    %v834 = vsub.s32 4, %v810
    %v835 = vsel %vm750, %v834, %v810
    %v836 = vsel %vm749, %v119, %v833
    %v837 = vsel %vm749, 0, %v835
    %v838 = vcosq.f32.pop %v836
    %v839 = vsinq.f32.pop %v836
    %vm840 = vweird.f32 %v119
    %v841 = vand.u32 %v837, 3
    %vm842 = vcmp.lt.s32.totalorder %v841, 2
    %vm843 = vcmp.eq.s32.totalorder %v841, 0
    %v844 = vxor.u32 %v839, 2147483648
    %v845 = vsel %vm843, %v838, %v844
    %vm846 = vcmp.eq.s32.totalorder %v841, 2
    %v847 = vxor.u32 %v838, 2147483648
    %v848 = vsel %vm846, %v847, %v839
    %v849 = vsel %vm842, %v845, %v848
    %v850 = vsel %vm840, nan, %v849
    %v851 = vand.u32 2147483647, %v120
    %vm852 = vcmp.le.f32.partialorder %v851, 0.7853982
    %vm853 = vcmp.lt.s32.totalorder %v120, 0
    %v854 = vand.u32 %v120, 2139095040
    %v855 = vshrl.u32 %v854, 23
    %v856 = vsub.s32 %v855, 127
    %v857 = vand.u32 2147483647, %v120
    %v858 = vand.u32 %v857, 8388607
    %v859 = vor.u32 %v858, 8388608
    %v860 = vsub.s32 0, %v859
    %v861 = vadd.s32 %v856, 1
    %vm862 = vcmp.gt.s32.totalorder %v861, 0
    %v863 = vsel %vm862, %v861, 0
    %v864 = vshrl.u32 %v863, 5
    %v865 = vand.u32 %v863, 31
    %v866 = vsub.s32 32, %v865
    %v867 = vshrl.u32 683565275, %v866
    %v868 = vshll.u32 683565275, %v865
    %v869 = vshrl.u32 2475754826, %v866
    %v870 = vor.u32 %v868, %v869
    %v871 = vshll.u32 2475754826, %v865
    %v872 = vshrl.u32 2131351028, %v866
    %v873 = vor.u32 %v871, %v872
    %v874 = vshll.u32 2131351028, %v865
    %v875 = vshrl.u32 2102212464, %v866
    %v876 = vor.u32 %v874, %v875
    %v877 = vshll.u32 2102212464, %v865
    %v878 = vshrl.u32 920167782, %v866
    %v879 = vor.u32 %v877, %v878
    %v880 = vshll.u32 920167782, %v865
    %v881 = vshrl.u32 1326507024, %v866
    %v882 = vor.u32 %v880, %v881
    %vm883 = vcmp.lt.s32.totalorder %v864, 1
    %vm884 = vcmp.lt.s32.totalorder %v864, 2
    %vm885 = vcmp.lt.s32.totalorder %v864, 3
    %vm886 = vcmp.lt.s32.totalorder %v864, 4
    %v887 = vsel %vm883, %v867, %v870
    %v888 = vsel %vm886, %v876, 2102212464
    %v889 = vsel %vm885, %v873, %v888
    %v890 = vsel %vm884, %v887, %v889
    %v891 = vsel %vm883, %v870, %v873
    %v892 = vsel %vm886, %v879, 920167782
    %v893 = vsel %vm885, %v876, %v892
    %v894 = vsel %vm884, %v891, %v893
    %v895 = vsel %vm883, %v873, %v876
    %v896 = vsel %vm886, %v882, 1326507024
    %v897 = vsel %vm885, %v879, %v896
    %v898 = vsel %vm884, %v895, %v897
    %v899 = vshll.u32 %v859, 8
    %v900 = vmul.u32.u64.compose %v899, %v898
    %v901 = vextract.low.u32 %v900
    %v902 = vextract.high.u32 %v900
    %v903 = vmul.u32.u64.compose %v899, %v894
    %v904 = vextract.low.u32 %v903
    %v905 = vextract.high.u32 %v903
    %v906 = vmul.u32 %v899, %v890
    %v907 = vadd.s32 %v902, %v904
    %vm908 = vc.u32 %v902, %v904
    %v909 = vadd.s32 %v905, 1
    %v910 = vsel %vm908, %v909, %v905
    %v911 = vadd.s32 %v906, %v910
    %v912 = vadd.s32 %v911, 536870912
    %v913 = vshrl.u32 %v912, 30
    %v914 = vshll.u32 %v913, 30
    %v915 = vsub.s32 %v911, %v914
    %vm916 = vcmp.lt.s32.totalorder %v915, 0
    %v917 = vsub.s32 0, %v915
    %v918 = vsel %vm916, %v917, %v915
    %v919 = vclz %v918
    %v920 = vsub.s32 %v919, 2
    %vm921 = vcmp.gt.s32.totalorder 0, %v920
    %v922 = vsel %vm921, 0, %v920
    %v923 = vsub.s32 32, %v922
    %v924 = vshll.u32 %v915, %v922
    %v925 = vshrl.u32 %v907, %v923
    %v926 = vor.u32 %v924, %v925
    %v927 = vsub.s32 4294967266, %v922
    %v928 = vadd.s32 %v927, 127
    %v929 = vshll.u32 %v928, 23
    %v930 = vor.u32 4788187, %v929
    %v931 = vand.u32 2147483647, %v930
    %v933 = vcvt.s32.f32 %v926
    %v934 = vmul.f32 %v933, %v931
    %v935 = vxor.u32 %v934, 2147483648
    %v936 = vsel %vm853, %v935, %v934
    %v937 = vsub.s32 4, %v913
    %v938 = vsel %vm853, %v937, %v913
    %v939 = vsel %vm852, %v120, %v936
    %v940 = vsel %vm852, 0, %v938
    %v941 = vcosq.f32.pop %v939
    %v942 = vsinq.f32.pop %v939
    %vm943 = vweird.f32 %v120
    %v944 = vand.u32 %v940, 3
    %vm945 = vcmp.lt.s32.totalorder %v944, 2
    %vm946 = vcmp.eq.s32.totalorder %v944, 0
    %v947 = vxor.u32 %v942, 2147483648
    %v948 = vsel %vm946, %v941, %v947
    %vm949 = vcmp.eq.s32.totalorder %v944, 2
    %v950 = vxor.u32 %v941, 2147483648
    %v951 = vsel %vm949, %v950, %v942
    %v952 = vsel %vm945, %v948, %v951
    %v953 = vsel %vm943, nan, %v952
    %v954 = vand.u32 2147483647, %v121
    %vm955 = vcmp.le.f32.partialorder %v954, 0.7853982
    %vm956 = vcmp.lt.s32.totalorder %v121, 0
    %v957 = vand.u32 %v121, 2139095040
    %v958 = vshrl.u32 %v957, 23
    %v959 = vsub.s32 %v958, 127
    %v960 = vand.u32 2147483647, %v121
    %v961 = vand.u32 %v960, 8388607
    %v962 = vor.u32 %v961, 8388608
    %v963 = vsub.s32 0, %v962
    %v964 = vadd.s32 %v959, 1
    %vm965 = vcmp.gt.s32.totalorder %v964, 0
    %v966 = vsel %vm965, %v964, 0
    %v967 = vshrl.u32 %v966, 5
    %v968 = vand.u32 %v966, 31
    %v969 = vsub.s32 32, %v968
    %v970 = vshrl.u32 683565275, %v969
    %v971 = vshll.u32 683565275, %v968
    %v972 = vshrl.u32 2475754826, %v969
    %v973 = vor.u32 %v971, %v972
    %v974 = vshll.u32 2475754826, %v968
    %v975 = vshrl.u32 2131351028, %v969
    %v976 = vor.u32 %v974, %v975
    %v977 = vshll.u32 2131351028, %v968
    %v978 = vshrl.u32 2102212464, %v969
    %v979 = vor.u32 %v977, %v978
    %v980 = vshll.u32 2102212464, %v968
    %v981 = vshrl.u32 920167782, %v969
    %v982 = vor.u32 %v980, %v981
    %v983 = vshll.u32 920167782, %v968
    %v984 = vshrl.u32 1326507024, %v969
    %v985 = vor.u32 %v983, %v984
    %vm986 = vcmp.lt.s32.totalorder %v967, 1
    %vm987 = vcmp.lt.s32.totalorder %v967, 2
    %vm988 = vcmp.lt.s32.totalorder %v967, 3
    %vm989 = vcmp.lt.s32.totalorder %v967, 4
    %v990 = vsel %vm986, %v970, %v973
    %v991 = vsel %vm989, %v979, 2102212464
    %v992 = vsel %vm988, %v976, %v991
    %v993 = vsel %vm987, %v990, %v992
    %v994 = vsel %vm986, %v973, %v976
    %v995 = vsel %vm989, %v982, 920167782
    %v996 = vsel %vm988, %v979, %v995
    %v997 = vsel %vm987, %v994, %v996
    %v998 = vsel %vm986, %v976, %v979
    %v999 = vsel %vm989, %v985, 1326507024
    %v1000 = vsel %vm988, %v982, %v999
    %v1001 = vsel %vm987, %v998, %v1000
    %v1002 = vshll.u32 %v962, 8
    %v1003 = vmul.u32.u64.compose %v1002, %v1001
    %v1004 = vextract.low.u32 %v1003
    %v1005 = vextract.high.u32 %v1003
    %v1006 = vmul.u32.u64.compose %v1002, %v997
    %v1007 = vextract.low.u32 %v1006
    %v1008 = vextract.high.u32 %v1006
    %v1009 = vmul.u32 %v1002, %v993
    %v1010 = vadd.s32 %v1005, %v1007
    %vm1011 = vc.u32 %v1005, %v1007
    %v1012 = vadd.s32 %v1008, 1
    %v1013 = vsel %vm1011, %v1012, %v1008
    %v1014 = vadd.s32 %v1009, %v1013
    %v1015 = vadd.s32 %v1014, 536870912
    %v1016 = vshrl.u32 %v1015, 30
    %v1017 = vshll.u32 %v1016, 30
    %v1018 = vsub.s32 %v1014, %v1017
    %vm1019 = vcmp.lt.s32.totalorder %v1018, 0
    %v1020 = vsub.s32 0, %v1018
    %v1021 = vsel %vm1019, %v1020, %v1018
    %v1022 = vclz %v1021
    %v1023 = vsub.s32 %v1022, 2
    %vm1024 = vcmp.gt.s32.totalorder 0, %v1023
    %v1025 = vsel %vm1024, 0, %v1023
    %v1026 = vsub.s32 32, %v1025
    %v1027 = vshll.u32 %v1018, %v1025
    %v1028 = vshrl.u32 %v1010, %v1026
    %v1029 = vor.u32 %v1027, %v1028
    %v1030 = vsub.s32 4294967266, %v1025
    %v1031 = vadd.s32 %v1030, 127
    %v1032 = vshll.u32 %v1031, 23
    %v1033 = vor.u32 4788187, %v1032
    %v1034 = vand.u32 2147483647, %v1033
    %v1036 = vcvt.s32.f32 %v1029
    %v1037 = vmul.f32 %v1036, %v1034
    %v1038 = vxor.u32 %v1037, 2147483648
    %v1039 = vsel %vm956, %v1038, %v1037
    %v1040 = vsub.s32 4, %v1016
    %v1041 = vsel %vm956, %v1040, %v1016
    %v1042 = vsel %vm955, %v121, %v1039
    %v1043 = vsel %vm955, 0, %v1041
    %v1044 = vcosq.f32.pop %v1042
    %v1045 = vsinq.f32.pop %v1042
    %vm1046 = vweird.f32 %v121
    %v1047 = vand.u32 %v1043, 3
    %vm1048 = vcmp.lt.s32.totalorder %v1047, 2
    %vm1049 = vcmp.eq.s32.totalorder %v1047, 0
    %v1050 = vxor.u32 %v1045, 2147483648
    %v1051 = vsel %vm1049, %v1044, %v1050
    %vm1052 = vcmp.eq.s32.totalorder %v1047, 2
    %v1053 = vxor.u32 %v1044, 2147483648
    %v1054 = vsel %vm1052, %v1053, %v1045
    %v1055 = vsel %vm1048, %v1051, %v1054
    %v1056 = vsel %vm1046, nan, %v1055
    %v1057 = vand.u32 2147483647, %v122
    %vm1058 = vcmp.le.f32.partialorder %v1057, 0.7853982
    %vm1059 = vcmp.lt.s32.totalorder %v122, 0
    %v1060 = vand.u32 %v122, 2139095040
    %v1061 = vshrl.u32 %v1060, 23
    %v1062 = vsub.s32 %v1061, 127
    %v1063 = vand.u32 2147483647, %v122
    %v1064 = vand.u32 %v1063, 8388607
    %v1065 = vor.u32 %v1064, 8388608
    %v1066 = vsub.s32 0, %v1065
    %v1067 = vadd.s32 %v1062, 1
    %vm1068 = vcmp.gt.s32.totalorder %v1067, 0
    %v1069 = vsel %vm1068, %v1067, 0
    %v1070 = vshrl.u32 %v1069, 5
    %v1071 = vand.u32 %v1069, 31
    %v1072 = vsub.s32 32, %v1071
    %v1073 = vshrl.u32 683565275, %v1072
    %v1074 = vshll.u32 683565275, %v1071
    %v1075 = vshrl.u32 2475754826, %v1072
    %v1076 = vor.u32 %v1074, %v1075
    %v1077 = vshll.u32 2475754826, %v1071
    %v1078 = vshrl.u32 2131351028, %v1072
    %v1079 = vor.u32 %v1077, %v1078
    %v1080 = vshll.u32 2131351028, %v1071
    %v1081 = vshrl.u32 2102212464, %v1072
    %v1082 = vor.u32 %v1080, %v1081
    %v1083 = vshll.u32 2102212464, %v1071
    %v1084 = vshrl.u32 920167782, %v1072
    %v1085 = vor.u32 %v1083, %v1084
    %v1086 = vshll.u32 920167782, %v1071
    %v1087 = vshrl.u32 1326507024, %v1072
    %v1088 = vor.u32 %v1086, %v1087
    %vm1089 = vcmp.lt.s32.totalorder %v1070, 1
    %vm1090 = vcmp.lt.s32.totalorder %v1070, 2
    %vm1091 = vcmp.lt.s32.totalorder %v1070, 3
    %vm1092 = vcmp.lt.s32.totalorder %v1070, 4
    %v1093 = vsel %vm1089, %v1073, %v1076
    %v1094 = vsel %vm1092, %v1082, 2102212464
    %v1095 = vsel %vm1091, %v1079, %v1094
    %v1096 = vsel %vm1090, %v1093, %v1095
    %v1097 = vsel %vm1089, %v1076, %v1079
    %v1098 = vsel %vm1092, %v1085, 920167782
    %v1099 = vsel %vm1091, %v1082, %v1098
    %v1100 = vsel %vm1090, %v1097, %v1099
    %v1101 = vsel %vm1089, %v1079, %v1082
    %v1102 = vsel %vm1092, %v1088, 1326507024
    %v1103 = vsel %vm1091, %v1085, %v1102
    %v1104 = vsel %vm1090, %v1101, %v1103
    %v1105 = vshll.u32 %v1065, 8
    %v1106 = vmul.u32.u64.compose %v1105, %v1104
    %v1107 = vextract.low.u32 %v1106
    %v1108 = vextract.high.u32 %v1106
    %v1109 = vmul.u32.u64.compose %v1105, %v1100
    %v1110 = vextract.low.u32 %v1109
    %v1111 = vextract.high.u32 %v1109
    %v1112 = vmul.u32 %v1105, %v1096
    %v1113 = vadd.s32 %v1108, %v1110
    %vm1114 = vc.u32 %v1108, %v1110
    %v1115 = vadd.s32 %v1111, 1
    %v1116 = vsel %vm1114, %v1115, %v1111
    %v1117 = vadd.s32 %v1112, %v1116
    %v1118 = vadd.s32 %v1117, 536870912
    %v1119 = vshrl.u32 %v1118, 30
    %v1120 = vshll.u32 %v1119, 30
    %v1121 = vsub.s32 %v1117, %v1120
    %vm1122 = vcmp.lt.s32.totalorder %v1121, 0
    %v1123 = vsub.s32 0, %v1121
    %v1124 = vsel %vm1122, %v1123, %v1121
    %v1125 = vclz %v1124
    %v1126 = vsub.s32 %v1125, 2
    %vm1127 = vcmp.gt.s32.totalorder 0, %v1126
    %v1128 = vsel %vm1127, 0, %v1126
    %v1129 = vsub.s32 32, %v1128
    %v1130 = vshll.u32 %v1121, %v1128
    %v1131 = vshrl.u32 %v1113, %v1129
    %v1132 = vor.u32 %v1130, %v1131
    %v1133 = vsub.s32 4294967266, %v1128
    %v1134 = vadd.s32 %v1133, 127
    %v1135 = vshll.u32 %v1134, 23
    %v1136 = vor.u32 4788187, %v1135
    %v1137 = vand.u32 2147483647, %v1136
    %v1139 = vcvt.s32.f32 %v1132
    %v1140 = vmul.f32 %v1139, %v1137
    %v1141 = vxor.u32 %v1140, 2147483648
    %v1142 = vsel %vm1059, %v1141, %v1140
    %v1143 = vsub.s32 4, %v1119
    %v1144 = vsel %vm1059, %v1143, %v1119
    %v1145 = vsel %vm1058, %v122, %v1142
    %v1146 = vsel %vm1058, 0, %v1144
    %v1147 = vcosq.f32.pop %v1145
    %v1148 = vsinq.f32.pop %v1145
    %vm1149 = vweird.f32 %v122
    %v1150 = vand.u32 %v1146, 3
    %vm1151 = vcmp.lt.s32.totalorder %v1150, 2
    %vm1152 = vcmp.eq.s32.totalorder %v1150, 0
    %v1153 = vxor.u32 %v1148, 2147483648
    %v1154 = vsel %vm1152, %v1147, %v1153
    %vm1155 = vcmp.eq.s32.totalorder %v1150, 2
    %v1156 = vxor.u32 %v1147, 2147483648
    %v1157 = vsel %vm1155, %v1156, %v1148
    %v1158 = vsel %vm1151, %v1154, %v1157
    %v1159 = vsel %vm1149, nan, %v1158
    %v1160 = vand.u32 2147483647, %v123
    %vm1161 = vcmp.le.f32.partialorder %v1160, 0.7853982
    %vm1162 = vcmp.lt.s32.totalorder %v123, 0
    %v1163 = vand.u32 %v123, 2139095040
    %v1164 = vshrl.u32 %v1163, 23
    %v1165 = vsub.s32 %v1164, 127
    %v1166 = vand.u32 2147483647, %v123
    %v1167 = vand.u32 %v1166, 8388607
    %v1168 = vor.u32 %v1167, 8388608
    %v1169 = vsub.s32 0, %v1168
    %v1170 = vadd.s32 %v1165, 1
    %vm1171 = vcmp.gt.s32.totalorder %v1170, 0
    %v1172 = vsel %vm1171, %v1170, 0
    %v1173 = vshrl.u32 %v1172, 5
    %v1174 = vand.u32 %v1172, 31
    %v1175 = vsub.s32 32, %v1174
    %v1176 = vshrl.u32 683565275, %v1175
    %v1177 = vshll.u32 683565275, %v1174
    %v1178 = vshrl.u32 2475754826, %v1175
    %v1179 = vor.u32 %v1177, %v1178
    %v1180 = vshll.u32 2475754826, %v1174
    %v1181 = vshrl.u32 2131351028, %v1175
    %v1182 = vor.u32 %v1180, %v1181
    %v1183 = vshll.u32 2131351028, %v1174
    %v1184 = vshrl.u32 2102212464, %v1175
    %v1185 = vor.u32 %v1183, %v1184
    %v1186 = vshll.u32 2102212464, %v1174
    %v1187 = vshrl.u32 920167782, %v1175
    %v1188 = vor.u32 %v1186, %v1187
    %v1189 = vshll.u32 920167782, %v1174
    %v1190 = vshrl.u32 1326507024, %v1175
    %v1191 = vor.u32 %v1189, %v1190
    %vm1192 = vcmp.lt.s32.totalorder %v1173, 1
    %vm1193 = vcmp.lt.s32.totalorder %v1173, 2
    %vm1194 = vcmp.lt.s32.totalorder %v1173, 3
    %vm1195 = vcmp.lt.s32.totalorder %v1173, 4
    %v1196 = vsel %vm1192, %v1176, %v1179
    %v1197 = vsel %vm1195, %v1185, 2102212464
    %v1198 = vsel %vm1194, %v1182, %v1197
    %v1199 = vsel %vm1193, %v1196, %v1198
    %v1200 = vsel %vm1192, %v1179, %v1182
    %v1201 = vsel %vm1195, %v1188, 920167782
    %v1202 = vsel %vm1194, %v1185, %v1201
    %v1203 = vsel %vm1193, %v1200, %v1202
    %v1204 = vsel %vm1192, %v1182, %v1185
    %v1205 = vsel %vm1195, %v1191, 1326507024
    %v1206 = vsel %vm1194, %v1188, %v1205
    %v1207 = vsel %vm1193, %v1204, %v1206
    %v1208 = vshll.u32 %v1168, 8
    %v1209 = vmul.u32.u64.compose %v1208, %v1207
    %v1210 = vextract.low.u32 %v1209
    %v1211 = vextract.high.u32 %v1209
    %v1212 = vmul.u32.u64.compose %v1208, %v1203
    %v1213 = vextract.low.u32 %v1212
    %v1214 = vextract.high.u32 %v1212
    %v1215 = vmul.u32 %v1208, %v1199
    %v1216 = vadd.s32 %v1211, %v1213
    %vm1217 = vc.u32 %v1211, %v1213
    %v1218 = vadd.s32 %v1214, 1
    %v1219 = vsel %vm1217, %v1218, %v1214
    %v1220 = vadd.s32 %v1215, %v1219
    %v1221 = vadd.s32 %v1220, 536870912
    %v1222 = vshrl.u32 %v1221, 30
    %v1223 = vshll.u32 %v1222, 30
    %v1224 = vsub.s32 %v1220, %v1223
    %vm1225 = vcmp.lt.s32.totalorder %v1224, 0
    %v1226 = vsub.s32 0, %v1224
    %v1227 = vsel %vm1225, %v1226, %v1224
    %v1228 = vclz %v1227
    %v1229 = vsub.s32 %v1228, 2
    %vm1230 = vcmp.gt.s32.totalorder 0, %v1229
    %v1231 = vsel %vm1230, 0, %v1229
    %v1232 = vsub.s32 32, %v1231
    %v1233 = vshll.u32 %v1224, %v1231
    %v1234 = vshrl.u32 %v1216, %v1232
    %v1235 = vor.u32 %v1233, %v1234
    %v1236 = vsub.s32 4294967266, %v1231
    %v1237 = vadd.s32 %v1236, 127
    %v1238 = vshll.u32 %v1237, 23
    %v1239 = vor.u32 4788187, %v1238
    %v1240 = vand.u32 2147483647, %v1239
    %v1242 = vcvt.s32.f32 %v1235
    %v1243 = vmul.f32 %v1242, %v1240
    %v1244 = vxor.u32 %v1243, 2147483648
    %v1245 = vsel %vm1162, %v1244, %v1243
    %v1246 = vsub.s32 4, %v1222
    %v1247 = vsel %vm1162, %v1246, %v1222
    %v1248 = vsel %vm1161, %v123, %v1245
    %v1249 = vsel %vm1161, 0, %v1247
    %v1250 = vcosq.f32.pop %v1248
    %v1251 = vsinq.f32.pop %v1248
    %vm1252 = vweird.f32 %v123
    %v1253 = vand.u32 %v1249, 3
    %vm1254 = vcmp.lt.s32.totalorder %v1253, 2
    %vm1255 = vcmp.eq.s32.totalorder %v1253, 0
    %v1256 = vxor.u32 %v1251, 2147483648
    %v1257 = vsel %vm1255, %v1250, %v1256
    %vm1258 = vcmp.eq.s32.totalorder %v1253, 2
    %v1259 = vxor.u32 %v1250, 2147483648
    %v1260 = vsel %vm1258, %v1259, %v1251
    %v1261 = vsel %vm1254, %v1257, %v1260
    %v1262 = vsel %vm1252, nan, %v1261
    %v1263 = vand.u32 2147483647, %v124
    %vm1264 = vcmp.le.f32.partialorder %v1263, 0.7853982
    %vm1265 = vcmp.lt.s32.totalorder %v124, 0
    %v1266 = vand.u32 %v124, 2139095040
    %v1267 = vshrl.u32 %v1266, 23
    %v1268 = vsub.s32 %v1267, 127
    %v1269 = vand.u32 2147483647, %v124
    %v1270 = vand.u32 %v1269, 8388607
    %v1271 = vor.u32 %v1270, 8388608
    %v1272 = vsub.s32 0, %v1271
    %v1273 = vadd.s32 %v1268, 1
    %vm1274 = vcmp.gt.s32.totalorder %v1273, 0
    %v1275 = vsel %vm1274, %v1273, 0
    %v1276 = vshrl.u32 %v1275, 5
    %v1277 = vand.u32 %v1275, 31
    %v1278 = vsub.s32 32, %v1277
    %v1279 = vshrl.u32 683565275, %v1278
    %v1280 = vshll.u32 683565275, %v1277
    %v1281 = vshrl.u32 2475754826, %v1278
    %v1282 = vor.u32 %v1280, %v1281
    %v1283 = vshll.u32 2475754826, %v1277
    %v1284 = vshrl.u32 2131351028, %v1278
    %v1285 = vor.u32 %v1283, %v1284
    %v1286 = vshll.u32 2131351028, %v1277
    %v1287 = vshrl.u32 2102212464, %v1278
    %v1288 = vor.u32 %v1286, %v1287
    %v1289 = vshll.u32 2102212464, %v1277
    %v1290 = vshrl.u32 920167782, %v1278
    %v1291 = vor.u32 %v1289, %v1290
    %v1292 = vshll.u32 920167782, %v1277
    %v1293 = vshrl.u32 1326507024, %v1278
    %v1294 = vor.u32 %v1292, %v1293
    %vm1295 = vcmp.lt.s32.totalorder %v1276, 1
    %vm1296 = vcmp.lt.s32.totalorder %v1276, 2
    %vm1297 = vcmp.lt.s32.totalorder %v1276, 3
    %vm1298 = vcmp.lt.s32.totalorder %v1276, 4
    %v1299 = vsel %vm1295, %v1279, %v1282
    %v1300 = vsel %vm1298, %v1288, 2102212464
    %v1301 = vsel %vm1297, %v1285, %v1300
    %v1302 = vsel %vm1296, %v1299, %v1301
    %v1303 = vsel %vm1295, %v1282, %v1285
    %v1304 = vsel %vm1298, %v1291, 920167782
    %v1305 = vsel %vm1297, %v1288, %v1304
    %v1306 = vsel %vm1296, %v1303, %v1305
    %v1307 = vsel %vm1295, %v1285, %v1288
    %v1308 = vsel %vm1298, %v1294, 1326507024
    %v1309 = vsel %vm1297, %v1291, %v1308
    %v1310 = vsel %vm1296, %v1307, %v1309
    %v1311 = vshll.u32 %v1271, 8
    %v1312 = vmul.u32.u64.compose %v1311, %v1310
    %v1313 = vextract.low.u32 %v1312
    %v1314 = vextract.high.u32 %v1312
    %v1315 = vmul.u32.u64.compose %v1311, %v1306
    %v1316 = vextract.low.u32 %v1315
    %v1317 = vextract.high.u32 %v1315
    %v1318 = vmul.u32 %v1311, %v1302
    %v1319 = vadd.s32 %v1314, %v1316
    %vm1320 = vc.u32 %v1314, %v1316
    %v1321 = vadd.s32 %v1317, 1
    %v1322 = vsel %vm1320, %v1321, %v1317
    %v1323 = vadd.s32 %v1318, %v1322
    %v1324 = vadd.s32 %v1323, 536870912
    %v1325 = vshrl.u32 %v1324, 30
    %v1326 = vshll.u32 %v1325, 30
    %v1327 = vsub.s32 %v1323, %v1326
    %vm1328 = vcmp.lt.s32.totalorder %v1327, 0
    %v1329 = vsub.s32 0, %v1327
    %v1330 = vsel %vm1328, %v1329, %v1327
    %v1331 = vclz %v1330
    %v1332 = vsub.s32 %v1331, 2
    %vm1333 = vcmp.gt.s32.totalorder 0, %v1332
    %v1334 = vsel %vm1333, 0, %v1332
    %v1335 = vsub.s32 32, %v1334
    %v1336 = vshll.u32 %v1327, %v1334
    %v1337 = vshrl.u32 %v1319, %v1335
    %v1338 = vor.u32 %v1336, %v1337
    %v1339 = vsub.s32 4294967266, %v1334
    %v1340 = vadd.s32 %v1339, 127
    %v1341 = vshll.u32 %v1340, 23
    %v1342 = vor.u32 4788187, %v1341
    %v1343 = vand.u32 2147483647, %v1342
    %v1345 = vcvt.s32.f32 %v1338
    %v1346 = vmul.f32 %v1345, %v1343
    %v1347 = vxor.u32 %v1346, 2147483648
    %v1348 = vsel %vm1265, %v1347, %v1346
    %v1349 = vsub.s32 4, %v1325
    %v1350 = vsel %vm1265, %v1349, %v1325
    %v1351 = vsel %vm1264, %v124, %v1348
    %v1352 = vsel %vm1264, 0, %v1350
    %v1353 = vcosq.f32.pop %v1351
    %v1354 = vsinq.f32.pop %v1351
    %vm1355 = vweird.f32 %v124
    %v1356 = vand.u32 %v1352, 3
    %vm1357 = vcmp.lt.s32.totalorder %v1356, 2
    %vm1358 = vcmp.eq.s32.totalorder %v1356, 0
    %v1359 = vxor.u32 %v1354, 2147483648
    %v1360 = vsel %vm1358, %v1353, %v1359
    %vm1361 = vcmp.eq.s32.totalorder %v1356, 2
    %v1362 = vxor.u32 %v1353, 2147483648
    %v1363 = vsel %vm1361, %v1362, %v1354
    %v1364 = vsel %vm1357, %v1360, %v1363
    %v1365 = vsel %vm1355, nan, %v1364
    %v1366 = vand.u32 2147483647, %v125
    %vm1367 = vcmp.le.f32.partialorder %v1366, 0.7853982
    %vm1368 = vcmp.lt.s32.totalorder %v125, 0
    %v1369 = vand.u32 %v125, 2139095040
    %v1370 = vshrl.u32 %v1369, 23
    %v1371 = vsub.s32 %v1370, 127
    %v1372 = vand.u32 2147483647, %v125
    %v1373 = vand.u32 %v1372, 8388607
    %v1374 = vor.u32 %v1373, 8388608
    %v1375 = vsub.s32 0, %v1374
    %v1376 = vadd.s32 %v1371, 1
    %vm1377 = vcmp.gt.s32.totalorder %v1376, 0
    %v1378 = vsel %vm1377, %v1376, 0
    %v1379 = vshrl.u32 %v1378, 5
    %v1380 = vand.u32 %v1378, 31
    %v1381 = vsub.s32 32, %v1380
    %v1382 = vshrl.u32 683565275, %v1381
    %v1383 = vshll.u32 683565275, %v1380
    %v1384 = vshrl.u32 2475754826, %v1381
    %v1385 = vor.u32 %v1383, %v1384
    %v1386 = vshll.u32 2475754826, %v1380
    %v1387 = vshrl.u32 2131351028, %v1381
    %v1388 = vor.u32 %v1386, %v1387
    %v1389 = vshll.u32 2131351028, %v1380
    %v1390 = vshrl.u32 2102212464, %v1381
    %v1391 = vor.u32 %v1389, %v1390
    %v1392 = vshll.u32 2102212464, %v1380
    %v1393 = vshrl.u32 920167782, %v1381
    %v1394 = vor.u32 %v1392, %v1393
    %v1395 = vshll.u32 920167782, %v1380
    %v1396 = vshrl.u32 1326507024, %v1381
    %v1397 = vor.u32 %v1395, %v1396
    %vm1398 = vcmp.lt.s32.totalorder %v1379, 1
    %vm1399 = vcmp.lt.s32.totalorder %v1379, 2
    %vm1400 = vcmp.lt.s32.totalorder %v1379, 3
    %vm1401 = vcmp.lt.s32.totalorder %v1379, 4
    %v1402 = vsel %vm1398, %v1382, %v1385
    %v1403 = vsel %vm1401, %v1391, 2102212464
    %v1404 = vsel %vm1400, %v1388, %v1403
    %v1405 = vsel %vm1399, %v1402, %v1404
    %v1406 = vsel %vm1398, %v1385, %v1388
    %v1407 = vsel %vm1401, %v1394, 920167782
    %v1408 = vsel %vm1400, %v1391, %v1407
    %v1409 = vsel %vm1399, %v1406, %v1408
    %v1410 = vsel %vm1398, %v1388, %v1391
    %v1411 = vsel %vm1401, %v1397, 1326507024
    %v1412 = vsel %vm1400, %v1394, %v1411
    %v1413 = vsel %vm1399, %v1410, %v1412
    %v1414 = vshll.u32 %v1374, 8
    %v1415 = vmul.u32.u64.compose %v1414, %v1413
    %v1416 = vextract.low.u32 %v1415
    %v1417 = vextract.high.u32 %v1415
    %v1418 = vmul.u32.u64.compose %v1414, %v1409
    %v1419 = vextract.low.u32 %v1418
    %v1420 = vextract.high.u32 %v1418
    %v1421 = vmul.u32 %v1414, %v1405
    %v1422 = vadd.s32 %v1417, %v1419
    %vm1423 = vc.u32 %v1417, %v1419
    %v1424 = vadd.s32 %v1420, 1
    %v1425 = vsel %vm1423, %v1424, %v1420
    %v1426 = vadd.s32 %v1421, %v1425
    %v1427 = vadd.s32 %v1426, 536870912
    %v1428 = vshrl.u32 %v1427, 30
    %v1429 = vshll.u32 %v1428, 30
    %v1430 = vsub.s32 %v1426, %v1429
    %vm1431 = vcmp.lt.s32.totalorder %v1430, 0
    %v1432 = vsub.s32 0, %v1430
    %v1433 = vsel %vm1431, %v1432, %v1430
    %v1434 = vclz %v1433
    %v1435 = vsub.s32 %v1434, 2
    %vm1436 = vcmp.gt.s32.totalorder 0, %v1435
    %v1437 = vsel %vm1436, 0, %v1435
    %v1438 = vsub.s32 32, %v1437
    %v1439 = vshll.u32 %v1430, %v1437
    %v1440 = vshrl.u32 %v1422, %v1438
    %v1441 = vor.u32 %v1439, %v1440
    %v1442 = vsub.s32 4294967266, %v1437
    %v1443 = vadd.s32 %v1442, 127
    %v1444 = vshll.u32 %v1443, 23
    %v1445 = vor.u32 4788187, %v1444
    %v1446 = vand.u32 2147483647, %v1445
    %v1448 = vcvt.s32.f32 %v1441
    %v1449 = vmul.f32 %v1448, %v1446
    %v1450 = vxor.u32 %v1449, 2147483648
    %v1451 = vsel %vm1368, %v1450, %v1449
    %v1452 = vsub.s32 4, %v1428
    %v1453 = vsel %vm1368, %v1452, %v1428
    %v1454 = vsel %vm1367, %v125, %v1451
    %v1455 = vsel %vm1367, 0, %v1453
    %v1456 = vcosq.f32.pop %v1454
    %v1457 = vsinq.f32.pop %v1454
    %vm1458 = vweird.f32 %v125
    %v1459 = vand.u32 %v1455, 3
    %vm1460 = vcmp.lt.s32.totalorder %v1459, 2
    %vm1461 = vcmp.eq.s32.totalorder %v1459, 0
    %v1462 = vxor.u32 %v1457, 2147483648
    %v1463 = vsel %vm1461, %v1456, %v1462
    %vm1464 = vcmp.eq.s32.totalorder %v1459, 2
    %v1465 = vxor.u32 %v1456, 2147483648
    %v1466 = vsel %vm1464, %v1465, %v1457
    %v1467 = vsel %vm1460, %v1463, %v1466
    %v1468 = vsel %vm1458, nan, %v1467
    %v1469 = vand.u32 2147483647, %v126
    %vm1470 = vcmp.le.f32.partialorder %v1469, 0.7853982
    %vm1471 = vcmp.lt.s32.totalorder %v126, 0
    %v1472 = vand.u32 %v126, 2139095040
    %v1473 = vshrl.u32 %v1472, 23
    %v1474 = vsub.s32 %v1473, 127
    %v1475 = vand.u32 2147483647, %v126
    %v1476 = vand.u32 %v1475, 8388607
    %v1477 = vor.u32 %v1476, 8388608
    %v1478 = vsub.s32 0, %v1477
    %v1479 = vadd.s32 %v1474, 1
    %vm1480 = vcmp.gt.s32.totalorder %v1479, 0
    %v1481 = vsel %vm1480, %v1479, 0
    %v1482 = vshrl.u32 %v1481, 5
    %v1483 = vand.u32 %v1481, 31
    %v1484 = vsub.s32 32, %v1483
    %v1485 = vshrl.u32 683565275, %v1484
    %v1486 = vshll.u32 683565275, %v1483
    %v1487 = vshrl.u32 2475754826, %v1484
    %v1488 = vor.u32 %v1486, %v1487
    %v1489 = vshll.u32 2475754826, %v1483
    %v1490 = vshrl.u32 2131351028, %v1484
    %v1491 = vor.u32 %v1489, %v1490
    %v1492 = vshll.u32 2131351028, %v1483
    %v1493 = vshrl.u32 2102212464, %v1484
    %v1494 = vor.u32 %v1492, %v1493
    %v1495 = vshll.u32 2102212464, %v1483
    %v1496 = vshrl.u32 920167782, %v1484
    %v1497 = vor.u32 %v1495, %v1496
    %v1498 = vshll.u32 920167782, %v1483
    %v1499 = vshrl.u32 1326507024, %v1484
    %v1500 = vor.u32 %v1498, %v1499
    %vm1501 = vcmp.lt.s32.totalorder %v1482, 1
    %vm1502 = vcmp.lt.s32.totalorder %v1482, 2
    %vm1503 = vcmp.lt.s32.totalorder %v1482, 3
    %vm1504 = vcmp.lt.s32.totalorder %v1482, 4
    %v1505 = vsel %vm1501, %v1485, %v1488
    %v1506 = vsel %vm1504, %v1494, 2102212464
    %v1507 = vsel %vm1503, %v1491, %v1506
    %v1508 = vsel %vm1502, %v1505, %v1507
    %v1509 = vsel %vm1501, %v1488, %v1491
    %v1510 = vsel %vm1504, %v1497, 920167782
    %v1511 = vsel %vm1503, %v1494, %v1510
    %v1512 = vsel %vm1502, %v1509, %v1511
    %v1513 = vsel %vm1501, %v1491, %v1494
    %v1514 = vsel %vm1504, %v1500, 1326507024
    %v1515 = vsel %vm1503, %v1497, %v1514
    %v1516 = vsel %vm1502, %v1513, %v1515
    %v1517 = vshll.u32 %v1477, 8
    %v1518 = vmul.u32.u64.compose %v1517, %v1516
    %v1519 = vextract.low.u32 %v1518
    %v1520 = vextract.high.u32 %v1518
    %v1521 = vmul.u32.u64.compose %v1517, %v1512
    %v1522 = vextract.low.u32 %v1521
    %v1523 = vextract.high.u32 %v1521
    %v1524 = vmul.u32 %v1517, %v1508
    %v1525 = vadd.s32 %v1520, %v1522
    %vm1526 = vc.u32 %v1520, %v1522
    %v1527 = vadd.s32 %v1523, 1
    %v1528 = vsel %vm1526, %v1527, %v1523
    %v1529 = vadd.s32 %v1524, %v1528
    %v1530 = vadd.s32 %v1529, 536870912
    %v1531 = vshrl.u32 %v1530, 30
    %v1532 = vshll.u32 %v1531, 30
    %v1533 = vsub.s32 %v1529, %v1532
    %vm1534 = vcmp.lt.s32.totalorder %v1533, 0
    %v1535 = vsub.s32 0, %v1533
    %v1536 = vsel %vm1534, %v1535, %v1533
    %v1537 = vclz %v1536
    %v1538 = vsub.s32 %v1537, 2
    %vm1539 = vcmp.gt.s32.totalorder 0, %v1538
    %v1540 = vsel %vm1539, 0, %v1538
    %v1541 = vsub.s32 32, %v1540
    %v1542 = vshll.u32 %v1533, %v1540
    %v1543 = vshrl.u32 %v1525, %v1541
    %v1544 = vor.u32 %v1542, %v1543
    %v1545 = vsub.s32 4294967266, %v1540
    %v1546 = vadd.s32 %v1545, 127
    %v1547 = vshll.u32 %v1546, 23
    %v1548 = vor.u32 4788187, %v1547
    %v1549 = vand.u32 2147483647, %v1548
    %v1551 = vcvt.s32.f32 %v1544
    %v1552 = vmul.f32 %v1551, %v1549
    %v1553 = vxor.u32 %v1552, 2147483648
    %v1554 = vsel %vm1471, %v1553, %v1552
    %v1555 = vsub.s32 4, %v1531
    %v1556 = vsel %vm1471, %v1555, %v1531
    %v1557 = vsel %vm1470, %v126, %v1554
    %v1558 = vsel %vm1470, 0, %v1556
    %v1559 = vcosq.f32.pop %v1557
    %v1560 = vsinq.f32.pop %v1557
    %vm1561 = vweird.f32 %v126
    %v1562 = vand.u32 %v1558, 3
    %vm1563 = vcmp.lt.s32.totalorder %v1562, 2
    %vm1564 = vcmp.eq.s32.totalorder %v1562, 0
    %v1565 = vxor.u32 %v1560, 2147483648
    %v1566 = vsel %vm1564, %v1559, %v1565
    %vm1567 = vcmp.eq.s32.totalorder %v1562, 2
    %v1568 = vxor.u32 %v1559, 2147483648
    %v1569 = vsel %vm1567, %v1568, %v1560
    %v1570 = vsel %vm1563, %v1566, %v1569
    %v1571 = vsel %vm1561, nan, %v1570
    %v1572 = vand.u32 2147483647, %v127
    %vm1573 = vcmp.le.f32.partialorder %v1572, 0.7853982
    %vm1574 = vcmp.lt.s32.totalorder %v127, 0
    %v1575 = vand.u32 %v127, 2139095040
    %v1576 = vshrl.u32 %v1575, 23
    %v1577 = vsub.s32 %v1576, 127
    %v1578 = vand.u32 2147483647, %v127
    %v1579 = vand.u32 %v1578, 8388607
    %v1580 = vor.u32 %v1579, 8388608
    %v1581 = vsub.s32 0, %v1580
    %v1582 = vadd.s32 %v1577, 1
    %vm1583 = vcmp.gt.s32.totalorder %v1582, 0
    %v1584 = vsel %vm1583, %v1582, 0
    %v1585 = vshrl.u32 %v1584, 5
    %v1586 = vand.u32 %v1584, 31
    %v1587 = vsub.s32 32, %v1586
    %v1588 = vshrl.u32 683565275, %v1587
    %v1589 = vshll.u32 683565275, %v1586
    %v1590 = vshrl.u32 2475754826, %v1587
    %v1591 = vor.u32 %v1589, %v1590
    %v1592 = vshll.u32 2475754826, %v1586
    %v1593 = vshrl.u32 2131351028, %v1587
    %v1594 = vor.u32 %v1592, %v1593
    %v1595 = vshll.u32 2131351028, %v1586
    %v1596 = vshrl.u32 2102212464, %v1587
    %v1597 = vor.u32 %v1595, %v1596
    %v1598 = vshll.u32 2102212464, %v1586
    %v1599 = vshrl.u32 920167782, %v1587
    %v1600 = vor.u32 %v1598, %v1599
    %v1601 = vshll.u32 920167782, %v1586
    %v1602 = vshrl.u32 1326507024, %v1587
    %v1603 = vor.u32 %v1601, %v1602
    %vm1604 = vcmp.lt.s32.totalorder %v1585, 1
    %vm1605 = vcmp.lt.s32.totalorder %v1585, 2
    %vm1606 = vcmp.lt.s32.totalorder %v1585, 3
    %vm1607 = vcmp.lt.s32.totalorder %v1585, 4
    %v1608 = vsel %vm1604, %v1588, %v1591
    %v1609 = vsel %vm1607, %v1597, 2102212464
    %v1610 = vsel %vm1606, %v1594, %v1609
    %v1611 = vsel %vm1605, %v1608, %v1610
    %v1612 = vsel %vm1604, %v1591, %v1594
    %v1613 = vsel %vm1607, %v1600, 920167782
    %v1614 = vsel %vm1606, %v1597, %v1613
    %v1615 = vsel %vm1605, %v1612, %v1614
    %v1616 = vsel %vm1604, %v1594, %v1597
    %v1617 = vsel %vm1607, %v1603, 1326507024
    %v1618 = vsel %vm1606, %v1600, %v1617
    %v1619 = vsel %vm1605, %v1616, %v1618
    %v1620 = vshll.u32 %v1580, 8
    %v1621 = vmul.u32.u64.compose %v1620, %v1619
    %v1622 = vextract.low.u32 %v1621
    %v1623 = vextract.high.u32 %v1621
    %v1624 = vmul.u32.u64.compose %v1620, %v1615
    %v1625 = vextract.low.u32 %v1624
    %v1626 = vextract.high.u32 %v1624
    %v1627 = vmul.u32 %v1620, %v1611
    %v1628 = vadd.s32 %v1623, %v1625
    %vm1629 = vc.u32 %v1623, %v1625
    %v1630 = vadd.s32 %v1626, 1
    %v1631 = vsel %vm1629, %v1630, %v1626
    %v1632 = vadd.s32 %v1627, %v1631
    %v1633 = vadd.s32 %v1632, 536870912
    %v1634 = vshrl.u32 %v1633, 30
    %v1635 = vshll.u32 %v1634, 30
    %v1636 = vsub.s32 %v1632, %v1635
    %vm1637 = vcmp.lt.s32.totalorder %v1636, 0
    %v1638 = vsub.s32 0, %v1636
    %v1639 = vsel %vm1637, %v1638, %v1636
    %v1640 = vclz %v1639
    %v1641 = vsub.s32 %v1640, 2
    %vm1642 = vcmp.gt.s32.totalorder 0, %v1641
    %v1643 = vsel %vm1642, 0, %v1641
    %v1644 = vsub.s32 32, %v1643
    %v1645 = vshll.u32 %v1636, %v1643
    %v1646 = vshrl.u32 %v1628, %v1644
    %v1647 = vor.u32 %v1645, %v1646
    %v1648 = vsub.s32 4294967266, %v1643
    %v1649 = vadd.s32 %v1648, 127
    %v1650 = vshll.u32 %v1649, 23
    %v1651 = vor.u32 4788187, %v1650
    %v1652 = vand.u32 2147483647, %v1651
    %v1654 = vcvt.s32.f32 %v1647
    %v1655 = vmul.f32 %v1654, %v1652
    %v1656 = vxor.u32 %v1655, 2147483648
    %v1657 = vsel %vm1574, %v1656, %v1655
    %v1658 = vsub.s32 4, %v1634
    %v1659 = vsel %vm1574, %v1658, %v1634
    %v1660 = vsel %vm1573, %v127, %v1657
    %v1661 = vsel %vm1573, 0, %v1659
    %v1662 = vcosq.f32.pop %v1660
    %v1663 = vsinq.f32.pop %v1660
    %vm1664 = vweird.f32 %v127
    %v1665 = vand.u32 %v1661, 3
    %vm1666 = vcmp.lt.s32.totalorder %v1665, 2
    %vm1667 = vcmp.eq.s32.totalorder %v1665, 0
    %v1668 = vxor.u32 %v1663, 2147483648
    %v1669 = vsel %vm1667, %v1662, %v1668
    %vm1670 = vcmp.eq.s32.totalorder %v1665, 2
    %v1671 = vxor.u32 %v1662, 2147483648
    %v1672 = vsel %vm1670, %v1671, %v1663
    %v1673 = vsel %vm1666, %v1669, %v1672
    %v1674 = vsel %vm1664, nan, %v1673
    %v1675 = vand.u32 2147483647, %v128
    %vm1676 = vcmp.le.f32.partialorder %v1675, 0.7853982
    %vm1677 = vcmp.lt.s32.totalorder %v128, 0
    %v1678 = vand.u32 %v128, 2139095040
    %v1679 = vshrl.u32 %v1678, 23
    %v1680 = vsub.s32 %v1679, 127
    %v1681 = vand.u32 2147483647, %v128
    %v1682 = vand.u32 %v1681, 8388607
    %v1683 = vor.u32 %v1682, 8388608
    %v1684 = vsub.s32 0, %v1683
    %v1685 = vadd.s32 %v1680, 1
    %vm1686 = vcmp.gt.s32.totalorder %v1685, 0
    %v1687 = vsel %vm1686, %v1685, 0
    %v1688 = vshrl.u32 %v1687, 5
    %v1689 = vand.u32 %v1687, 31
    %v1690 = vsub.s32 32, %v1689
    %v1691 = vshrl.u32 683565275, %v1690
    %v1692 = vshll.u32 683565275, %v1689
    %v1693 = vshrl.u32 2475754826, %v1690
    %v1694 = vor.u32 %v1692, %v1693
    %v1695 = vshll.u32 2475754826, %v1689
    %v1696 = vshrl.u32 2131351028, %v1690
    %v1697 = vor.u32 %v1695, %v1696
    %v1698 = vshll.u32 2131351028, %v1689
    %v1699 = vshrl.u32 2102212464, %v1690
    %v1700 = vor.u32 %v1698, %v1699
    %v1701 = vshll.u32 2102212464, %v1689
    %v1702 = vshrl.u32 920167782, %v1690
    %v1703 = vor.u32 %v1701, %v1702
    %v1704 = vshll.u32 920167782, %v1689
    %v1705 = vshrl.u32 1326507024, %v1690
    %v1706 = vor.u32 %v1704, %v1705
    %vm1707 = vcmp.lt.s32.totalorder %v1688, 1
    %vm1708 = vcmp.lt.s32.totalorder %v1688, 2
    %vm1709 = vcmp.lt.s32.totalorder %v1688, 3
    %vm1710 = vcmp.lt.s32.totalorder %v1688, 4
    %v1711 = vsel %vm1707, %v1691, %v1694
    %v1712 = vsel %vm1710, %v1700, 2102212464
    %v1713 = vsel %vm1709, %v1697, %v1712
    %v1714 = vsel %vm1708, %v1711, %v1713
    %v1715 = vsel %vm1707, %v1694, %v1697
    %v1716 = vsel %vm1710, %v1703, 920167782
    %v1717 = vsel %vm1709, %v1700, %v1716
    %v1718 = vsel %vm1708, %v1715, %v1717
    %v1719 = vsel %vm1707, %v1697, %v1700
    %v1720 = vsel %vm1710, %v1706, 1326507024
    %v1721 = vsel %vm1709, %v1703, %v1720
    %v1722 = vsel %vm1708, %v1719, %v1721
    %v1723 = vshll.u32 %v1683, 8
    %v1724 = vmul.u32.u64.compose %v1723, %v1722
    %v1725 = vextract.low.u32 %v1724
    %v1726 = vextract.high.u32 %v1724
    %v1727 = vmul.u32.u64.compose %v1723, %v1718
    %v1728 = vextract.low.u32 %v1727
    %v1729 = vextract.high.u32 %v1727
    %v1730 = vmul.u32 %v1723, %v1714
    %v1731 = vadd.s32 %v1726, %v1728
    %vm1732 = vc.u32 %v1726, %v1728
    %v1733 = vadd.s32 %v1729, 1
    %v1734 = vsel %vm1732, %v1733, %v1729
    %v1735 = vadd.s32 %v1730, %v1734
    %v1736 = vadd.s32 %v1735, 536870912
    %v1737 = vshrl.u32 %v1736, 30
    %v1738 = vshll.u32 %v1737, 30
    %v1739 = vsub.s32 %v1735, %v1738
    %vm1740 = vcmp.lt.s32.totalorder %v1739, 0
    %v1741 = vsub.s32 0, %v1739
    %v1742 = vsel %vm1740, %v1741, %v1739
    %v1743 = vclz %v1742
    %v1744 = vsub.s32 %v1743, 2
    %vm1745 = vcmp.gt.s32.totalorder 0, %v1744
    %v1746 = vsel %vm1745, 0, %v1744
    %v1747 = vsub.s32 32, %v1746
    %v1748 = vshll.u32 %v1739, %v1746
    %v1749 = vshrl.u32 %v1731, %v1747
    %v1750 = vor.u32 %v1748, %v1749
    %v1751 = vsub.s32 4294967266, %v1746
    %v1752 = vadd.s32 %v1751, 127
    %v1753 = vshll.u32 %v1752, 23
    %v1754 = vor.u32 4788187, %v1753
    %v1755 = vand.u32 2147483647, %v1754
    %v1757 = vcvt.s32.f32 %v1750
    %v1758 = vmul.f32 %v1757, %v1755
    %v1759 = vxor.u32 %v1758, 2147483648
    %v1760 = vsel %vm1677, %v1759, %v1758
    %v1761 = vsub.s32 4, %v1737
    %v1762 = vsel %vm1677, %v1761, %v1737
    %v1763 = vsel %vm1676, %v128, %v1760
    %v1764 = vsel %vm1676, 0, %v1762
    %v1765 = vcosq.f32.pop %v1763
    %v1766 = vsinq.f32.pop %v1763
    %vm1767 = vweird.f32 %v128
    %v1768 = vand.u32 %v1764, 3
    %vm1769 = vcmp.lt.s32.totalorder %v1768, 2
    %vm1770 = vcmp.eq.s32.totalorder %v1768, 0
    %v1771 = vxor.u32 %v1766, 2147483648
    %v1772 = vsel %vm1770, %v1765, %v1771
    %vm1773 = vcmp.eq.s32.totalorder %v1768, 2
    %v1774 = vxor.u32 %v1765, 2147483648
    %v1775 = vsel %vm1773, %v1774, %v1766
    %v1776 = vsel %vm1769, %v1772, %v1775
    %v1777 = vsel %vm1767, nan, %v1776
    %v1778 = vand.u32 2147483647, %v113
    %vm1779 = vcmp.le.f32.partialorder %v1778, 0.7853982
    %vm1780 = vcmp.lt.s32.totalorder %v113, 0
    %v1781 = vand.u32 %v113, 2139095040
    %v1782 = vshrl.u32 %v1781, 23
    %v1783 = vsub.s32 %v1782, 127
    %v1784 = vand.u32 2147483647, %v113
    %v1785 = vand.u32 %v1784, 8388607
    %v1786 = vor.u32 %v1785, 8388608
    %v1787 = vsub.s32 0, %v1786
    %v1788 = vadd.s32 %v1783, 1
    %vm1789 = vcmp.gt.s32.totalorder %v1788, 0
    %v1790 = vsel %vm1789, %v1788, 0
    %v1791 = vshrl.u32 %v1790, 5
    %v1792 = vand.u32 %v1790, 31
    %v1793 = vsub.s32 32, %v1792
    %v1794 = vshrl.u32 683565275, %v1793
    %v1795 = vshll.u32 683565275, %v1792
    %v1796 = vshrl.u32 2475754826, %v1793
    %v1797 = vor.u32 %v1795, %v1796
    %v1798 = vshll.u32 2475754826, %v1792
    %v1799 = vshrl.u32 2131351028, %v1793
    %v1800 = vor.u32 %v1798, %v1799
    %v1801 = vshll.u32 2131351028, %v1792
    %v1802 = vshrl.u32 2102212464, %v1793
    %v1803 = vor.u32 %v1801, %v1802
    %v1804 = vshll.u32 2102212464, %v1792
    %v1805 = vshrl.u32 920167782, %v1793
    %v1806 = vor.u32 %v1804, %v1805
    %v1807 = vshll.u32 920167782, %v1792
    %v1808 = vshrl.u32 1326507024, %v1793
    %v1809 = vor.u32 %v1807, %v1808
    %vm1810 = vcmp.lt.s32.totalorder %v1791, 1
    %vm1811 = vcmp.lt.s32.totalorder %v1791, 2
    %vm1812 = vcmp.lt.s32.totalorder %v1791, 3
    %vm1813 = vcmp.lt.s32.totalorder %v1791, 4
    %v1814 = vsel %vm1810, %v1794, %v1797
    %v1815 = vsel %vm1813, %v1803, 2102212464
    %v1816 = vsel %vm1812, %v1800, %v1815
    %v1817 = vsel %vm1811, %v1814, %v1816
    %v1818 = vsel %vm1810, %v1797, %v1800
    %v1819 = vsel %vm1813, %v1806, 920167782
    %v1820 = vsel %vm1812, %v1803, %v1819
    %v1821 = vsel %vm1811, %v1818, %v1820
    %v1822 = vsel %vm1810, %v1800, %v1803
    %v1823 = vsel %vm1813, %v1809, 1326507024
    %v1824 = vsel %vm1812, %v1806, %v1823
    %v1825 = vsel %vm1811, %v1822, %v1824
    %v1826 = vshll.u32 %v1786, 8
    %v1827 = vmul.u32.u64.compose %v1826, %v1825
    %v1828 = vextract.low.u32 %v1827
    %v1829 = vextract.high.u32 %v1827
    %v1830 = vmul.u32.u64.compose %v1826, %v1821
    %v1831 = vextract.low.u32 %v1830
    %v1832 = vextract.high.u32 %v1830
    %v1833 = vmul.u32 %v1826, %v1817
    %v1834 = vadd.s32 %v1829, %v1831
    %vm1835 = vc.u32 %v1829, %v1831
    %v1836 = vadd.s32 %v1832, 1
    %v1837 = vsel %vm1835, %v1836, %v1832
    %v1838 = vadd.s32 %v1833, %v1837
    %v1839 = vadd.s32 %v1838, 536870912
    %v1840 = vshrl.u32 %v1839, 30
    %v1841 = vshll.u32 %v1840, 30
    %v1842 = vsub.s32 %v1838, %v1841
    %vm1843 = vcmp.lt.s32.totalorder %v1842, 0
    %v1844 = vsub.s32 0, %v1842
    %v1845 = vsel %vm1843, %v1844, %v1842
    %v1846 = vclz %v1845
    %v1847 = vsub.s32 %v1846, 2
    %vm1848 = vcmp.gt.s32.totalorder 0, %v1847
    %v1849 = vsel %vm1848, 0, %v1847
    %v1850 = vsub.s32 32, %v1849
    %v1851 = vshll.u32 %v1842, %v1849
    %v1852 = vshrl.u32 %v1834, %v1850
    %v1853 = vor.u32 %v1851, %v1852
    %v1854 = vsub.s32 4294967266, %v1849
    %v1855 = vadd.s32 %v1854, 127
    %v1856 = vshll.u32 %v1855, 23
    %v1857 = vor.u32 4788187, %v1856
    %v1858 = vand.u32 2147483647, %v1857
    %v1860 = vcvt.s32.f32 %v1853
    %v1861 = vmul.f32 %v1860, %v1858
    %v1862 = vxor.u32 %v1861, 2147483648
    %v1863 = vsel %vm1780, %v1862, %v1861
    %v1864 = vsub.s32 4, %v1840
    %v1865 = vsel %vm1780, %v1864, %v1840
    %v1866 = vsel %vm1779, %v113, %v1863
    %v1867 = vsel %vm1779, 0, %v1865
    %v1868 = vcosq.f32.pop %v1866
    %v1869 = vsinq.f32.pop %v1866
    %vm1870 = vweird.f32 %v113
    %v1871 = vadd.s32 %v1867, 3
    %v1872 = vand.u32 %v1871, 3
    %vm1873 = vcmp.lt.s32.totalorder %v1872, 2
    %vm1874 = vcmp.eq.s32.totalorder %v1872, 0
    %v1875 = vxor.u32 %v1869, 2147483648
    %v1876 = vsel %vm1874, %v1868, %v1875
    %vm1877 = vcmp.eq.s32.totalorder %v1872, 2
    %v1878 = vxor.u32 %v1868, 2147483648
    %v1879 = vsel %vm1877, %v1878, %v1869
    %v1880 = vsel %vm1873, %v1876, %v1879
    %v1881 = vsel %vm1870, nan, %v1880
    %v1882 = vand.u32 2147483647, %v114
    %vm1883 = vcmp.le.f32.partialorder %v1882, 0.7853982
    %vm1884 = vcmp.lt.s32.totalorder %v114, 0
    %v1885 = vand.u32 %v114, 2139095040
    %v1886 = vshrl.u32 %v1885, 23
    %v1887 = vsub.s32 %v1886, 127
    %v1888 = vand.u32 2147483647, %v114
    %v1889 = vand.u32 %v1888, 8388607
    %v1890 = vor.u32 %v1889, 8388608
    %v1891 = vsub.s32 0, %v1890
    %v1892 = vadd.s32 %v1887, 1
    %vm1893 = vcmp.gt.s32.totalorder %v1892, 0
    %v1894 = vsel %vm1893, %v1892, 0
    %v1895 = vshrl.u32 %v1894, 5
    %v1896 = vand.u32 %v1894, 31
    %v1897 = vsub.s32 32, %v1896
    %v1898 = vshrl.u32 683565275, %v1897
    %v1899 = vshll.u32 683565275, %v1896
    %v1900 = vshrl.u32 2475754826, %v1897
    %v1901 = vor.u32 %v1899, %v1900
    %v1902 = vshll.u32 2475754826, %v1896
    %v1903 = vshrl.u32 2131351028, %v1897
    %v1904 = vor.u32 %v1902, %v1903
    %v1905 = vshll.u32 2131351028, %v1896
    %v1906 = vshrl.u32 2102212464, %v1897
    %v1907 = vor.u32 %v1905, %v1906
    %v1908 = vshll.u32 2102212464, %v1896
    %v1909 = vshrl.u32 920167782, %v1897
    %v1910 = vor.u32 %v1908, %v1909
    %v1911 = vshll.u32 920167782, %v1896
    %v1912 = vshrl.u32 1326507024, %v1897
    %v1913 = vor.u32 %v1911, %v1912
    %vm1914 = vcmp.lt.s32.totalorder %v1895, 1
    %vm1915 = vcmp.lt.s32.totalorder %v1895, 2
    %vm1916 = vcmp.lt.s32.totalorder %v1895, 3
    %vm1917 = vcmp.lt.s32.totalorder %v1895, 4
    %v1918 = vsel %vm1914, %v1898, %v1901
    %v1919 = vsel %vm1917, %v1907, 2102212464
    %v1920 = vsel %vm1916, %v1904, %v1919
    %v1921 = vsel %vm1915, %v1918, %v1920
    %v1922 = vsel %vm1914, %v1901, %v1904
    %v1923 = vsel %vm1917, %v1910, 920167782
    %v1924 = vsel %vm1916, %v1907, %v1923
    %v1925 = vsel %vm1915, %v1922, %v1924
    %v1926 = vsel %vm1914, %v1904, %v1907
    %v1927 = vsel %vm1917, %v1913, 1326507024
    %v1928 = vsel %vm1916, %v1910, %v1927
    %v1929 = vsel %vm1915, %v1926, %v1928
    %v1930 = vshll.u32 %v1890, 8
    %v1931 = vmul.u32.u64.compose %v1930, %v1929
    %v1932 = vextract.low.u32 %v1931
    %v1933 = vextract.high.u32 %v1931
    %v1934 = vmul.u32.u64.compose %v1930, %v1925
    %v1935 = vextract.low.u32 %v1934
    %v1936 = vextract.high.u32 %v1934
    %v1937 = vmul.u32 %v1930, %v1921
    %v1938 = vadd.s32 %v1933, %v1935
    %vm1939 = vc.u32 %v1933, %v1935
    %v1940 = vadd.s32 %v1936, 1
    %v1941 = vsel %vm1939, %v1940, %v1936
    %v1942 = vadd.s32 %v1937, %v1941
    %v1943 = vadd.s32 %v1942, 536870912
    %v1944 = vshrl.u32 %v1943, 30
    %v1945 = vshll.u32 %v1944, 30
    %v1946 = vsub.s32 %v1942, %v1945
    %vm1947 = vcmp.lt.s32.totalorder %v1946, 0
    %v1948 = vsub.s32 0, %v1946
    %v1949 = vsel %vm1947, %v1948, %v1946
    %v1950 = vclz %v1949
    %v1951 = vsub.s32 %v1950, 2
    %vm1952 = vcmp.gt.s32.totalorder 0, %v1951
    %v1953 = vsel %vm1952, 0, %v1951
    %v1954 = vsub.s32 32, %v1953
    %v1955 = vshll.u32 %v1946, %v1953
    %v1956 = vshrl.u32 %v1938, %v1954
    %v1957 = vor.u32 %v1955, %v1956
    %v1958 = vsub.s32 4294967266, %v1953
    %v1959 = vadd.s32 %v1958, 127
    %v1960 = vshll.u32 %v1959, 23
    %v1961 = vor.u32 4788187, %v1960
    %v1962 = vand.u32 2147483647, %v1961
    %v1964 = vcvt.s32.f32 %v1957
    %v1965 = vmul.f32 %v1964, %v1962
    %v1966 = vxor.u32 %v1965, 2147483648
    %v1967 = vsel %vm1884, %v1966, %v1965
    %v1968 = vsub.s32 4, %v1944
    %v1969 = vsel %vm1884, %v1968, %v1944
    %v1970 = vsel %vm1883, %v114, %v1967
    %v1971 = vsel %vm1883, 0, %v1969
    %v1972 = vcosq.f32.pop %v1970
    %v1973 = vsinq.f32.pop %v1970
    %vm1974 = vweird.f32 %v114
    %v1975 = vadd.s32 %v1971, 3
    %v1976 = vand.u32 %v1975, 3
    %vm1977 = vcmp.lt.s32.totalorder %v1976, 2
    %vm1978 = vcmp.eq.s32.totalorder %v1976, 0
    %v1979 = vxor.u32 %v1973, 2147483648
    %v1980 = vsel %vm1978, %v1972, %v1979
    %vm1981 = vcmp.eq.s32.totalorder %v1976, 2
    %v1982 = vxor.u32 %v1972, 2147483648
    %v1983 = vsel %vm1981, %v1982, %v1973
    %v1984 = vsel %vm1977, %v1980, %v1983
    %v1985 = vsel %vm1974, nan, %v1984
    %v1986 = vand.u32 2147483647, %v115
    %vm1987 = vcmp.le.f32.partialorder %v1986, 0.7853982
    %vm1988 = vcmp.lt.s32.totalorder %v115, 0
    %v1989 = vand.u32 %v115, 2139095040
    %v1990 = vshrl.u32 %v1989, 23
    %v1991 = vsub.s32 %v1990, 127
    %v1992 = vand.u32 2147483647, %v115
    %v1993 = vand.u32 %v1992, 8388607
    %v1994 = vor.u32 %v1993, 8388608
    %v1995 = vsub.s32 0, %v1994
    %v1996 = vadd.s32 %v1991, 1
    %vm1997 = vcmp.gt.s32.totalorder %v1996, 0
    %v1998 = vsel %vm1997, %v1996, 0
    %v1999 = vshrl.u32 %v1998, 5
    %v2000 = vand.u32 %v1998, 31
    %v2001 = vsub.s32 32, %v2000
    %v2002 = vshrl.u32 683565275, %v2001
    %v2003 = vshll.u32 683565275, %v2000
    %v2004 = vshrl.u32 2475754826, %v2001
    %v2005 = vor.u32 %v2003, %v2004
    %v2006 = vshll.u32 2475754826, %v2000
    %v2007 = vshrl.u32 2131351028, %v2001
    %v2008 = vor.u32 %v2006, %v2007
    %v2009 = vshll.u32 2131351028, %v2000
    %v2010 = vshrl.u32 2102212464, %v2001
    %v2011 = vor.u32 %v2009, %v2010
    %v2012 = vshll.u32 2102212464, %v2000
    %v2013 = vshrl.u32 920167782, %v2001
    %v2014 = vor.u32 %v2012, %v2013
    %v2015 = vshll.u32 920167782, %v2000
    %v2016 = vshrl.u32 1326507024, %v2001
    %v2017 = vor.u32 %v2015, %v2016
    %vm2018 = vcmp.lt.s32.totalorder %v1999, 1
    %vm2019 = vcmp.lt.s32.totalorder %v1999, 2
    %vm2020 = vcmp.lt.s32.totalorder %v1999, 3
    %vm2021 = vcmp.lt.s32.totalorder %v1999, 4
    %v2022 = vsel %vm2018, %v2002, %v2005
    %v2023 = vsel %vm2021, %v2011, 2102212464
    %v2024 = vsel %vm2020, %v2008, %v2023
    %v2025 = vsel %vm2019, %v2022, %v2024
    %v2026 = vsel %vm2018, %v2005, %v2008
    %v2027 = vsel %vm2021, %v2014, 920167782
    %v2028 = vsel %vm2020, %v2011, %v2027
    %v2029 = vsel %vm2019, %v2026, %v2028
    %v2030 = vsel %vm2018, %v2008, %v2011
    %v2031 = vsel %vm2021, %v2017, 1326507024
    %v2032 = vsel %vm2020, %v2014, %v2031
    %v2033 = vsel %vm2019, %v2030, %v2032
    %v2034 = vshll.u32 %v1994, 8
    %v2035 = vmul.u32.u64.compose %v2034, %v2033
    %v2036 = vextract.low.u32 %v2035
    %v2037 = vextract.high.u32 %v2035
    %v2038 = vmul.u32.u64.compose %v2034, %v2029
    %v2039 = vextract.low.u32 %v2038
    %v2040 = vextract.high.u32 %v2038
    %v2041 = vmul.u32 %v2034, %v2025
    %v2042 = vadd.s32 %v2037, %v2039
    %vm2043 = vc.u32 %v2037, %v2039
    %v2044 = vadd.s32 %v2040, 1
    %v2045 = vsel %vm2043, %v2044, %v2040
    %v2046 = vadd.s32 %v2041, %v2045
    %v2047 = vadd.s32 %v2046, 536870912
    %v2048 = vshrl.u32 %v2047, 30
    %v2049 = vshll.u32 %v2048, 30
    %v2050 = vsub.s32 %v2046, %v2049
    %vm2051 = vcmp.lt.s32.totalorder %v2050, 0
    %v2052 = vsub.s32 0, %v2050
    %v2053 = vsel %vm2051, %v2052, %v2050
    %v2054 = vclz %v2053
    %v2055 = vsub.s32 %v2054, 2
    %vm2056 = vcmp.gt.s32.totalorder 0, %v2055
    %v2057 = vsel %vm2056, 0, %v2055
    %v2058 = vsub.s32 32, %v2057
    %v2059 = vshll.u32 %v2050, %v2057
    %v2060 = vshrl.u32 %v2042, %v2058
    %v2061 = vor.u32 %v2059, %v2060
    %v2062 = vsub.s32 4294967266, %v2057
    %v2063 = vadd.s32 %v2062, 127
    %v2064 = vshll.u32 %v2063, 23
    %v2065 = vor.u32 4788187, %v2064
    %v2066 = vand.u32 2147483647, %v2065
    %v2068 = vcvt.s32.f32 %v2061
    %v2069 = vmul.f32 %v2068, %v2066
    %v2070 = vxor.u32 %v2069, 2147483648
    %v2071 = vsel %vm1988, %v2070, %v2069
    %v2072 = vsub.s32 4, %v2048
    %v2073 = vsel %vm1988, %v2072, %v2048
    %v2074 = vsel %vm1987, %v115, %v2071
    %v2075 = vsel %vm1987, 0, %v2073
    %v2076 = vcosq.f32.pop %v2074
    %v2077 = vsinq.f32.pop %v2074
    %vm2078 = vweird.f32 %v115
    %v2079 = vadd.s32 %v2075, 3
    %v2080 = vand.u32 %v2079, 3
    %vm2081 = vcmp.lt.s32.totalorder %v2080, 2
    %vm2082 = vcmp.eq.s32.totalorder %v2080, 0
    %v2083 = vxor.u32 %v2077, 2147483648
    %v2084 = vsel %vm2082, %v2076, %v2083
    %vm2085 = vcmp.eq.s32.totalorder %v2080, 2
    %v2086 = vxor.u32 %v2076, 2147483648
    %v2087 = vsel %vm2085, %v2086, %v2077
    %v2088 = vsel %vm2081, %v2084, %v2087
    %v2089 = vsel %vm2078, nan, %v2088
    %v2090 = vand.u32 2147483647, %v116
    %vm2091 = vcmp.le.f32.partialorder %v2090, 0.7853982
    %vm2092 = vcmp.lt.s32.totalorder %v116, 0
    %v2093 = vand.u32 %v116, 2139095040
    %v2094 = vshrl.u32 %v2093, 23
    %v2095 = vsub.s32 %v2094, 127
    %v2096 = vand.u32 2147483647, %v116
    %v2097 = vand.u32 %v2096, 8388607
    %v2098 = vor.u32 %v2097, 8388608
    %v2099 = vsub.s32 0, %v2098
    %v2100 = vadd.s32 %v2095, 1
    %vm2101 = vcmp.gt.s32.totalorder %v2100, 0
    %v2102 = vsel %vm2101, %v2100, 0
    %v2103 = vshrl.u32 %v2102, 5
    %v2104 = vand.u32 %v2102, 31
    %v2105 = vsub.s32 32, %v2104
    %v2106 = vshrl.u32 683565275, %v2105
    %v2107 = vshll.u32 683565275, %v2104
    %v2108 = vshrl.u32 2475754826, %v2105
    %v2109 = vor.u32 %v2107, %v2108
    %v2110 = vshll.u32 2475754826, %v2104
    %v2111 = vshrl.u32 2131351028, %v2105
    %v2112 = vor.u32 %v2110, %v2111
    %v2113 = vshll.u32 2131351028, %v2104
    %v2114 = vshrl.u32 2102212464, %v2105
    %v2115 = vor.u32 %v2113, %v2114
    %v2116 = vshll.u32 2102212464, %v2104
    %v2117 = vshrl.u32 920167782, %v2105
    %v2118 = vor.u32 %v2116, %v2117
    %v2119 = vshll.u32 920167782, %v2104
    %v2120 = vshrl.u32 1326507024, %v2105
    %v2121 = vor.u32 %v2119, %v2120
    %vm2122 = vcmp.lt.s32.totalorder %v2103, 1
    %vm2123 = vcmp.lt.s32.totalorder %v2103, 2
    %vm2124 = vcmp.lt.s32.totalorder %v2103, 3
    %vm2125 = vcmp.lt.s32.totalorder %v2103, 4
    %v2126 = vsel %vm2122, %v2106, %v2109
    %v2127 = vsel %vm2125, %v2115, 2102212464
    %v2128 = vsel %vm2124, %v2112, %v2127
    %v2129 = vsel %vm2123, %v2126, %v2128
    %v2130 = vsel %vm2122, %v2109, %v2112
    %v2131 = vsel %vm2125, %v2118, 920167782
    %v2132 = vsel %vm2124, %v2115, %v2131
    %v2133 = vsel %vm2123, %v2130, %v2132
    %v2134 = vsel %vm2122, %v2112, %v2115
    %v2135 = vsel %vm2125, %v2121, 1326507024
    %v2136 = vsel %vm2124, %v2118, %v2135
    %v2137 = vsel %vm2123, %v2134, %v2136
    %v2138 = vshll.u32 %v2098, 8
    %v2139 = vmul.u32.u64.compose %v2138, %v2137
    %v2140 = vextract.low.u32 %v2139
    %v2141 = vextract.high.u32 %v2139
    %v2142 = vmul.u32.u64.compose %v2138, %v2133
    %v2143 = vextract.low.u32 %v2142
    %v2144 = vextract.high.u32 %v2142
    %v2145 = vmul.u32 %v2138, %v2129
    %v2146 = vadd.s32 %v2141, %v2143
    %vm2147 = vc.u32 %v2141, %v2143
    %v2148 = vadd.s32 %v2144, 1
    %v2149 = vsel %vm2147, %v2148, %v2144
    %v2150 = vadd.s32 %v2145, %v2149
    %v2151 = vadd.s32 %v2150, 536870912
    %v2152 = vshrl.u32 %v2151, 30
    %v2153 = vshll.u32 %v2152, 30
    %v2154 = vsub.s32 %v2150, %v2153
    %vm2155 = vcmp.lt.s32.totalorder %v2154, 0
    %v2156 = vsub.s32 0, %v2154
    %v2157 = vsel %vm2155, %v2156, %v2154
    %v2158 = vclz %v2157
    %v2159 = vsub.s32 %v2158, 2
    %vm2160 = vcmp.gt.s32.totalorder 0, %v2159
    %v2161 = vsel %vm2160, 0, %v2159
    %v2162 = vsub.s32 32, %v2161
    %v2163 = vshll.u32 %v2154, %v2161
    %v2164 = vshrl.u32 %v2146, %v2162
    %v2165 = vor.u32 %v2163, %v2164
    %v2166 = vsub.s32 4294967266, %v2161
    %v2167 = vadd.s32 %v2166, 127
    %v2168 = vshll.u32 %v2167, 23
    %v2169 = vor.u32 4788187, %v2168
    %v2170 = vand.u32 2147483647, %v2169
    %v2172 = vcvt.s32.f32 %v2165
    %v2173 = vmul.f32 %v2172, %v2170
    %v2174 = vxor.u32 %v2173, 2147483648
    %v2175 = vsel %vm2092, %v2174, %v2173
    %v2176 = vsub.s32 4, %v2152
    %v2177 = vsel %vm2092, %v2176, %v2152
    %v2178 = vsel %vm2091, %v116, %v2175
    %v2179 = vsel %vm2091, 0, %v2177
    %v2180 = vcosq.f32.pop %v2178
    %v2181 = vsinq.f32.pop %v2178
    %vm2182 = vweird.f32 %v116
    %v2183 = vadd.s32 %v2179, 3
    %v2184 = vand.u32 %v2183, 3
    %vm2185 = vcmp.lt.s32.totalorder %v2184, 2
    %vm2186 = vcmp.eq.s32.totalorder %v2184, 0
    %v2187 = vxor.u32 %v2181, 2147483648
    %v2188 = vsel %vm2186, %v2180, %v2187
    %vm2189 = vcmp.eq.s32.totalorder %v2184, 2
    %v2190 = vxor.u32 %v2180, 2147483648
    %v2191 = vsel %vm2189, %v2190, %v2181
    %v2192 = vsel %vm2185, %v2188, %v2191
    %v2193 = vsel %vm2182, nan, %v2192
    %v2194 = vand.u32 2147483647, %v117
    %vm2195 = vcmp.le.f32.partialorder %v2194, 0.7853982
    %vm2196 = vcmp.lt.s32.totalorder %v117, 0
    %v2197 = vand.u32 %v117, 2139095040
    %v2198 = vshrl.u32 %v2197, 23
    %v2199 = vsub.s32 %v2198, 127
    %v2200 = vand.u32 2147483647, %v117
    %v2201 = vand.u32 %v2200, 8388607
    %v2202 = vor.u32 %v2201, 8388608
    %v2203 = vsub.s32 0, %v2202
    %v2204 = vadd.s32 %v2199, 1
    %vm2205 = vcmp.gt.s32.totalorder %v2204, 0
    %v2206 = vsel %vm2205, %v2204, 0
    %v2207 = vshrl.u32 %v2206, 5
    %v2208 = vand.u32 %v2206, 31
    %v2209 = vsub.s32 32, %v2208
    %v2210 = vshrl.u32 683565275, %v2209
    %v2211 = vshll.u32 683565275, %v2208
    %v2212 = vshrl.u32 2475754826, %v2209
    %v2213 = vor.u32 %v2211, %v2212
    %v2214 = vshll.u32 2475754826, %v2208
    %v2215 = vshrl.u32 2131351028, %v2209
    %v2216 = vor.u32 %v2214, %v2215
    %v2217 = vshll.u32 2131351028, %v2208
    %v2218 = vshrl.u32 2102212464, %v2209
    %v2219 = vor.u32 %v2217, %v2218
    %v2220 = vshll.u32 2102212464, %v2208
    %v2221 = vshrl.u32 920167782, %v2209
    %v2222 = vor.u32 %v2220, %v2221
    %v2223 = vshll.u32 920167782, %v2208
    %v2224 = vshrl.u32 1326507024, %v2209
    %v2225 = vor.u32 %v2223, %v2224
    %vm2226 = vcmp.lt.s32.totalorder %v2207, 1
    %vm2227 = vcmp.lt.s32.totalorder %v2207, 2
    %vm2228 = vcmp.lt.s32.totalorder %v2207, 3
    %vm2229 = vcmp.lt.s32.totalorder %v2207, 4
    %v2230 = vsel %vm2226, %v2210, %v2213
    %v2231 = vsel %vm2229, %v2219, 2102212464
    %v2232 = vsel %vm2228, %v2216, %v2231
    %v2233 = vsel %vm2227, %v2230, %v2232
    %v2234 = vsel %vm2226, %v2213, %v2216
    %v2235 = vsel %vm2229, %v2222, 920167782
    %v2236 = vsel %vm2228, %v2219, %v2235
    %v2237 = vsel %vm2227, %v2234, %v2236
    %v2238 = vsel %vm2226, %v2216, %v2219
    %v2239 = vsel %vm2229, %v2225, 1326507024
    %v2240 = vsel %vm2228, %v2222, %v2239
    %v2241 = vsel %vm2227, %v2238, %v2240
    %v2242 = vshll.u32 %v2202, 8
    %v2243 = vmul.u32.u64.compose %v2242, %v2241
    %v2244 = vextract.low.u32 %v2243
    %v2245 = vextract.high.u32 %v2243
    %v2246 = vmul.u32.u64.compose %v2242, %v2237
    %v2247 = vextract.low.u32 %v2246
    %v2248 = vextract.high.u32 %v2246
    %v2249 = vmul.u32 %v2242, %v2233
    %v2250 = vadd.s32 %v2245, %v2247
    %vm2251 = vc.u32 %v2245, %v2247
    %v2252 = vadd.s32 %v2248, 1
    %v2253 = vsel %vm2251, %v2252, %v2248
    %v2254 = vadd.s32 %v2249, %v2253
    %v2255 = vadd.s32 %v2254, 536870912
    %v2256 = vshrl.u32 %v2255, 30
    %v2257 = vshll.u32 %v2256, 30
    %v2258 = vsub.s32 %v2254, %v2257
    %vm2259 = vcmp.lt.s32.totalorder %v2258, 0
    %v2260 = vsub.s32 0, %v2258
    %v2261 = vsel %vm2259, %v2260, %v2258
    %v2262 = vclz %v2261
    %v2263 = vsub.s32 %v2262, 2
    %vm2264 = vcmp.gt.s32.totalorder 0, %v2263
    %v2265 = vsel %vm2264, 0, %v2263
    %v2266 = vsub.s32 32, %v2265
    %v2267 = vshll.u32 %v2258, %v2265
    %v2268 = vshrl.u32 %v2250, %v2266
    %v2269 = vor.u32 %v2267, %v2268
    %v2270 = vsub.s32 4294967266, %v2265
    %v2271 = vadd.s32 %v2270, 127
    %v2272 = vshll.u32 %v2271, 23
    %v2273 = vor.u32 4788187, %v2272
    %v2274 = vand.u32 2147483647, %v2273
    %v2276 = vcvt.s32.f32 %v2269
    %v2277 = vmul.f32 %v2276, %v2274
    %v2278 = vxor.u32 %v2277, 2147483648
    %v2279 = vsel %vm2196, %v2278, %v2277
    %v2280 = vsub.s32 4, %v2256
    %v2281 = vsel %vm2196, %v2280, %v2256
    %v2282 = vsel %vm2195, %v117, %v2279
    %v2283 = vsel %vm2195, 0, %v2281
    %v2284 = vcosq.f32.pop %v2282
    %v2285 = vsinq.f32.pop %v2282
    %vm2286 = vweird.f32 %v117
    %v2287 = vadd.s32 %v2283, 3
    %v2288 = vand.u32 %v2287, 3
    %vm2289 = vcmp.lt.s32.totalorder %v2288, 2
    %vm2290 = vcmp.eq.s32.totalorder %v2288, 0
    %v2291 = vxor.u32 %v2285, 2147483648
    %v2292 = vsel %vm2290, %v2284, %v2291
    %vm2293 = vcmp.eq.s32.totalorder %v2288, 2
    %v2294 = vxor.u32 %v2284, 2147483648
    %v2295 = vsel %vm2293, %v2294, %v2285
    %v2296 = vsel %vm2289, %v2292, %v2295
    %v2297 = vsel %vm2286, nan, %v2296
    %v2298 = vand.u32 2147483647, %v118
    %vm2299 = vcmp.le.f32.partialorder %v2298, 0.7853982
    %vm2300 = vcmp.lt.s32.totalorder %v118, 0
    %v2301 = vand.u32 %v118, 2139095040
    %v2302 = vshrl.u32 %v2301, 23
    %v2303 = vsub.s32 %v2302, 127
    %v2304 = vand.u32 2147483647, %v118
    %v2305 = vand.u32 %v2304, 8388607
    %v2306 = vor.u32 %v2305, 8388608
    %v2307 = vsub.s32 0, %v2306
    %v2308 = vadd.s32 %v2303, 1
    %vm2309 = vcmp.gt.s32.totalorder %v2308, 0
    %v2310 = vsel %vm2309, %v2308, 0
    %v2311 = vshrl.u32 %v2310, 5
    %v2312 = vand.u32 %v2310, 31
    %v2313 = vsub.s32 32, %v2312
    %v2314 = vshrl.u32 683565275, %v2313
    %v2315 = vshll.u32 683565275, %v2312
    %v2316 = vshrl.u32 2475754826, %v2313
    %v2317 = vor.u32 %v2315, %v2316
    %v2318 = vshll.u32 2475754826, %v2312
    %v2319 = vshrl.u32 2131351028, %v2313
    %v2320 = vor.u32 %v2318, %v2319
    %v2321 = vshll.u32 2131351028, %v2312
    %v2322 = vshrl.u32 2102212464, %v2313
    %v2323 = vor.u32 %v2321, %v2322
    %v2324 = vshll.u32 2102212464, %v2312
    %v2325 = vshrl.u32 920167782, %v2313
    %v2326 = vor.u32 %v2324, %v2325
    %v2327 = vshll.u32 920167782, %v2312
    %v2328 = vshrl.u32 1326507024, %v2313
    %v2329 = vor.u32 %v2327, %v2328
    %vm2330 = vcmp.lt.s32.totalorder %v2311, 1
    %vm2331 = vcmp.lt.s32.totalorder %v2311, 2
    %vm2332 = vcmp.lt.s32.totalorder %v2311, 3
    %vm2333 = vcmp.lt.s32.totalorder %v2311, 4
    %v2334 = vsel %vm2330, %v2314, %v2317
    %v2335 = vsel %vm2333, %v2323, 2102212464
    %v2336 = vsel %vm2332, %v2320, %v2335
    %v2337 = vsel %vm2331, %v2334, %v2336
    %v2338 = vsel %vm2330, %v2317, %v2320
    %v2339 = vsel %vm2333, %v2326, 920167782
    %v2340 = vsel %vm2332, %v2323, %v2339
    %v2341 = vsel %vm2331, %v2338, %v2340
    %v2342 = vsel %vm2330, %v2320, %v2323
    %v2343 = vsel %vm2333, %v2329, 1326507024
    %v2344 = vsel %vm2332, %v2326, %v2343
    %v2345 = vsel %vm2331, %v2342, %v2344
    %v2346 = vshll.u32 %v2306, 8
    %v2347 = vmul.u32.u64.compose %v2346, %v2345
    %v2348 = vextract.low.u32 %v2347
    %v2349 = vextract.high.u32 %v2347
    %v2350 = vmul.u32.u64.compose %v2346, %v2341
    %v2351 = vextract.low.u32 %v2350
    %v2352 = vextract.high.u32 %v2350
    %v2353 = vmul.u32 %v2346, %v2337
    %v2354 = vadd.s32 %v2349, %v2351
    %vm2355 = vc.u32 %v2349, %v2351
    %v2356 = vadd.s32 %v2352, 1
    %v2357 = vsel %vm2355, %v2356, %v2352
    %v2358 = vadd.s32 %v2353, %v2357
    %v2359 = vadd.s32 %v2358, 536870912
    %v2360 = vshrl.u32 %v2359, 30
    %v2361 = vshll.u32 %v2360, 30
    %v2362 = vsub.s32 %v2358, %v2361
    %vm2363 = vcmp.lt.s32.totalorder %v2362, 0
    %v2364 = vsub.s32 0, %v2362
    %v2365 = vsel %vm2363, %v2364, %v2362
    %v2366 = vclz %v2365
    %v2367 = vsub.s32 %v2366, 2
    %vm2368 = vcmp.gt.s32.totalorder 0, %v2367
    %v2369 = vsel %vm2368, 0, %v2367
    %v2370 = vsub.s32 32, %v2369
    %v2371 = vshll.u32 %v2362, %v2369
    %v2372 = vshrl.u32 %v2354, %v2370
    %v2373 = vor.u32 %v2371, %v2372
    %v2374 = vsub.s32 4294967266, %v2369
    %v2375 = vadd.s32 %v2374, 127
    %v2376 = vshll.u32 %v2375, 23
    %v2377 = vor.u32 4788187, %v2376
    %v2378 = vand.u32 2147483647, %v2377
    %v2380 = vcvt.s32.f32 %v2373
    %v2381 = vmul.f32 %v2380, %v2378
    %v2382 = vxor.u32 %v2381, 2147483648
    %v2383 = vsel %vm2300, %v2382, %v2381
    %v2384 = vsub.s32 4, %v2360
    %v2385 = vsel %vm2300, %v2384, %v2360
    %v2386 = vsel %vm2299, %v118, %v2383
    %v2387 = vsel %vm2299, 0, %v2385
    %v2388 = vcosq.f32.pop %v2386
    %v2389 = vsinq.f32.pop %v2386
    %vm2390 = vweird.f32 %v118
    %v2391 = vadd.s32 %v2387, 3
    %v2392 = vand.u32 %v2391, 3
    %vm2393 = vcmp.lt.s32.totalorder %v2392, 2
    %vm2394 = vcmp.eq.s32.totalorder %v2392, 0
    %v2395 = vxor.u32 %v2389, 2147483648
    %v2396 = vsel %vm2394, %v2388, %v2395
    %vm2397 = vcmp.eq.s32.totalorder %v2392, 2
    %v2398 = vxor.u32 %v2388, 2147483648
    %v2399 = vsel %vm2397, %v2398, %v2389
    %v2400 = vsel %vm2393, %v2396, %v2399
    %v2401 = vsel %vm2390, nan, %v2400
    %v2402 = vand.u32 2147483647, %v119
    %vm2403 = vcmp.le.f32.partialorder %v2402, 0.7853982
    %vm2404 = vcmp.lt.s32.totalorder %v119, 0
    %v2405 = vand.u32 %v119, 2139095040
    %v2406 = vshrl.u32 %v2405, 23
    %v2407 = vsub.s32 %v2406, 127
    %v2408 = vand.u32 2147483647, %v119
    %v2409 = vand.u32 %v2408, 8388607
    %v2410 = vor.u32 %v2409, 8388608
    %v2411 = vsub.s32 0, %v2410
    %v2412 = vadd.s32 %v2407, 1
    %vm2413 = vcmp.gt.s32.totalorder %v2412, 0
    %v2414 = vsel %vm2413, %v2412, 0
    %v2415 = vshrl.u32 %v2414, 5
    %v2416 = vand.u32 %v2414, 31
    %v2417 = vsub.s32 32, %v2416
    %v2418 = vshrl.u32 683565275, %v2417
    %v2419 = vshll.u32 683565275, %v2416
    %v2420 = vshrl.u32 2475754826, %v2417
    %v2421 = vor.u32 %v2419, %v2420
    %v2422 = vshll.u32 2475754826, %v2416
    %v2423 = vshrl.u32 2131351028, %v2417
    %v2424 = vor.u32 %v2422, %v2423
    %v2425 = vshll.u32 2131351028, %v2416
    %v2426 = vshrl.u32 2102212464, %v2417
    %v2427 = vor.u32 %v2425, %v2426
    %v2428 = vshll.u32 2102212464, %v2416
    %v2429 = vshrl.u32 920167782, %v2417
    %v2430 = vor.u32 %v2428, %v2429
    %v2431 = vshll.u32 920167782, %v2416
    %v2432 = vshrl.u32 1326507024, %v2417
    %v2433 = vor.u32 %v2431, %v2432
    %vm2434 = vcmp.lt.s32.totalorder %v2415, 1
    %vm2435 = vcmp.lt.s32.totalorder %v2415, 2
    %vm2436 = vcmp.lt.s32.totalorder %v2415, 3
    %vm2437 = vcmp.lt.s32.totalorder %v2415, 4
    %v2438 = vsel %vm2434, %v2418, %v2421
    %v2439 = vsel %vm2437, %v2427, 2102212464
    %v2440 = vsel %vm2436, %v2424, %v2439
    %v2441 = vsel %vm2435, %v2438, %v2440
    %v2442 = vsel %vm2434, %v2421, %v2424
    %v2443 = vsel %vm2437, %v2430, 920167782
    %v2444 = vsel %vm2436, %v2427, %v2443
    %v2445 = vsel %vm2435, %v2442, %v2444
    %v2446 = vsel %vm2434, %v2424, %v2427
    %v2447 = vsel %vm2437, %v2433, 1326507024
    %v2448 = vsel %vm2436, %v2430, %v2447
    %v2449 = vsel %vm2435, %v2446, %v2448
    %v2450 = vshll.u32 %v2410, 8
    %v2451 = vmul.u32.u64.compose %v2450, %v2449
    %v2452 = vextract.low.u32 %v2451
    %v2453 = vextract.high.u32 %v2451
    %v2454 = vmul.u32.u64.compose %v2450, %v2445
    %v2455 = vextract.low.u32 %v2454
    %v2456 = vextract.high.u32 %v2454
    %v2457 = vmul.u32 %v2450, %v2441
    %v2458 = vadd.s32 %v2453, %v2455
    %vm2459 = vc.u32 %v2453, %v2455
    %v2460 = vadd.s32 %v2456, 1
    %v2461 = vsel %vm2459, %v2460, %v2456
    %v2462 = vadd.s32 %v2457, %v2461
    %v2463 = vadd.s32 %v2462, 536870912
    %v2464 = vshrl.u32 %v2463, 30
    %v2465 = vshll.u32 %v2464, 30
    %v2466 = vsub.s32 %v2462, %v2465
    %vm2467 = vcmp.lt.s32.totalorder %v2466, 0
    %v2468 = vsub.s32 0, %v2466
    %v2469 = vsel %vm2467, %v2468, %v2466
    %v2470 = vclz %v2469
    %v2471 = vsub.s32 %v2470, 2
    %vm2472 = vcmp.gt.s32.totalorder 0, %v2471
    %v2473 = vsel %vm2472, 0, %v2471
    %v2474 = vsub.s32 32, %v2473
    %v2475 = vshll.u32 %v2466, %v2473
    %v2476 = vshrl.u32 %v2458, %v2474
    %v2477 = vor.u32 %v2475, %v2476
    %v2478 = vsub.s32 4294967266, %v2473
    %v2479 = vadd.s32 %v2478, 127
    %v2480 = vshll.u32 %v2479, 23
    %v2481 = vor.u32 4788187, %v2480
    %v2482 = vand.u32 2147483647, %v2481
    %v2484 = vcvt.s32.f32 %v2477
    %v2485 = vmul.f32 %v2484, %v2482
    %v2486 = vxor.u32 %v2485, 2147483648
    %v2487 = vsel %vm2404, %v2486, %v2485
    %v2488 = vsub.s32 4, %v2464
    %v2489 = vsel %vm2404, %v2488, %v2464
    %v2490 = vsel %vm2403, %v119, %v2487
    %v2491 = vsel %vm2403, 0, %v2489
    %v2492 = vcosq.f32.pop %v2490
    %v2493 = vsinq.f32.pop %v2490
    %vm2494 = vweird.f32 %v119
    %v2495 = vadd.s32 %v2491, 3
    %v2496 = vand.u32 %v2495, 3
    %vm2497 = vcmp.lt.s32.totalorder %v2496, 2
    %vm2498 = vcmp.eq.s32.totalorder %v2496, 0
    %v2499 = vxor.u32 %v2493, 2147483648
    %v2500 = vsel %vm2498, %v2492, %v2499
    %vm2501 = vcmp.eq.s32.totalorder %v2496, 2
    %v2502 = vxor.u32 %v2492, 2147483648
    %v2503 = vsel %vm2501, %v2502, %v2493
    %v2504 = vsel %vm2497, %v2500, %v2503
    %v2505 = vsel %vm2494, nan, %v2504
    %v2506 = vand.u32 2147483647, %v120
    %vm2507 = vcmp.le.f32.partialorder %v2506, 0.7853982
    %vm2508 = vcmp.lt.s32.totalorder %v120, 0
    %v2509 = vand.u32 %v120, 2139095040
    %v2510 = vshrl.u32 %v2509, 23
    %v2511 = vsub.s32 %v2510, 127
    %v2512 = vand.u32 2147483647, %v120
    %v2513 = vand.u32 %v2512, 8388607
    %v2514 = vor.u32 %v2513, 8388608
    %v2515 = vsub.s32 0, %v2514
    %v2516 = vadd.s32 %v2511, 1
    %vm2517 = vcmp.gt.s32.totalorder %v2516, 0
    %v2518 = vsel %vm2517, %v2516, 0
    %v2519 = vshrl.u32 %v2518, 5
    %v2520 = vand.u32 %v2518, 31
    %v2521 = vsub.s32 32, %v2520
    %v2522 = vshrl.u32 683565275, %v2521
    %v2523 = vshll.u32 683565275, %v2520
    %v2524 = vshrl.u32 2475754826, %v2521
    %v2525 = vor.u32 %v2523, %v2524
    %v2526 = vshll.u32 2475754826, %v2520
    %v2527 = vshrl.u32 2131351028, %v2521
    %v2528 = vor.u32 %v2526, %v2527
    %v2529 = vshll.u32 2131351028, %v2520
    %v2530 = vshrl.u32 2102212464, %v2521
    %v2531 = vor.u32 %v2529, %v2530
    %v2532 = vshll.u32 2102212464, %v2520
    %v2533 = vshrl.u32 920167782, %v2521
    %v2534 = vor.u32 %v2532, %v2533
    %v2535 = vshll.u32 920167782, %v2520
    %v2536 = vshrl.u32 1326507024, %v2521
    %v2537 = vor.u32 %v2535, %v2536
    %vm2538 = vcmp.lt.s32.totalorder %v2519, 1
    %vm2539 = vcmp.lt.s32.totalorder %v2519, 2
    %vm2540 = vcmp.lt.s32.totalorder %v2519, 3
    %vm2541 = vcmp.lt.s32.totalorder %v2519, 4
    %v2542 = vsel %vm2538, %v2522, %v2525
    %v2543 = vsel %vm2541, %v2531, 2102212464
    %v2544 = vsel %vm2540, %v2528, %v2543
    %v2545 = vsel %vm2539, %v2542, %v2544
    %v2546 = vsel %vm2538, %v2525, %v2528
    %v2547 = vsel %vm2541, %v2534, 920167782
    %v2548 = vsel %vm2540, %v2531, %v2547
    %v2549 = vsel %vm2539, %v2546, %v2548
    %v2550 = vsel %vm2538, %v2528, %v2531
    %v2551 = vsel %vm2541, %v2537, 1326507024
    %v2552 = vsel %vm2540, %v2534, %v2551
    %v2553 = vsel %vm2539, %v2550, %v2552
    %v2554 = vshll.u32 %v2514, 8
    %v2555 = vmul.u32.u64.compose %v2554, %v2553
    %v2556 = vextract.low.u32 %v2555
    %v2557 = vextract.high.u32 %v2555
    %v2558 = vmul.u32.u64.compose %v2554, %v2549
    %v2559 = vextract.low.u32 %v2558
    %v2560 = vextract.high.u32 %v2558
    %v2561 = vmul.u32 %v2554, %v2545
    %v2562 = vadd.s32 %v2557, %v2559
    %vm2563 = vc.u32 %v2557, %v2559
    %v2564 = vadd.s32 %v2560, 1
    %v2565 = vsel %vm2563, %v2564, %v2560
    %v2566 = vadd.s32 %v2561, %v2565
    %v2567 = vadd.s32 %v2566, 536870912
    %v2568 = vshrl.u32 %v2567, 30
    %v2569 = vshll.u32 %v2568, 30
    %v2570 = vsub.s32 %v2566, %v2569
    %vm2571 = vcmp.lt.s32.totalorder %v2570, 0
    %v2572 = vsub.s32 0, %v2570
    %v2573 = vsel %vm2571, %v2572, %v2570
    %v2574 = vclz %v2573
    %v2575 = vsub.s32 %v2574, 2
    %vm2576 = vcmp.gt.s32.totalorder 0, %v2575
    %v2577 = vsel %vm2576, 0, %v2575
    %v2578 = vsub.s32 32, %v2577
    %v2579 = vshll.u32 %v2570, %v2577
    %v2580 = vshrl.u32 %v2562, %v2578
    %v2581 = vor.u32 %v2579, %v2580
    %v2582 = vsub.s32 4294967266, %v2577
    %v2583 = vadd.s32 %v2582, 127
    %v2584 = vshll.u32 %v2583, 23
    %v2585 = vor.u32 4788187, %v2584
    %v2586 = vand.u32 2147483647, %v2585
    %v2588 = vcvt.s32.f32 %v2581
    %v2589 = vmul.f32 %v2588, %v2586
    %v2590 = vxor.u32 %v2589, 2147483648
    %v2591 = vsel %vm2508, %v2590, %v2589
    %v2592 = vsub.s32 4, %v2568
    %v2593 = vsel %vm2508, %v2592, %v2568
    %v2594 = vsel %vm2507, %v120, %v2591
    %v2595 = vsel %vm2507, 0, %v2593
    %v2596 = vcosq.f32.pop %v2594
    %v2597 = vsinq.f32.pop %v2594
    %vm2598 = vweird.f32 %v120
    %v2599 = vadd.s32 %v2595, 3
    %v2600 = vand.u32 %v2599, 3
    %vm2601 = vcmp.lt.s32.totalorder %v2600, 2
    %vm2602 = vcmp.eq.s32.totalorder %v2600, 0
    %v2603 = vxor.u32 %v2597, 2147483648
    %v2604 = vsel %vm2602, %v2596, %v2603
    %vm2605 = vcmp.eq.s32.totalorder %v2600, 2
    %v2606 = vxor.u32 %v2596, 2147483648
    %v2607 = vsel %vm2605, %v2606, %v2597
    %v2608 = vsel %vm2601, %v2604, %v2607
    %v2609 = vsel %vm2598, nan, %v2608
    %v2610 = vand.u32 2147483647, %v121
    %vm2611 = vcmp.le.f32.partialorder %v2610, 0.7853982
    %vm2612 = vcmp.lt.s32.totalorder %v121, 0
    %v2613 = vand.u32 %v121, 2139095040
    %v2614 = vshrl.u32 %v2613, 23
    %v2615 = vsub.s32 %v2614, 127
    %v2616 = vand.u32 2147483647, %v121
    %v2617 = vand.u32 %v2616, 8388607
    %v2618 = vor.u32 %v2617, 8388608
    %v2619 = vsub.s32 0, %v2618
    %v2620 = vadd.s32 %v2615, 1
    %vm2621 = vcmp.gt.s32.totalorder %v2620, 0
    %v2622 = vsel %vm2621, %v2620, 0
    %v2623 = vshrl.u32 %v2622, 5
    %v2624 = vand.u32 %v2622, 31
    %v2625 = vsub.s32 32, %v2624
    %v2626 = vshrl.u32 683565275, %v2625
    %v2627 = vshll.u32 683565275, %v2624
    %v2628 = vshrl.u32 2475754826, %v2625
    %v2629 = vor.u32 %v2627, %v2628
    %v2630 = vshll.u32 2475754826, %v2624
    %v2631 = vshrl.u32 2131351028, %v2625
    %v2632 = vor.u32 %v2630, %v2631
    %v2633 = vshll.u32 2131351028, %v2624
    %v2634 = vshrl.u32 2102212464, %v2625
    %v2635 = vor.u32 %v2633, %v2634
    %v2636 = vshll.u32 2102212464, %v2624
    %v2637 = vshrl.u32 920167782, %v2625
    %v2638 = vor.u32 %v2636, %v2637
    %v2639 = vshll.u32 920167782, %v2624
    %v2640 = vshrl.u32 1326507024, %v2625
    %v2641 = vor.u32 %v2639, %v2640
    %vm2642 = vcmp.lt.s32.totalorder %v2623, 1
    %vm2643 = vcmp.lt.s32.totalorder %v2623, 2
    %vm2644 = vcmp.lt.s32.totalorder %v2623, 3
    %vm2645 = vcmp.lt.s32.totalorder %v2623, 4
    %v2646 = vsel %vm2642, %v2626, %v2629
    %v2647 = vsel %vm2645, %v2635, 2102212464
    %v2648 = vsel %vm2644, %v2632, %v2647
    %v2649 = vsel %vm2643, %v2646, %v2648
    %v2650 = vsel %vm2642, %v2629, %v2632
    %v2651 = vsel %vm2645, %v2638, 920167782
    %v2652 = vsel %vm2644, %v2635, %v2651
    %v2653 = vsel %vm2643, %v2650, %v2652
    %v2654 = vsel %vm2642, %v2632, %v2635
    %v2655 = vsel %vm2645, %v2641, 1326507024
    %v2656 = vsel %vm2644, %v2638, %v2655
    %v2657 = vsel %vm2643, %v2654, %v2656
    %v2658 = vshll.u32 %v2618, 8
    %v2659 = vmul.u32.u64.compose %v2658, %v2657
    %v2660 = vextract.low.u32 %v2659
    %v2661 = vextract.high.u32 %v2659
    %v2662 = vmul.u32.u64.compose %v2658, %v2653
    %v2663 = vextract.low.u32 %v2662
    %v2664 = vextract.high.u32 %v2662
    %v2665 = vmul.u32 %v2658, %v2649
    %v2666 = vadd.s32 %v2661, %v2663
    %vm2667 = vc.u32 %v2661, %v2663
    %v2668 = vadd.s32 %v2664, 1
    %v2669 = vsel %vm2667, %v2668, %v2664
    %v2670 = vadd.s32 %v2665, %v2669
    %v2671 = vadd.s32 %v2670, 536870912
    %v2672 = vshrl.u32 %v2671, 30
    %v2673 = vshll.u32 %v2672, 30
    %v2674 = vsub.s32 %v2670, %v2673
    %vm2675 = vcmp.lt.s32.totalorder %v2674, 0
    %v2676 = vsub.s32 0, %v2674
    %v2677 = vsel %vm2675, %v2676, %v2674
    %v2678 = vclz %v2677
    %v2679 = vsub.s32 %v2678, 2
    %vm2680 = vcmp.gt.s32.totalorder 0, %v2679
    %v2681 = vsel %vm2680, 0, %v2679
    %v2682 = vsub.s32 32, %v2681
    %v2683 = vshll.u32 %v2674, %v2681
    %v2684 = vshrl.u32 %v2666, %v2682
    %v2685 = vor.u32 %v2683, %v2684
    %v2686 = vsub.s32 4294967266, %v2681
    %v2687 = vadd.s32 %v2686, 127
    %v2688 = vshll.u32 %v2687, 23
    %v2689 = vor.u32 4788187, %v2688
    %v2690 = vand.u32 2147483647, %v2689
    %v2692 = vcvt.s32.f32 %v2685
    %v2693 = vmul.f32 %v2692, %v2690
    %v2694 = vxor.u32 %v2693, 2147483648
    %v2695 = vsel %vm2612, %v2694, %v2693
    %v2696 = vsub.s32 4, %v2672
    %v2697 = vsel %vm2612, %v2696, %v2672
    %v2698 = vsel %vm2611, %v121, %v2695
    %v2699 = vsel %vm2611, 0, %v2697
    %v2700 = vcosq.f32.pop %v2698
    %v2701 = vsinq.f32.pop %v2698
    %vm2702 = vweird.f32 %v121
    %v2703 = vadd.s32 %v2699, 3
    %v2704 = vand.u32 %v2703, 3
    %vm2705 = vcmp.lt.s32.totalorder %v2704, 2
    %vm2706 = vcmp.eq.s32.totalorder %v2704, 0
    %v2707 = vxor.u32 %v2701, 2147483648
    %v2708 = vsel %vm2706, %v2700, %v2707
    %vm2709 = vcmp.eq.s32.totalorder %v2704, 2
    %v2710 = vxor.u32 %v2700, 2147483648
    %v2711 = vsel %vm2709, %v2710, %v2701
    %v2712 = vsel %vm2705, %v2708, %v2711
    %v2713 = vsel %vm2702, nan, %v2712
    %v2714 = vand.u32 2147483647, %v122
    %vm2715 = vcmp.le.f32.partialorder %v2714, 0.7853982
    %vm2716 = vcmp.lt.s32.totalorder %v122, 0
    %v2717 = vand.u32 %v122, 2139095040
    %v2718 = vshrl.u32 %v2717, 23
    %v2719 = vsub.s32 %v2718, 127
    %v2720 = vand.u32 2147483647, %v122
    %v2721 = vand.u32 %v2720, 8388607
    %v2722 = vor.u32 %v2721, 8388608
    %v2723 = vsub.s32 0, %v2722
    %v2724 = vadd.s32 %v2719, 1
    %vm2725 = vcmp.gt.s32.totalorder %v2724, 0
    %v2726 = vsel %vm2725, %v2724, 0
    %v2727 = vshrl.u32 %v2726, 5
    %v2728 = vand.u32 %v2726, 31
    %v2729 = vsub.s32 32, %v2728
    %v2730 = vshrl.u32 683565275, %v2729
    %v2731 = vshll.u32 683565275, %v2728
    %v2732 = vshrl.u32 2475754826, %v2729
    %v2733 = vor.u32 %v2731, %v2732
    %v2734 = vshll.u32 2475754826, %v2728
    %v2735 = vshrl.u32 2131351028, %v2729
    %v2736 = vor.u32 %v2734, %v2735
    %v2737 = vshll.u32 2131351028, %v2728
    %v2738 = vshrl.u32 2102212464, %v2729
    %v2739 = vor.u32 %v2737, %v2738
    %v2740 = vshll.u32 2102212464, %v2728
    %v2741 = vshrl.u32 920167782, %v2729
    %v2742 = vor.u32 %v2740, %v2741
    %v2743 = vshll.u32 920167782, %v2728
    %v2744 = vshrl.u32 1326507024, %v2729
    %v2745 = vor.u32 %v2743, %v2744
    %vm2746 = vcmp.lt.s32.totalorder %v2727, 1
    %vm2747 = vcmp.lt.s32.totalorder %v2727, 2
    %vm2748 = vcmp.lt.s32.totalorder %v2727, 3
    %vm2749 = vcmp.lt.s32.totalorder %v2727, 4
    %v2750 = vsel %vm2746, %v2730, %v2733
    %v2751 = vsel %vm2749, %v2739, 2102212464
    %v2752 = vsel %vm2748, %v2736, %v2751
    %v2753 = vsel %vm2747, %v2750, %v2752
    %v2754 = vsel %vm2746, %v2733, %v2736
    %v2755 = vsel %vm2749, %v2742, 920167782
    %v2756 = vsel %vm2748, %v2739, %v2755
    %v2757 = vsel %vm2747, %v2754, %v2756
    %v2758 = vsel %vm2746, %v2736, %v2739
    %v2759 = vsel %vm2749, %v2745, 1326507024
    %v2760 = vsel %vm2748, %v2742, %v2759
    %v2761 = vsel %vm2747, %v2758, %v2760
    %v2762 = vshll.u32 %v2722, 8
    %v2763 = vmul.u32.u64.compose %v2762, %v2761
    %v2764 = vextract.low.u32 %v2763
    %v2765 = vextract.high.u32 %v2763
    %v2766 = vmul.u32.u64.compose %v2762, %v2757
    %v2767 = vextract.low.u32 %v2766
    %v2768 = vextract.high.u32 %v2766
    %v2769 = vmul.u32 %v2762, %v2753
    %v2770 = vadd.s32 %v2765, %v2767
    %vm2771 = vc.u32 %v2765, %v2767
    %v2772 = vadd.s32 %v2768, 1
    %v2773 = vsel %vm2771, %v2772, %v2768
    %v2774 = vadd.s32 %v2769, %v2773
    %v2775 = vadd.s32 %v2774, 536870912
    %v2776 = vshrl.u32 %v2775, 30
    %v2777 = vshll.u32 %v2776, 30
    %v2778 = vsub.s32 %v2774, %v2777
    %vm2779 = vcmp.lt.s32.totalorder %v2778, 0
    %v2780 = vsub.s32 0, %v2778
    %v2781 = vsel %vm2779, %v2780, %v2778
    %v2782 = vclz %v2781
    %v2783 = vsub.s32 %v2782, 2
    %vm2784 = vcmp.gt.s32.totalorder 0, %v2783
    %v2785 = vsel %vm2784, 0, %v2783
    %v2786 = vsub.s32 32, %v2785
    %v2787 = vshll.u32 %v2778, %v2785
    %v2788 = vshrl.u32 %v2770, %v2786
    %v2789 = vor.u32 %v2787, %v2788
    %v2790 = vsub.s32 4294967266, %v2785
    %v2791 = vadd.s32 %v2790, 127
    %v2792 = vshll.u32 %v2791, 23
    %v2793 = vor.u32 4788187, %v2792
    %v2794 = vand.u32 2147483647, %v2793
    %v2796 = vcvt.s32.f32 %v2789
    %v2797 = vmul.f32 %v2796, %v2794
    %v2798 = vxor.u32 %v2797, 2147483648
    %v2799 = vsel %vm2716, %v2798, %v2797
    %v2800 = vsub.s32 4, %v2776
    %v2801 = vsel %vm2716, %v2800, %v2776
    %v2802 = vsel %vm2715, %v122, %v2799
    %v2803 = vsel %vm2715, 0, %v2801
    %v2804 = vcosq.f32.pop %v2802
    %v2805 = vsinq.f32.pop %v2802
    %vm2806 = vweird.f32 %v122
    %v2807 = vadd.s32 %v2803, 3
    %v2808 = vand.u32 %v2807, 3
    %vm2809 = vcmp.lt.s32.totalorder %v2808, 2
    %vm2810 = vcmp.eq.s32.totalorder %v2808, 0
    %v2811 = vxor.u32 %v2805, 2147483648
    %v2812 = vsel %vm2810, %v2804, %v2811
    %vm2813 = vcmp.eq.s32.totalorder %v2808, 2
    %v2814 = vxor.u32 %v2804, 2147483648
    %v2815 = vsel %vm2813, %v2814, %v2805
    %v2816 = vsel %vm2809, %v2812, %v2815
    %v2817 = vsel %vm2806, nan, %v2816
    %v2818 = vand.u32 2147483647, %v123
    %vm2819 = vcmp.le.f32.partialorder %v2818, 0.7853982
    %vm2820 = vcmp.lt.s32.totalorder %v123, 0
    %v2821 = vand.u32 %v123, 2139095040
    %v2822 = vshrl.u32 %v2821, 23
    %v2823 = vsub.s32 %v2822, 127
    %v2824 = vand.u32 2147483647, %v123
    %v2825 = vand.u32 %v2824, 8388607
    %v2826 = vor.u32 %v2825, 8388608
    %v2827 = vsub.s32 0, %v2826
    %v2828 = vadd.s32 %v2823, 1
    %vm2829 = vcmp.gt.s32.totalorder %v2828, 0
    %v2830 = vsel %vm2829, %v2828, 0
    %v2831 = vshrl.u32 %v2830, 5
    %v2832 = vand.u32 %v2830, 31
    %v2833 = vsub.s32 32, %v2832
    %v2834 = vshrl.u32 683565275, %v2833
    %v2835 = vshll.u32 683565275, %v2832
    %v2836 = vshrl.u32 2475754826, %v2833
    %v2837 = vor.u32 %v2835, %v2836
    %v2838 = vshll.u32 2475754826, %v2832
    %v2839 = vshrl.u32 2131351028, %v2833
    %v2840 = vor.u32 %v2838, %v2839
    %v2841 = vshll.u32 2131351028, %v2832
    %v2842 = vshrl.u32 2102212464, %v2833
    %v2843 = vor.u32 %v2841, %v2842
    %v2844 = vshll.u32 2102212464, %v2832
    %v2845 = vshrl.u32 920167782, %v2833
    %v2846 = vor.u32 %v2844, %v2845
    %v2847 = vshll.u32 920167782, %v2832
    %v2848 = vshrl.u32 1326507024, %v2833
    %v2849 = vor.u32 %v2847, %v2848
    %vm2850 = vcmp.lt.s32.totalorder %v2831, 1
    %vm2851 = vcmp.lt.s32.totalorder %v2831, 2
    %vm2852 = vcmp.lt.s32.totalorder %v2831, 3
    %vm2853 = vcmp.lt.s32.totalorder %v2831, 4
    %v2854 = vsel %vm2850, %v2834, %v2837
    %v2855 = vsel %vm2853, %v2843, 2102212464
    %v2856 = vsel %vm2852, %v2840, %v2855
    %v2857 = vsel %vm2851, %v2854, %v2856
    %v2858 = vsel %vm2850, %v2837, %v2840
    %v2859 = vsel %vm2853, %v2846, 920167782
    %v2860 = vsel %vm2852, %v2843, %v2859
    %v2861 = vsel %vm2851, %v2858, %v2860
    %v2862 = vsel %vm2850, %v2840, %v2843
    %v2863 = vsel %vm2853, %v2849, 1326507024
    %v2864 = vsel %vm2852, %v2846, %v2863
    %v2865 = vsel %vm2851, %v2862, %v2864
    %v2866 = vshll.u32 %v2826, 8
    %v2867 = vmul.u32.u64.compose %v2866, %v2865
    %v2868 = vextract.low.u32 %v2867
    %v2869 = vextract.high.u32 %v2867
    %v2870 = vmul.u32.u64.compose %v2866, %v2861
    %v2871 = vextract.low.u32 %v2870
    %v2872 = vextract.high.u32 %v2870
    %v2873 = vmul.u32 %v2866, %v2857
    %v2874 = vadd.s32 %v2869, %v2871
    %vm2875 = vc.u32 %v2869, %v2871
    %v2876 = vadd.s32 %v2872, 1
    %v2877 = vsel %vm2875, %v2876, %v2872
    %v2878 = vadd.s32 %v2873, %v2877
    %v2879 = vadd.s32 %v2878, 536870912
    %v2880 = vshrl.u32 %v2879, 30
    %v2881 = vshll.u32 %v2880, 30
    %v2882 = vsub.s32 %v2878, %v2881
    %vm2883 = vcmp.lt.s32.totalorder %v2882, 0
    %v2884 = vsub.s32 0, %v2882
    %v2885 = vsel %vm2883, %v2884, %v2882
    %v2886 = vclz %v2885
    %v2887 = vsub.s32 %v2886, 2
    %vm2888 = vcmp.gt.s32.totalorder 0, %v2887
    %v2889 = vsel %vm2888, 0, %v2887
    %v2890 = vsub.s32 32, %v2889
    %v2891 = vshll.u32 %v2882, %v2889
    %v2892 = vshrl.u32 %v2874, %v2890
    %v2893 = vor.u32 %v2891, %v2892
    %v2894 = vsub.s32 4294967266, %v2889
    %v2895 = vadd.s32 %v2894, 127
    %v2896 = vshll.u32 %v2895, 23
    %v2897 = vor.u32 4788187, %v2896
    %v2898 = vand.u32 2147483647, %v2897
    %v2900 = vcvt.s32.f32 %v2893
    %v2901 = vmul.f32 %v2900, %v2898
    %v2902 = vxor.u32 %v2901, 2147483648
    %v2903 = vsel %vm2820, %v2902, %v2901
    %v2904 = vsub.s32 4, %v2880
    %v2905 = vsel %vm2820, %v2904, %v2880
    %v2906 = vsel %vm2819, %v123, %v2903
    %v2907 = vsel %vm2819, 0, %v2905
    %v2908 = vcosq.f32.pop %v2906
    %v2909 = vsinq.f32.pop %v2906
    %vm2910 = vweird.f32 %v123
    %v2911 = vadd.s32 %v2907, 3
    %v2912 = vand.u32 %v2911, 3
    %vm2913 = vcmp.lt.s32.totalorder %v2912, 2
    %vm2914 = vcmp.eq.s32.totalorder %v2912, 0
    %v2915 = vxor.u32 %v2909, 2147483648
    %v2916 = vsel %vm2914, %v2908, %v2915
    %vm2917 = vcmp.eq.s32.totalorder %v2912, 2
    %v2918 = vxor.u32 %v2908, 2147483648
    %v2919 = vsel %vm2917, %v2918, %v2909
    %v2920 = vsel %vm2913, %v2916, %v2919
    %v2921 = vsel %vm2910, nan, %v2920
    %v2922 = vand.u32 2147483647, %v124
    %vm2923 = vcmp.le.f32.partialorder %v2922, 0.7853982
    %vm2924 = vcmp.lt.s32.totalorder %v124, 0
    %v2925 = vand.u32 %v124, 2139095040
    %v2926 = vshrl.u32 %v2925, 23
    %v2927 = vsub.s32 %v2926, 127
    %v2928 = vand.u32 2147483647, %v124
    %v2929 = vand.u32 %v2928, 8388607
    %v2930 = vor.u32 %v2929, 8388608
    %v2931 = vsub.s32 0, %v2930
    %v2932 = vadd.s32 %v2927, 1
    %vm2933 = vcmp.gt.s32.totalorder %v2932, 0
    %v2934 = vsel %vm2933, %v2932, 0
    %v2935 = vshrl.u32 %v2934, 5
    %v2936 = vand.u32 %v2934, 31
    %v2937 = vsub.s32 32, %v2936
    %v2938 = vshrl.u32 683565275, %v2937
    %v2939 = vshll.u32 683565275, %v2936
    %v2940 = vshrl.u32 2475754826, %v2937
    %v2941 = vor.u32 %v2939, %v2940
    %v2942 = vshll.u32 2475754826, %v2936
    %v2943 = vshrl.u32 2131351028, %v2937
    %v2944 = vor.u32 %v2942, %v2943
    %v2945 = vshll.u32 2131351028, %v2936
    %v2946 = vshrl.u32 2102212464, %v2937
    %v2947 = vor.u32 %v2945, %v2946
    %v2948 = vshll.u32 2102212464, %v2936
    %v2949 = vshrl.u32 920167782, %v2937
    %v2950 = vor.u32 %v2948, %v2949
    %v2951 = vshll.u32 920167782, %v2936
    %v2952 = vshrl.u32 1326507024, %v2937
    %v2953 = vor.u32 %v2951, %v2952
    %vm2954 = vcmp.lt.s32.totalorder %v2935, 1
    %vm2955 = vcmp.lt.s32.totalorder %v2935, 2
    %vm2956 = vcmp.lt.s32.totalorder %v2935, 3
    %vm2957 = vcmp.lt.s32.totalorder %v2935, 4
    %v2958 = vsel %vm2954, %v2938, %v2941
    %v2959 = vsel %vm2957, %v2947, 2102212464
    %v2960 = vsel %vm2956, %v2944, %v2959
    %v2961 = vsel %vm2955, %v2958, %v2960
    %v2962 = vsel %vm2954, %v2941, %v2944
    %v2963 = vsel %vm2957, %v2950, 920167782
    %v2964 = vsel %vm2956, %v2947, %v2963
    %v2965 = vsel %vm2955, %v2962, %v2964
    %v2966 = vsel %vm2954, %v2944, %v2947
    %v2967 = vsel %vm2957, %v2953, 1326507024
    %v2968 = vsel %vm2956, %v2950, %v2967
    %v2969 = vsel %vm2955, %v2966, %v2968
    %v2970 = vshll.u32 %v2930, 8
    %v2971 = vmul.u32.u64.compose %v2970, %v2969
    %v2972 = vextract.low.u32 %v2971
    %v2973 = vextract.high.u32 %v2971
    %v2974 = vmul.u32.u64.compose %v2970, %v2965
    %v2975 = vextract.low.u32 %v2974
    %v2976 = vextract.high.u32 %v2974
    %v2977 = vmul.u32 %v2970, %v2961
    %v2978 = vadd.s32 %v2973, %v2975
    %vm2979 = vc.u32 %v2973, %v2975
    %v2980 = vadd.s32 %v2976, 1
    %v2981 = vsel %vm2979, %v2980, %v2976
    %v2982 = vadd.s32 %v2977, %v2981
    %v2983 = vadd.s32 %v2982, 536870912
    %v2984 = vshrl.u32 %v2983, 30
    %v2985 = vshll.u32 %v2984, 30
    %v2986 = vsub.s32 %v2982, %v2985
    %vm2987 = vcmp.lt.s32.totalorder %v2986, 0
    %v2988 = vsub.s32 0, %v2986
    %v2989 = vsel %vm2987, %v2988, %v2986
    %v2990 = vclz %v2989
    %v2991 = vsub.s32 %v2990, 2
    %vm2992 = vcmp.gt.s32.totalorder 0, %v2991
    %v2993 = vsel %vm2992, 0, %v2991
    %v2994 = vsub.s32 32, %v2993
    %v2995 = vshll.u32 %v2986, %v2993
    %v2996 = vshrl.u32 %v2978, %v2994
    %v2997 = vor.u32 %v2995, %v2996
    %v2998 = vsub.s32 4294967266, %v2993
    %v2999 = vadd.s32 %v2998, 127
    %v3000 = vshll.u32 %v2999, 23
    %v3001 = vor.u32 4788187, %v3000
    %v3002 = vand.u32 2147483647, %v3001
    %v3004 = vcvt.s32.f32 %v2997
    %v3005 = vmul.f32 %v3004, %v3002
    %v3006 = vxor.u32 %v3005, 2147483648
    %v3007 = vsel %vm2924, %v3006, %v3005
    %v3008 = vsub.s32 4, %v2984
    %v3009 = vsel %vm2924, %v3008, %v2984
    %v3010 = vsel %vm2923, %v124, %v3007
    %v3011 = vsel %vm2923, 0, %v3009
    %v3012 = vcosq.f32.pop %v3010
    %v3013 = vsinq.f32.pop %v3010
    %vm3014 = vweird.f32 %v124
    %v3015 = vadd.s32 %v3011, 3
    %v3016 = vand.u32 %v3015, 3
    %vm3017 = vcmp.lt.s32.totalorder %v3016, 2
    %vm3018 = vcmp.eq.s32.totalorder %v3016, 0
    %v3019 = vxor.u32 %v3013, 2147483648
    %v3020 = vsel %vm3018, %v3012, %v3019
    %vm3021 = vcmp.eq.s32.totalorder %v3016, 2
    %v3022 = vxor.u32 %v3012, 2147483648
    %v3023 = vsel %vm3021, %v3022, %v3013
    %v3024 = vsel %vm3017, %v3020, %v3023
    %v3025 = vsel %vm3014, nan, %v3024
    %v3026 = vand.u32 2147483647, %v125
    %vm3027 = vcmp.le.f32.partialorder %v3026, 0.7853982
    %vm3028 = vcmp.lt.s32.totalorder %v125, 0
    %v3029 = vand.u32 %v125, 2139095040
    %v3030 = vshrl.u32 %v3029, 23
    %v3031 = vsub.s32 %v3030, 127
    %v3032 = vand.u32 2147483647, %v125
    %v3033 = vand.u32 %v3032, 8388607
    %v3034 = vor.u32 %v3033, 8388608
    %v3035 = vsub.s32 0, %v3034
    %v3036 = vadd.s32 %v3031, 1
    %vm3037 = vcmp.gt.s32.totalorder %v3036, 0
    %v3038 = vsel %vm3037, %v3036, 0
    %v3039 = vshrl.u32 %v3038, 5
    %v3040 = vand.u32 %v3038, 31
    %v3041 = vsub.s32 32, %v3040
    %v3042 = vshrl.u32 683565275, %v3041
    %v3043 = vshll.u32 683565275, %v3040
    %v3044 = vshrl.u32 2475754826, %v3041
    %v3045 = vor.u32 %v3043, %v3044
    %v3046 = vshll.u32 2475754826, %v3040
    %v3047 = vshrl.u32 2131351028, %v3041
    %v3048 = vor.u32 %v3046, %v3047
    %v3049 = vshll.u32 2131351028, %v3040
    %v3050 = vshrl.u32 2102212464, %v3041
    %v3051 = vor.u32 %v3049, %v3050
    %v3052 = vshll.u32 2102212464, %v3040
    %v3053 = vshrl.u32 920167782, %v3041
    %v3054 = vor.u32 %v3052, %v3053
    %v3055 = vshll.u32 920167782, %v3040
    %v3056 = vshrl.u32 1326507024, %v3041
    %v3057 = vor.u32 %v3055, %v3056
    %vm3058 = vcmp.lt.s32.totalorder %v3039, 1
    %vm3059 = vcmp.lt.s32.totalorder %v3039, 2
    %vm3060 = vcmp.lt.s32.totalorder %v3039, 3
    %vm3061 = vcmp.lt.s32.totalorder %v3039, 4
    %v3062 = vsel %vm3058, %v3042, %v3045
    %v3063 = vsel %vm3061, %v3051, 2102212464
    %v3064 = vsel %vm3060, %v3048, %v3063
    %v3065 = vsel %vm3059, %v3062, %v3064
    %v3066 = vsel %vm3058, %v3045, %v3048
    %v3067 = vsel %vm3061, %v3054, 920167782
    %v3068 = vsel %vm3060, %v3051, %v3067
    %v3069 = vsel %vm3059, %v3066, %v3068
    %v3070 = vsel %vm3058, %v3048, %v3051
    %v3071 = vsel %vm3061, %v3057, 1326507024
    %v3072 = vsel %vm3060, %v3054, %v3071
    %v3073 = vsel %vm3059, %v3070, %v3072
    %v3074 = vshll.u32 %v3034, 8
    %v3075 = vmul.u32.u64.compose %v3074, %v3073
    %v3076 = vextract.low.u32 %v3075
    %v3077 = vextract.high.u32 %v3075
    %v3078 = vmul.u32.u64.compose %v3074, %v3069
    %v3079 = vextract.low.u32 %v3078
    %v3080 = vextract.high.u32 %v3078
    %v3081 = vmul.u32 %v3074, %v3065
    %v3082 = vadd.s32 %v3077, %v3079
    %vm3083 = vc.u32 %v3077, %v3079
    %v3084 = vadd.s32 %v3080, 1
    %v3085 = vsel %vm3083, %v3084, %v3080
    %v3086 = vadd.s32 %v3081, %v3085
    %v3087 = vadd.s32 %v3086, 536870912
    %v3088 = vshrl.u32 %v3087, 30
    %v3089 = vshll.u32 %v3088, 30
    %v3090 = vsub.s32 %v3086, %v3089
    %vm3091 = vcmp.lt.s32.totalorder %v3090, 0
    %v3092 = vsub.s32 0, %v3090
    %v3093 = vsel %vm3091, %v3092, %v3090
    %v3094 = vclz %v3093
    %v3095 = vsub.s32 %v3094, 2
    %vm3096 = vcmp.gt.s32.totalorder 0, %v3095
    %v3097 = vsel %vm3096, 0, %v3095
    %v3098 = vsub.s32 32, %v3097
    %v3099 = vshll.u32 %v3090, %v3097
    %v3100 = vshrl.u32 %v3082, %v3098
    %v3101 = vor.u32 %v3099, %v3100
    %v3102 = vsub.s32 4294967266, %v3097
    %v3103 = vadd.s32 %v3102, 127
    %v3104 = vshll.u32 %v3103, 23
    %v3105 = vor.u32 4788187, %v3104
    %v3106 = vand.u32 2147483647, %v3105
    %v3108 = vcvt.s32.f32 %v3101
    %v3109 = vmul.f32 %v3108, %v3106
    %v3110 = vxor.u32 %v3109, 2147483648
    %v3111 = vsel %vm3028, %v3110, %v3109
    %v3112 = vsub.s32 4, %v3088
    %v3113 = vsel %vm3028, %v3112, %v3088
    %v3114 = vsel %vm3027, %v125, %v3111
    %v3115 = vsel %vm3027, 0, %v3113
    %v3116 = vcosq.f32.pop %v3114
    %v3117 = vsinq.f32.pop %v3114
    %vm3118 = vweird.f32 %v125
    %v3119 = vadd.s32 %v3115, 3
    %v3120 = vand.u32 %v3119, 3
    %vm3121 = vcmp.lt.s32.totalorder %v3120, 2
    %vm3122 = vcmp.eq.s32.totalorder %v3120, 0
    %v3123 = vxor.u32 %v3117, 2147483648
    %v3124 = vsel %vm3122, %v3116, %v3123
    %vm3125 = vcmp.eq.s32.totalorder %v3120, 2
    %v3126 = vxor.u32 %v3116, 2147483648
    %v3127 = vsel %vm3125, %v3126, %v3117
    %v3128 = vsel %vm3121, %v3124, %v3127
    %v3129 = vsel %vm3118, nan, %v3128
    %v3130 = vand.u32 2147483647, %v126
    %vm3131 = vcmp.le.f32.partialorder %v3130, 0.7853982
    %vm3132 = vcmp.lt.s32.totalorder %v126, 0
    %v3133 = vand.u32 %v126, 2139095040
    %v3134 = vshrl.u32 %v3133, 23
    %v3135 = vsub.s32 %v3134, 127
    %v3136 = vand.u32 2147483647, %v126
    %v3137 = vand.u32 %v3136, 8388607
    %v3138 = vor.u32 %v3137, 8388608
    %v3139 = vsub.s32 0, %v3138
    %v3140 = vadd.s32 %v3135, 1
    %vm3141 = vcmp.gt.s32.totalorder %v3140, 0
    %v3142 = vsel %vm3141, %v3140, 0
    %v3143 = vshrl.u32 %v3142, 5
    %v3144 = vand.u32 %v3142, 31
    %v3145 = vsub.s32 32, %v3144
    %v3146 = vshrl.u32 683565275, %v3145
    %v3147 = vshll.u32 683565275, %v3144
    %v3148 = vshrl.u32 2475754826, %v3145
    %v3149 = vor.u32 %v3147, %v3148
    %v3150 = vshll.u32 2475754826, %v3144
    %v3151 = vshrl.u32 2131351028, %v3145
    %v3152 = vor.u32 %v3150, %v3151
    %v3153 = vshll.u32 2131351028, %v3144
    %v3154 = vshrl.u32 2102212464, %v3145
    %v3155 = vor.u32 %v3153, %v3154
    %v3156 = vshll.u32 2102212464, %v3144
    %v3157 = vshrl.u32 920167782, %v3145
    %v3158 = vor.u32 %v3156, %v3157
    %v3159 = vshll.u32 920167782, %v3144
    %v3160 = vshrl.u32 1326507024, %v3145
    %v3161 = vor.u32 %v3159, %v3160
    %vm3162 = vcmp.lt.s32.totalorder %v3143, 1
    %vm3163 = vcmp.lt.s32.totalorder %v3143, 2
    %vm3164 = vcmp.lt.s32.totalorder %v3143, 3
    %vm3165 = vcmp.lt.s32.totalorder %v3143, 4
    %v3166 = vsel %vm3162, %v3146, %v3149
    %v3167 = vsel %vm3165, %v3155, 2102212464
    %v3168 = vsel %vm3164, %v3152, %v3167
    %v3169 = vsel %vm3163, %v3166, %v3168
    %v3170 = vsel %vm3162, %v3149, %v3152
    %v3171 = vsel %vm3165, %v3158, 920167782
    %v3172 = vsel %vm3164, %v3155, %v3171
    %v3173 = vsel %vm3163, %v3170, %v3172
    %v3174 = vsel %vm3162, %v3152, %v3155
    %v3175 = vsel %vm3165, %v3161, 1326507024
    %v3176 = vsel %vm3164, %v3158, %v3175
    %v3177 = vsel %vm3163, %v3174, %v3176
    %v3178 = vshll.u32 %v3138, 8
    %v3179 = vmul.u32.u64.compose %v3178, %v3177
    %v3180 = vextract.low.u32 %v3179
    %v3181 = vextract.high.u32 %v3179
    %v3182 = vmul.u32.u64.compose %v3178, %v3173
    %v3183 = vextract.low.u32 %v3182
    %v3184 = vextract.high.u32 %v3182
    %v3185 = vmul.u32 %v3178, %v3169
    %v3186 = vadd.s32 %v3181, %v3183
    %vm3187 = vc.u32 %v3181, %v3183
    %v3188 = vadd.s32 %v3184, 1
    %v3189 = vsel %vm3187, %v3188, %v3184
    %v3190 = vadd.s32 %v3185, %v3189
    %v3191 = vadd.s32 %v3190, 536870912
    %v3192 = vshrl.u32 %v3191, 30
    %v3193 = vshll.u32 %v3192, 30
    %v3194 = vsub.s32 %v3190, %v3193
    %vm3195 = vcmp.lt.s32.totalorder %v3194, 0
    %v3196 = vsub.s32 0, %v3194
    %v3197 = vsel %vm3195, %v3196, %v3194
    %v3198 = vclz %v3197
    %v3199 = vsub.s32 %v3198, 2
    %vm3200 = vcmp.gt.s32.totalorder 0, %v3199
    %v3201 = vsel %vm3200, 0, %v3199
    %v3202 = vsub.s32 32, %v3201
    %v3203 = vshll.u32 %v3194, %v3201
    %v3204 = vshrl.u32 %v3186, %v3202
    %v3205 = vor.u32 %v3203, %v3204
    %v3206 = vsub.s32 4294967266, %v3201
    %v3207 = vadd.s32 %v3206, 127
    %v3208 = vshll.u32 %v3207, 23
    %v3209 = vor.u32 4788187, %v3208
    %v3210 = vand.u32 2147483647, %v3209
    %v3212 = vcvt.s32.f32 %v3205
    %v3213 = vmul.f32 %v3212, %v3210
    %v3214 = vxor.u32 %v3213, 2147483648
    %v3215 = vsel %vm3132, %v3214, %v3213
    %v3216 = vsub.s32 4, %v3192
    %v3217 = vsel %vm3132, %v3216, %v3192
    %v3218 = vsel %vm3131, %v126, %v3215
    %v3219 = vsel %vm3131, 0, %v3217
    %v3220 = vcosq.f32.pop %v3218
    %v3221 = vsinq.f32.pop %v3218
    %vm3222 = vweird.f32 %v126
    %v3223 = vadd.s32 %v3219, 3
    %v3224 = vand.u32 %v3223, 3
    %vm3225 = vcmp.lt.s32.totalorder %v3224, 2
    %vm3226 = vcmp.eq.s32.totalorder %v3224, 0
    %v3227 = vxor.u32 %v3221, 2147483648
    %v3228 = vsel %vm3226, %v3220, %v3227
    %vm3229 = vcmp.eq.s32.totalorder %v3224, 2
    %v3230 = vxor.u32 %v3220, 2147483648
    %v3231 = vsel %vm3229, %v3230, %v3221
    %v3232 = vsel %vm3225, %v3228, %v3231
    %v3233 = vsel %vm3222, nan, %v3232
    %v3234 = vand.u32 2147483647, %v127
    %vm3235 = vcmp.le.f32.partialorder %v3234, 0.7853982
    %vm3236 = vcmp.lt.s32.totalorder %v127, 0
    %v3237 = vand.u32 %v127, 2139095040
    %v3238 = vshrl.u32 %v3237, 23
    %v3239 = vsub.s32 %v3238, 127
    %v3240 = vand.u32 2147483647, %v127
    %v3241 = vand.u32 %v3240, 8388607
    %v3242 = vor.u32 %v3241, 8388608
    %v3243 = vsub.s32 0, %v3242
    %v3244 = vadd.s32 %v3239, 1
    %vm3245 = vcmp.gt.s32.totalorder %v3244, 0
    %v3246 = vsel %vm3245, %v3244, 0
    %v3247 = vshrl.u32 %v3246, 5
    %v3248 = vand.u32 %v3246, 31
    %v3249 = vsub.s32 32, %v3248
    %v3250 = vshrl.u32 683565275, %v3249
    %v3251 = vshll.u32 683565275, %v3248
    %v3252 = vshrl.u32 2475754826, %v3249
    %v3253 = vor.u32 %v3251, %v3252
    %v3254 = vshll.u32 2475754826, %v3248
    %v3255 = vshrl.u32 2131351028, %v3249
    %v3256 = vor.u32 %v3254, %v3255
    %v3257 = vshll.u32 2131351028, %v3248
    %v3258 = vshrl.u32 2102212464, %v3249
    %v3259 = vor.u32 %v3257, %v3258
    %v3260 = vshll.u32 2102212464, %v3248
    %v3261 = vshrl.u32 920167782, %v3249
    %v3262 = vor.u32 %v3260, %v3261
    %v3263 = vshll.u32 920167782, %v3248
    %v3264 = vshrl.u32 1326507024, %v3249
    %v3265 = vor.u32 %v3263, %v3264
    %vm3266 = vcmp.lt.s32.totalorder %v3247, 1
    %vm3267 = vcmp.lt.s32.totalorder %v3247, 2
    %vm3268 = vcmp.lt.s32.totalorder %v3247, 3
    %vm3269 = vcmp.lt.s32.totalorder %v3247, 4
    %v3270 = vsel %vm3266, %v3250, %v3253
    %v3271 = vsel %vm3269, %v3259, 2102212464
    %v3272 = vsel %vm3268, %v3256, %v3271
    %v3273 = vsel %vm3267, %v3270, %v3272
    %v3274 = vsel %vm3266, %v3253, %v3256
    %v3275 = vsel %vm3269, %v3262, 920167782
    %v3276 = vsel %vm3268, %v3259, %v3275
    %v3277 = vsel %vm3267, %v3274, %v3276
    %v3278 = vsel %vm3266, %v3256, %v3259
    %v3279 = vsel %vm3269, %v3265, 1326507024
    %v3280 = vsel %vm3268, %v3262, %v3279
    %v3281 = vsel %vm3267, %v3278, %v3280
    %v3282 = vshll.u32 %v3242, 8
    %v3283 = vmul.u32.u64.compose %v3282, %v3281
    %v3284 = vextract.low.u32 %v3283
    %v3285 = vextract.high.u32 %v3283
    %v3286 = vmul.u32.u64.compose %v3282, %v3277
    %v3287 = vextract.low.u32 %v3286
    %v3288 = vextract.high.u32 %v3286
    %v3289 = vmul.u32 %v3282, %v3273
    %v3290 = vadd.s32 %v3285, %v3287
    %vm3291 = vc.u32 %v3285, %v3287
    %v3292 = vadd.s32 %v3288, 1
    %v3293 = vsel %vm3291, %v3292, %v3288
    %v3294 = vadd.s32 %v3289, %v3293
    %v3295 = vadd.s32 %v3294, 536870912
    %v3296 = vshrl.u32 %v3295, 30
    %v3297 = vshll.u32 %v3296, 30
    %v3298 = vsub.s32 %v3294, %v3297
    %vm3299 = vcmp.lt.s32.totalorder %v3298, 0
    %v3300 = vsub.s32 0, %v3298
    %v3301 = vsel %vm3299, %v3300, %v3298
    %v3302 = vclz %v3301
    %v3303 = vsub.s32 %v3302, 2
    %vm3304 = vcmp.gt.s32.totalorder 0, %v3303
    %v3305 = vsel %vm3304, 0, %v3303
    %v3306 = vsub.s32 32, %v3305
    %v3307 = vshll.u32 %v3298, %v3305
    %v3308 = vshrl.u32 %v3290, %v3306
    %v3309 = vor.u32 %v3307, %v3308
    %v3310 = vsub.s32 4294967266, %v3305
    %v3311 = vadd.s32 %v3310, 127
    %v3312 = vshll.u32 %v3311, 23
    %v3313 = vor.u32 4788187, %v3312
    %v3314 = vand.u32 2147483647, %v3313
    %v3316 = vcvt.s32.f32 %v3309
    %v3317 = vmul.f32 %v3316, %v3314
    %v3318 = vxor.u32 %v3317, 2147483648
    %v3319 = vsel %vm3236, %v3318, %v3317
    %v3320 = vsub.s32 4, %v3296
    %v3321 = vsel %vm3236, %v3320, %v3296
    %v3322 = vsel %vm3235, %v127, %v3319
    %v3323 = vsel %vm3235, 0, %v3321
    %v3324 = vcosq.f32.pop %v3322
    %v3325 = vsinq.f32.pop %v3322
    %vm3326 = vweird.f32 %v127
    %v3327 = vadd.s32 %v3323, 3
    %v3328 = vand.u32 %v3327, 3
    %vm3329 = vcmp.lt.s32.totalorder %v3328, 2
    %vm3330 = vcmp.eq.s32.totalorder %v3328, 0
    %v3331 = vxor.u32 %v3325, 2147483648
    %v3332 = vsel %vm3330, %v3324, %v3331
    %vm3333 = vcmp.eq.s32.totalorder %v3328, 2
    %v3334 = vxor.u32 %v3324, 2147483648
    %v3335 = vsel %vm3333, %v3334, %v3325
    %v3336 = vsel %vm3329, %v3332, %v3335
    %v3337 = vsel %vm3326, nan, %v3336
    %v3338 = vand.u32 2147483647, %v128
    %vm3339 = vcmp.le.f32.partialorder %v3338, 0.7853982
    %vm3340 = vcmp.lt.s32.totalorder %v128, 0
    %v3341 = vand.u32 %v128, 2139095040
    %v3342 = vshrl.u32 %v3341, 23
    %v3343 = vsub.s32 %v3342, 127
    %v3344 = vand.u32 2147483647, %v128
    %v3345 = vand.u32 %v3344, 8388607
    %v3346 = vor.u32 %v3345, 8388608
    %v3347 = vsub.s32 0, %v3346
    %v3348 = vadd.s32 %v3343, 1
    %vm3349 = vcmp.gt.s32.totalorder %v3348, 0
    %v3350 = vsel %vm3349, %v3348, 0
    %v3351 = vshrl.u32 %v3350, 5
    %v3352 = vand.u32 %v3350, 31
    %v3353 = vsub.s32 32, %v3352
    %v3354 = vshrl.u32 683565275, %v3353
    %v3355 = vshll.u32 683565275, %v3352
    %v3356 = vshrl.u32 2475754826, %v3353
    %v3357 = vor.u32 %v3355, %v3356
    %v3358 = vshll.u32 2475754826, %v3352
    %v3359 = vshrl.u32 2131351028, %v3353
    %v3360 = vor.u32 %v3358, %v3359
    %v3361 = vshll.u32 2131351028, %v3352
    %v3362 = vshrl.u32 2102212464, %v3353
    %v3363 = vor.u32 %v3361, %v3362
    %v3364 = vshll.u32 2102212464, %v3352
    %v3365 = vshrl.u32 920167782, %v3353
    %v3366 = vor.u32 %v3364, %v3365
    %v3367 = vshll.u32 920167782, %v3352
    %v3368 = vshrl.u32 1326507024, %v3353
    %v3369 = vor.u32 %v3367, %v3368
    %vm3370 = vcmp.lt.s32.totalorder %v3351, 1
    %vm3371 = vcmp.lt.s32.totalorder %v3351, 2
    %vm3372 = vcmp.lt.s32.totalorder %v3351, 3
    %vm3373 = vcmp.lt.s32.totalorder %v3351, 4
    %v3374 = vsel %vm3370, %v3354, %v3357
    %v3375 = vsel %vm3373, %v3363, 2102212464
    %v3376 = vsel %vm3372, %v3360, %v3375
    %v3377 = vsel %vm3371, %v3374, %v3376
    %v3378 = vsel %vm3370, %v3357, %v3360
    %v3379 = vsel %vm3373, %v3366, 920167782
    %v3380 = vsel %vm3372, %v3363, %v3379
    %v3381 = vsel %vm3371, %v3378, %v3380
    %v3382 = vsel %vm3370, %v3360, %v3363
    %v3383 = vsel %vm3373, %v3369, 1326507024
    %v3384 = vsel %vm3372, %v3366, %v3383
    %v3385 = vsel %vm3371, %v3382, %v3384
    %v3386 = vshll.u32 %v3346, 8
    %v3387 = vmul.u32.u64.compose %v3386, %v3385
    %v3388 = vextract.low.u32 %v3387
    %v3389 = vextract.high.u32 %v3387
    %v3390 = vmul.u32.u64.compose %v3386, %v3381
    %v3391 = vextract.low.u32 %v3390
    %v3392 = vextract.high.u32 %v3390
    %v3393 = vmul.u32 %v3386, %v3377
    %v3394 = vadd.s32 %v3389, %v3391
    %vm3395 = vc.u32 %v3389, %v3391
    %v3396 = vadd.s32 %v3392, 1
    %v3397 = vsel %vm3395, %v3396, %v3392
    %v3398 = vadd.s32 %v3393, %v3397
    %v3399 = vadd.s32 %v3398, 536870912
    %v3400 = vshrl.u32 %v3399, 30
    %v3401 = vshll.u32 %v3400, 30
    %v3402 = vsub.s32 %v3398, %v3401
    %vm3403 = vcmp.lt.s32.totalorder %v3402, 0
    %v3404 = vsub.s32 0, %v3402
    %v3405 = vsel %vm3403, %v3404, %v3402
    %v3406 = vclz %v3405
    %v3407 = vsub.s32 %v3406, 2
    %vm3408 = vcmp.gt.s32.totalorder 0, %v3407
    %v3409 = vsel %vm3408, 0, %v3407
    %v3410 = vsub.s32 32, %v3409
    %v3411 = vshll.u32 %v3402, %v3409
    %v3412 = vshrl.u32 %v3394, %v3410
    %v3413 = vor.u32 %v3411, %v3412
    %v3414 = vsub.s32 4294967266, %v3409
    %v3415 = vadd.s32 %v3414, 127
    %v3416 = vshll.u32 %v3415, 23
    %v3417 = vor.u32 4788187, %v3416
    %v3418 = vand.u32 2147483647, %v3417
    %v3420 = vcvt.s32.f32 %v3413
    %v3421 = vmul.f32 %v3420, %v3418
    %v3422 = vxor.u32 %v3421, 2147483648
    %v3423 = vsel %vm3340, %v3422, %v3421
    %v3424 = vsub.s32 4, %v3400
    %v3425 = vsel %vm3340, %v3424, %v3400
    %v3426 = vsel %vm3339, %v128, %v3423
    %v3427 = vsel %vm3339, 0, %v3425
    %v3428 = vcosq.f32.pop %v3426
    %v3429 = vsinq.f32.pop %v3426
    %vm3430 = vweird.f32 %v128
    %v3431 = vadd.s32 %v3427, 3
    %v3432 = vand.u32 %v3431, 3
    %vm3433 = vcmp.lt.s32.totalorder %v3432, 2
    %vm3434 = vcmp.eq.s32.totalorder %v3432, 0
    %v3435 = vxor.u32 %v3429, 2147483648
    %v3436 = vsel %vm3434, %v3428, %v3435
    %vm3437 = vcmp.eq.s32.totalorder %v3432, 2
    %v3438 = vxor.u32 %v3428, 2147483648
    %v3439 = vsel %vm3437, %v3438, %v3429
    %v3440 = vsel %vm3433, %v3436, %v3439
    %v3441 = vsel %vm3430, nan, %v3440
    %v3442 = vsel %vm129, 1, 0
    %v3443 = vlaneseq
    %v3444 = vshrl.u32 %v3443, 7
    %v3445 = vsub.s32 2, %v3444
    %v3446 = vrot.slane %v3442, %v3445
    %vm3447 = vcmp.eq.s32.totalorder %v3446, 1
    %v3448 = vsel %vm3447, %v232, %v1881
    %v3449 = vsel %vm3447, %v335, %v1985
    %v3450 = vsel %vm3447, %v438, %v2089
    %v3451 = vsel %vm3447, %v541, %v2193
    %v3452 = vsel %vm3447, %v644, %v2297
    %v3453 = vsel %vm3447, %v747, %v2401
    %v3454 = vsel %vm3447, %v850, %v2505
    %v3455 = vsel %vm3447, %v953, %v2609
    %v3456 = vsel %vm3447, %v1056, %v2713
    %v3457 = vsel %vm3447, %v1159, %v2817
    %v3458 = vsel %vm3447, %v1262, %v2921
    %v3459 = vsel %vm3447, %v1365, %v3025
    %v3460 = vsel %vm3447, %v1468, %v3129
    %v3461 = vsel %vm3447, %v1571, %v3233
    %v3462 = vsel %vm3447, %v1674, %v3337
    %v3463 = vsel %vm3447, %v1777, %v3441
    %3464 = vst [vmem:[#allocation5] sm:$0xff] %v3448
    %3465 = vst [vmem:[#allocation5 + $0x8] sm:$0xff] %v3449
    %3466 = vst [vmem:[#allocation5 + $0x10] sm:$0xff] %v3450
    %3467 = vst [vmem:[#allocation5 + $0x18] sm:$0xff] %v3451
    %3468 = vst [vmem:[#allocation5 + $0x20] sm:$0xff] %v3452
    %3469 = vst [vmem:[#allocation5 + $0x28] sm:$0xff] %v3453
    %3470 = vst [vmem:[#allocation5 + $0x30] sm:$0xff] %v3454
    %3471 = vst [vmem:[#allocation5 + $0x38] sm:$0xff] %v3455
    %3472 = vst [vmem:[#allocation5 + $0x40] sm:$0xff] %v3456
    %3473 = vst [vmem:[#allocation5 + $0x48] sm:$0xff] %v3457
    %3474 = vst [vmem:[#allocation5 + $0x50] sm:$0xff] %v3458
    %3475 = vst [vmem:[#allocation5 + $0x58] sm:$0xff] %v3459
    %3476 = vst [vmem:[#allocation5 + $0x60] sm:$0xff] %v3460
    %3477 = vst [vmem:[#allocation5 + $0x68] sm:$0xff] %v3461
    %3478 = vst [vmem:[#allocation5 + $0x70] sm:$0xff] %v3462
    %3479 = vst [vmem:[#allocation5 + $0x78] sm:$0xff] %v3463
    // Predicated region
    $region10: #{tpu_custom_call.1} parent=1 // pred_check
      _
    $region11: #{tpu_custom_call.1} parent=1 // pred_check_branch
      %3481 = sbr.rel (0) target = $region13
    $region12: #{tpu_custom_call.1} parent=1 // pred_region
      %s3483 = ssub.s32 2048, 2048
      %3484 = vsyncadd [#allocation4], %s3483
      %s3485 = sshll.u32 [#allocation5], 4
      %s3486 = int_to_ptr.vmem [resolvable:$true] %s3485
      %3491 = dma.vmem_to_hbm [thread:$0]  %s3486, 2048, %s1, [#allocation4], 128, 128, 8
    $region13: #{tpu_custom_call.1} parent=1 // pred_fallthru
      _
    // Predicated region
    $region14: #{tpu_custom_call.1} parent=1 // pred_check
      _
    $region15: #{tpu_custom_call.1} parent=1 // pred_check_branch
      %3493 = sbr.rel (0) target = $region17
    $region16: #{tpu_custom_call.1} parent=1 // pred_region
      %3494 = dma.done [#allocation4], 2048
    $region17: #{tpu_custom_call.1} parent=1 // pred_fallthru
      _
    %3495 = vsyncpa [#allocation3], 1
    %3496 = vsyncpa [#allocation4], 1

</llo_original>
